<compile_context>
chip_gen: v7x
topology: tpu7x:2x2x1
jax: 0.10.0
libtpu: 0.0.40
codegen_flags: <defaults>
</compile_context>

<pallas_src>
import functools
import math

import jax
import jax.numpy as jnp
from jax.experimental import pallas as pl
from jax.experimental.pallas import tpu as pltpu

_VMEM_LIMIT = 32 * 1024 * 1024  # safe on v5e/v6e/v7x (>= default scoped on all)


# ------------------------------- helpers -----------------------------------

def _round_up(x, m):
    return ((x + m - 1) // m) * m


def _pad2d(x, rows, cols):
    pr, pc = rows - x.shape[0], cols - x.shape[1]
    if pr == 0 and pc == 0:
        return x
    return jnp.pad(x, ((0, pr), (0, pc)))


# --------------------------- tiled linear kernel ----------------------------

def _linear_kernel(x_ref, w_ref, b_ref, o_ref, acc_ref, *, act):
    @pl.when(pl.program_id(2) == 0)
    def _():
        acc_ref[...] = jnp.zeros_like(acc_ref)

    acc_ref[...] += jnp.dot(x_ref[...], w_ref[...],
                            preferred_element_type=jnp.float32)

    @pl.when(pl.program_id(2) == pl.num_programs(2) - 1)
    def _():
        out = acc_ref[...] + b_ref[...]
        if act == "gelu":
            # TODO(synk): HF Roberta uses erf-GELU; tanh-GELU (EUP) is ~1e-3 close.
            out = jax.nn.gelu(out, approximate=True)
        o_ref[...] = out.astype(o_ref.dtype)


def pallas_linear(x, w, b, act=None, out_dtype=jnp.bfloat16,
                  tm=256, tn=512, tk=1024):
    """out = act(x @ w + b). bf16 MXU matmul, f32 accumulator, 3-D tiled grid
    (M parallel, N parallel, K arbitrary). N is always padded to a multiple of
    128 so stores stay lane-dense."""
    M, K = x.shape
    N = w.shape[1]

    if K <= tk:
        tk_e, Kp = K, K
    else:
        tk_e, Kp = tk, _round_up(K, tk)
    tn_e = min(tn, _round_up(N, 128))
    Np = _round_up(N, tn_e)
    tm_e = min(tm, _round_up(M, 8))
    Mp = _round_up(M, tm_e)

    xp = _pad2d(x.astype(jnp.bfloat16), Mp, Kp)
    wp = _pad2d(w.astype(jnp.bfloat16), Kp, Np)
    bp = _pad2d(b.astype(jnp.float32).reshape(1, N), 1, Np)

    grid = (Mp // tm_e, Np // tn_e, Kp // tk_e)
    out = pl.pallas_call(
        functools.partial(_linear_kernel, act=act),
        out_shape=jax.ShapeDtypeStruct((Mp, Np), out_dtype),
        grid=grid,
        in_specs=[
            pl.BlockSpec((tm_e, tk_e), lambda i, j, k: (i, k)),
            pl.BlockSpec((tk_e, tn_e), lambda i, j, k: (k, j)),
            pl.BlockSpec((1, tn_e), lambda i, j, k: (0, j)),
        ],
        out_specs=pl.BlockSpec((tm_e, tn_e), lambda i, j, k: (i, j)),
        scratch_shapes=[pltpu.VMEM((tm_e, tn_e), jnp.float32)],
        compiler_params=pltpu.CompilerParams(
            dimension_semantics=("parallel", "parallel", "arbitrary"),
            vmem_limit_bytes=_VMEM_LIMIT),
    )(xp, wp, bp)
    return out[:M, :N]


# ----------------------- (residual +) LayerNorm kernel ----------------------

def _ln_stats_store(x, g, b, o_ref, eps):
    mu = jnp.mean(x, axis=-1, keepdims=True)
    var = jnp.mean(jnp.square(x - mu), axis=-1, keepdims=True)
    y = (x - mu) * jax.lax.rsqrt(var + eps)
    o_ref[...] = (y * g + b).astype(o_ref.dtype)


def _ln_kernel(x_ref, g_ref, b_ref, o_ref, *, eps):
    _ln_stats_store(x_ref[...].astype(jnp.float32),
                    g_ref[...], b_ref[...], o_ref, eps)


def _ln_res_kernel(x_ref, r_ref, g_ref, b_ref, o_ref, *, eps):
    x = x_ref[...].astype(jnp.float32) + r_ref[...].astype(jnp.float32)
    _ln_stats_store(x, g_ref[...], b_ref[...], o_ref, eps)


def pallas_layernorm(x, gamma, beta, residual=None, eps=1e-5,
                     out_dtype=jnp.bfloat16, tm=512):
    """LayerNorm over rows, tiled over the token axis ('parallel' grid).
    Optionally fuses a residual add (saves one HBM round trip per call)."""
    M, H = x.shape
    tm_e = min(tm, _round_up(M, 8))
    Mp = _round_up(M, tm_e)
    xp = _pad2d(x, Mp, H)
    g2 = gamma.astype(jnp.float32).reshape(1, H)
    b2 = beta.astype(jnp.float32).reshape(1, H)

    row_spec = pl.BlockSpec((tm_e, H), lambda i: (i, 0))
    vec_spec = pl.BlockSpec((1, H), lambda i: (0, 0))
    cp = pltpu.CompilerParams(dimension_semantics=("parallel",),
                              vmem_limit_bytes=_VMEM_LIMIT)
    grid = (Mp // tm_e,)

    if residual is None:
        out = pl.pallas_call(
            functools.partial(_ln_kernel, eps=eps),
            out_shape=jax.ShapeDtypeStruct((Mp, H), out_dtype),
            grid=grid,
            in_specs=[row_spec, vec_spec, vec_spec],
            out_specs=row_spec,
            compiler_params=cp,
        )(xp, g2, b2)
    else:
        rp = _pad2d(residual, Mp, H)
        out = pl.pallas_call(
            functools.partial(_ln_res_kernel, eps=eps),
            out_shape=jax.ShapeDtypeStruct((Mp, H), out_dtype),
            grid=grid,
            in_specs=[row_spec, row_spec, vec_spec, vec_spec],
            out_specs=row_spec,
            compiler_params=cp,
        )(xp, rp, g2, b2)
    return out[:M]


# ------------------- weak-memory multi-head attention -----------------------

def _attn_kernel(qkv_ref, mem_ref, o_ref, *, scale, nheads, dh, H):
    qkv = qkv_ref[...].astype(jnp.float32)      # (G, L, 3H)
    mem = mem_ref[...].astype(jnp.float32)      # (G, 1, H)
    outs = []
    for h in range(nheads):                     # static loop, heads sliced in-register
        lo = h * dh
        qh = qkv[..., lo:lo + dh]               # (G, L, dh)
        kh = qkv[..., H + lo:H + lo + dh]
        vh = qkv[..., 2 * H + lo:2 * H + lo + dh]
        mh = mem[..., lo:lo + dh]               # (G, 1, dh)

        s = jnp.einsum('bqd,bkd->bqk', qh, kh,
                       preferred_element_type=jnp.float32) * scale       # (G,L,L)
        s_m = jnp.sum(qh * mh, axis=-1, keepdims=True) * scale           # (G,L,1) memory slot
        m = jnp.maximum(jnp.max(s, axis=-1, keepdims=True), s_m)
        p = jnp.exp(s - m)
        p_m = jnp.exp(s_m - m)
        inv = pl.reciprocal(jnp.sum(p, axis=-1, keepdims=True) + p_m, approx=True)
        ctx = jnp.einsum('bqk,bkd->bqd', p, vh,
                         preferred_element_type=jnp.float32) + p_m * mh
        outs.append(ctx * inv)
    o_ref[...] = jnp.concatenate(outs, axis=-1).astype(o_ref.dtype)


def pallas_attention(qkv, mem, scale, nheads, block_b=4):
    """qkv: (SB, L, 3H) fused projections, mem: (SB, 1, H) weak-memory vector.
    Softmax over L+1 slots (memory prepended) computed fully in-kernel; the
    grid processes block_b batch elements per step ('parallel' over batches)."""
    SB, L, H3 = qkv.shape
    H = H3 // 3
    dh = H // nheads
    G = min(block_b, SB)
    SBp = _round_up(SB, G)

    def pad_b(a):
        if a.shape[0] == SBp:
            return a
        return jnp.pad(a, ((0, SBp - a.shape[0]), (0, 0), (0, 0)))

    qkv_p, mem_p = pad_b(qkv), pad_b(mem)
    qkv_spec = pl.BlockSpec((G, L, H3), lambda i: (i, 0, 0))
    mem_spec = pl.BlockSpec((G, 1, H), lambda i: (i, 0, 0))
    out_spec = pl.BlockSpec((G, L, H), lambda i: (i, 0, 0))

    out = pl.pallas_call(
        functools.partial(_attn_kernel, scale=scale, nheads=nheads, dh=dh, H=H),
        out_shape=jax.ShapeDtypeStruct((SBp, L, H), jnp.bfloat16),
        grid=(SBp // G,),
        in_specs=[qkv_spec, mem_spec],
        out_specs=out_spec,
        compiler_params=pltpu.CompilerParams(
            dimension_semantics=("parallel",),
            vmem_limit_bytes=_VMEM_LIMIT),
    )(qkv_p, mem_p)
    return out[:SB]


# ------------------------- parameter initialization -------------------------

def init_params(key, cfg):
    H, D, L, V = cfg["H"], cfg["D"], cfg["L"], cfg["V"]
    nlayers, inter = cfg["nlayers"], cfg["inter"]
    std = cfg["initializer_range"]
    keys = iter(jax.random.split(key, 128))

    def w(kin, kout):
        return (jax.random.normal(next(keys), (kin, kout), jnp.float32) * std
                ).astype(jnp.bfloat16)

    def b(n):
        return jnp.zeros((n,), jnp.float32)

    def ones(n):
        return jnp.ones((n,), jnp.float32)

    # TODO(synk): real checkpoint would load distilroberta-base weights here.
    # Fused latent heads: columns = [length(L+1) | memory(H*nlayers) | embedding(H)]
    latent_w = jnp.concatenate([w(D, L + 1), w(D, H * nlayers), w(D, H)], axis=1)
    latent_b = b(L + 1 + H * nlayers + H)

    p = dict(
        latent_w=latent_w, latent_b=latent_b,
        word_emb=w(V, H), pos_emb=w(L + 2, H), type_emb=w(1, H),
        emb_ln_g=ones(H), emb_ln_b=b(H),
        layers=[],
        lm_dense_w=w(H, H), lm_dense_b=b(H),
        lm_ln_g=ones(H), lm_ln_b=b(H),
        lm_dec_w=w(H, V), lm_dec_b=b(V),
    )
    for _ in range(nlayers):
        p["layers"].append(dict(
            qkv_w=jnp.concatenate([w(H, H), w(H, H), w(H, H)], axis=1),
            qkv_b=b(3 * H),
            o_w=w(H, H), o_b=b(H),
            ln1_g=ones(H), ln1_b=b(H),
            fi_w=w(H, inter), fi_b=b(inter),
            fo_w=w(inter, H), fo_b=b(H),
            ln2_g=ones(H), ln2_b=b(H),
        ))
    return p


# --------------------------------- forward ----------------------------------

def decoder_forward(params, z, x_in, cfg):
    H, L, V, D = cfg["H"], cfg["L"], cfg["V"], cfg["D"]
    nheads, nlayers = cfg["nheads"], cfg["nlayers"]
    pad_id, mask_id = cfg["pad_token_id"], cfg["mask_token_id"]
    dh = H // nheads
    S, B, _ = z.shape
    SB = S * B

    z2d = z.reshape(SB, D).astype(jnp.bfloat16)

    # Fused latent projections (one matmul: length + memory + embedding heads).
    lat_out = pallas_linear(z2d, params["latent_w"], params["latent_b"],
                            out_dtype=jnp.float32)
    length_logits = lat_out[:, :L + 1].reshape(S, B, L + 1)
    z_mem = lat_out[:, L + 1:L + 1 + H * nlayers].astype(jnp.bfloat16)   # (SB, H*nlayers)
    lat_emb = lat_out[:, L + 1 + H * nlayers:].astype(jnp.bfloat16)      # (SB, H)

    # Token construction from x_in (deterministic branch of the torch forward).
    attention_mask = jnp.tile(x_in[1], (S, 1))                           # x_in[1].repeat(S, 1)
    input_tokens = jnp.where(attention_mask == 1.0, mask_id, pad_id).astype(jnp.int32)
    # TODO(synk): real checkpoint uses <mask>=50264 / pad=1 from the distilroberta vocab.

    # Roberta embeddings (gather kept in XLA; LayerNorm is a Pallas kernel).
    word = jnp.take(params["word_emb"], input_tokens, axis=0)            # (SB, L, H)
    pos = jnp.take(params["pos_emb"], jnp.arange(2, L + 2), axis=0)[None]
    tok_type = params["type_emb"][0][None, None, :]
    emb = (word + pos + tok_type).reshape(SB * L, H)
    hidden = pallas_layernorm(emb, params["emb_ln_g"], params["emb_ln_b"])
    # weak-memory decoder: latent injected via embeddings (+ per-layer KV slot below)
    hidden = (hidden.reshape(SB, L, H) + lat_emb[:, None, :]).reshape(SB * L, H)

    scale = 1.0 / math.sqrt(dh)
    for l in range(nlayers):
        lp = params["layers"][l]
        qkv = pallas_linear(hidden, lp["qkv_w"], lp["qkv_b"])            # (SB*L, 3H)
        mem = z_mem[:, l * H:(l + 1) * H].reshape(SB, 1, H)              # memory KV slot
        ctx = pallas_attention(qkv.reshape(SB, L, 3 * H), mem, scale, nheads)
        attn_out = pallas_linear(ctx.reshape(SB * L, H), lp["o_w"], lp["o_b"])
        hidden = pallas_layernorm(attn_out, lp["ln1_g"], lp["ln1_b"], residual=hidden)
        ffn = pallas_linear(hidden, lp["fi_w"], lp["fi_b"], act="gelu")
        ffn = pallas_linear(ffn, lp["fo_w"], lp["fo_b"])
        hidden = pallas_layernorm(ffn, lp["ln2_g"], lp["ln2_b"], residual=hidden)

    # RobertaLMHead: dense -> gelu -> layernorm -> vocab decoder.
    x = pallas_linear(hidden, params["lm_dense_w"], params["lm_dense_b"], act="gelu")
    x = pallas_layernorm(x, params["lm_ln_g"], params["lm_ln_b"])
    logits = pallas_linear(x, params["lm_dec_w"], params["lm_dec_b"],
                           out_dtype=jnp.float32)                        # (SB*L, V)

    p_x_z_params = logits.reshape(S, B, L, V)
    # TODO(synk): x_in=None branch (td.Categorical length sampling) not implemented (stochastic).
    return p_x_z_params, length_logits


# ----------------------------------- main ------------------------------------

if __name__ == "__main__":
    cfg = dict(D=16, L=8, V=256, H=32, nheads=2, nlayers=2, inter=64,
               pad_token_id=1, mask_token_id=4, initializer_range=0.02)
    S, B = 2, 2

    key = jax.random.PRNGKey(0)
    kp, kz, km = jax.random.split(key, 3)
    params = init_params(kp, cfg)
    z = jax.random.normal(kz, (S, B, cfg["D"]), jnp.float32)
    attn_mask = (jax.random.uniform(km, (B, cfg["L"])) > 0.3).astype(jnp.float32)
    x_in = (None, attn_mask)   # mimics the torch (tokens, attention_mask) pair

    fwd = jax.jit(functools.partial(decoder_forward, cfg=cfg))
    p_x_z_params, length_logits = fwd(params, z, x_in)
    jax.block_until_ready((p_x_z_params, length_logits))

    assert p_x_z_params.shape == (S, B, cfg["L"], cfg["V"])
    assert length_logits.shape == (S, B, cfg["L"] + 1)
    assert bool(jnp.all(jnp.isfinite(p_x_z_params)))
    print("KERNEL_OK")
</pallas_src>

<mosaic_0001>
module attributes {stable_mosaic.version = 11 : i64} {
  func.func @_ln_kernel(%arg0: i32, %arg1: memref<32x32xbf16, #tpu.memory_space<vmem>>, %arg2: memref<1x32xf32, #tpu.memory_space<vmem>>, %arg3: memref<1x32xf32, #tpu.memory_space<vmem>>, %arg4: memref<32x32xbf16, #tpu.memory_space<vmem>>) attributes {dimension_semantics = [#tpu.dimension_semantics<parallel>], iteration_bounds = array<i64: 1>, scalar_prefetch = 0 : i64, scratch_operands = 0 : i64, tpu.core_type = #tpu.core_type<tc>, window_params = [{transform_indices = @transform_0, window_bounds = array<i64: 32, 32>}, {pipeline_mode = #tpu.pipeline_mode<synchronous>, transform_indices = @transform_1, window_bounds = array<i64: 1, 32>}, {pipeline_mode = #tpu.pipeline_mode<synchronous>, transform_indices = @transform_2, window_bounds = array<i64: 1, 32>}, {transform_indices = @transform_3, window_bounds = array<i64: 32, 32>}]} {
    %c0 = arith.constant 0 : index
    %c0_0 = arith.constant 0 : index
    %0 = vector.load %arg1[%c0, %c0_0] : memref<32x32xbf16, #tpu.memory_space<vmem>>, vector<32x32xbf16>
    %1 = arith.extf %0 : vector<32x32xbf16> to vector<32x32xf32>
    %c0_1 = arith.constant 0 : index
    %c0_2 = arith.constant 0 : index
    %2 = vector.load %arg2[%c0_1, %c0_2] : memref<1x32xf32, #tpu.memory_space<vmem>>, vector<1x32xf32>
    %c0_3 = arith.constant 0 : index
    %c0_4 = arith.constant 0 : index
    %3 = vector.load %arg3[%c0_3, %c0_4] : memref<1x32xf32, #tpu.memory_space<vmem>>, vector<1x32xf32>
    %cst = arith.constant dense<0.000000e+00> : vector<32xf32>
    %4 = vector.multi_reduction <add>, %1, %cst [1] : vector<32x32xf32> to vector<32xf32>
    %5 = vector.shape_cast %4 : vector<32xf32> to vector<32x1xf32>
    %cst_5 = arith.constant 3.200000e+01 : f32
    %6 = vector.broadcast %cst_5 : f32 to vector<32x1xf32>
    %7 = arith.divf %5, %6 : vector<32x1xf32>
    %8 = vector.broadcast %7 : vector<32x1xf32> to vector<32x32xf32>
    %9 = arith.subf %1, %8 : vector<32x32xf32>
    %10 = arith.mulf %9, %9 : vector<32x32xf32>
    %cst_6 = arith.constant dense<0.000000e+00> : vector<32xf32>
    %11 = vector.multi_reduction <add>, %10, %cst_6 [1] : vector<32x32xf32> to vector<32xf32>
    %12 = vector.shape_cast %11 : vector<32xf32> to vector<32x1xf32>
    %cst_7 = arith.constant 3.200000e+01 : f32
    %13 = vector.broadcast %cst_7 : f32 to vector<32x1xf32>
    %14 = arith.divf %12, %13 : vector<32x1xf32>
    %15 = vector.broadcast %7 : vector<32x1xf32> to vector<32x32xf32>
    %16 = arith.subf %1, %15 : vector<32x32xf32>
    %cst_8 = arith.constant 9.99999974E-6 : f32
    %17 = vector.broadcast %cst_8 : f32 to vector<32x1xf32>
    %18 = arith.addf %14, %17 : vector<32x1xf32>
    %19 = math.rsqrt %18 : vector<32x1xf32>
    %20 = vector.broadcast %19 : vector<32x1xf32> to vector<32x32xf32>
    %21 = arith.mulf %16, %20 : vector<32x32xf32>
    %22 = vector.broadcast %2 : vector<1x32xf32> to vector<32x32xf32>
    %23 = arith.mulf %21, %22 : vector<32x32xf32>
    %24 = vector.broadcast %3 : vector<1x32xf32> to vector<32x32xf32>
    %25 = arith.addf %23, %24 : vector<32x32xf32>
    %26 = arith.truncf %25 : vector<32x32xf32> to vector<32x32xbf16>
    %c0_9 = arith.constant 0 : index
    %c0_10 = arith.constant 0 : index
    %27 = vector.load %arg4[%c0_9, %c0_10] : memref<32x32xbf16, #tpu.memory_space<vmem>>, vector<32x32xbf16>
    tpu.vector_store %arg4[%c0_9, %c0_10], %26 {strides = array<i32>} : memref<32x32xbf16, #tpu.memory_space<vmem>>, vector<32x32xbf16>,
    return
  }
  func.func @transform_0(%arg0: i32) -> (i32, i32) {
    %c0_i32 = arith.constant 0 : i32
    %c0_i32_0 = arith.constant 0 : i32
    return %arg0, %c0_i32 : i32, i32
  }
  func.func @transform_1(%arg0: i32) -> (i32, i32) {
    %c0_i32 = arith.constant 0 : i32
    %c0_i32_0 = arith.constant 0 : i32
    %c0_i32_1 = arith.constant 0 : i32
    return %c0_i32, %c0_i32_0 : i32, i32
  }
  func.func @transform_2(%arg0: i32) -> (i32, i32) {
    %c0_i32 = arith.constant 0 : i32
    %c0_i32_0 = arith.constant 0 : i32
    %c0_i32_1 = arith.constant 0 : i32
    return %c0_i32, %c0_i32_0 : i32, i32
  }
  func.func @transform_3(%arg0: i32) -> (i32, i32) {
    %c0_i32 = arith.constant 0 : i32
    %c0_i32_0 = arith.constant 0 : i32
    return %arg0, %c0_i32 : i32, i32
  }
}

module attributes {stable_mosaic.version = 11 : i64} {
  func.func @_linear_kernel(%arg0: i32, %arg1: i32, %arg2: i32, %arg3: memref<32x32xbf16, #tpu.memory_space<vmem>>, %arg4: memref<32x128xbf16, #tpu.memory_space<vmem>>, %arg5: memref<1x128xf32, #tpu.memory_space<vmem>>, %arg6: memref<32x128xbf16, #tpu.memory_space<vmem>>, %arg7: memref<32x128xf32, #tpu.memory_space<vmem>>) attributes {dimension_semantics = [#tpu.dimension_semantics<parallel>, #tpu.dimension_semantics<parallel>, #tpu.dimension_semantics<arbitrary>], iteration_bounds = array<i64: 1, 1, 1>, scalar_prefetch = 0 : i64, scratch_operands = 1 : i64, tpu.core_type = #tpu.core_type<tc>, window_params = [{transform_indices = @transform_0, window_bounds = array<i64: 32, 32>}, {transform_indices = @transform_1, window_bounds = array<i64: 32, 128>}, {transform_indices = @transform_2, window_bounds = array<i64: 1, 128>}, {transform_indices = @transform_3, window_bounds = array<i64: 32, 128>}]} {
    %c0_i32 = arith.constant 0 : i32
    %0 = arith.cmpi eq, %arg2, %c0_i32 : i32
    %1 = arith.extui %0 : i1 to i32
    %c0_i32_0 = arith.constant 0 : i32
    %2 = arith.cmpi ne, %1, %c0_i32_0 : i32
    scf.if %2 {
      %cst_10 = arith.constant 0.000000e+00 : f32
      %12 = vector.broadcast %cst_10 : f32 to vector<32x128xf32>
      %c0_11 = arith.constant 0 : index
      %c0_12 = arith.constant 0 : index
      %13 = vector.load %arg7[%c0_11, %c0_12] : memref<32x128xf32, #tpu.memory_space<vmem>>, vector<32x128xf32>
      tpu.vector_store %arg7[%c0_11, %c0_12], %12 {strides = array<i32>} : memref<32x128xf32, #tpu.memory_space<vmem>>, vector<32x128xf32>,
    } else {
    }
    %c0 = arith.constant 0 : index
    %c0_1 = arith.constant 0 : index
    %3 = vector.load %arg7[%c0, %c0_1] : memref<32x128xf32, #tpu.memory_space<vmem>>, vector<32x128xf32>
    %c0_2 = arith.constant 0 : index
    %c0_3 = arith.constant 0 : index
    %4 = vector.load %arg3[%c0_2, %c0_3] : memref<32x32xbf16, #tpu.memory_space<vmem>>, vector<32x32xbf16>
    %c0_4 = arith.constant 0 : index
    %c0_5 = arith.constant 0 : index
    %5 = vector.load %arg4[%c0_4, %c0_5] : memref<32x128xbf16, #tpu.memory_space<vmem>>, vector<32x128xbf16>
    %cst = arith.constant dense<0.000000e+00> : vector<32x128xf32>
    %6 = tpu.matmul %4, %5, %cst {dimension_numbers = #tpu.dot_dimension_numbers<[1], [0], [0], [1], [0, 0, 1, 1], [], []>} : vector<32x32xbf16>, vector<32x128xbf16>, vector<32x128xf32> -> vector<32x128xf32>
    %7 = arith.addf %3, %6 : vector<32x128xf32>
    %c0_6 = arith.constant 0 : index
    %c0_7 = arith.constant 0 : index
    %8 = vector.load %arg7[%c0_6, %c0_7] : memref<32x128xf32, #tpu.memory_space<vmem>>, vector<32x128xf32>
    tpu.vector_store %arg7[%c0_6, %c0_7], %7 {strides = array<i32>} : memref<32x128xf32, #tpu.memory_space<vmem>>, vector<32x128xf32>,
    %c0_i32_8 = arith.constant 0 : i32
    %9 = arith.cmpi eq, %arg2, %c0_i32_8 : i32
    %10 = arith.extui %9 : i1 to i32
    %c0_i32_9 = arith.constant 0 : i32
    %11 = arith.cmpi ne, %10, %c0_i32_9 : i32
    scf.if %11 {
      %c0_10 = arith.constant 0 : index
      %c0_11 = arith.constant 0 : index
      %12 = vector.load %arg7[%c0_10, %c0_11] : memref<32x128xf32, #tpu.memory_space<vmem>>, vector<32x128xf32>
      %c0_12 = arith.constant 0 : index
      %c0_13 = arith.constant 0 : index
      %13 = vector.load %arg5[%c0_12, %c0_13] : memref<1x128xf32, #tpu.memory_space<vmem>>, vector<1x128xf32>
      %14 = vector.broadcast %13 : vector<1x128xf32> to vector<32x128xf32>
      %15 = arith.addf %12, %14 : vector<32x128xf32>
      %16 = arith.truncf %15 : vector<32x128xf32> to vector<32x128xbf16>
      %c0_14 = arith.constant 0 : index
      %c0_15 = arith.constant 0 : index
      %17 = vector.load %arg6[%c0_14, %c0_15] : memref<32x128xbf16, #tpu.memory_space<vmem>>, vector<32x128xbf16>
      tpu.vector_store %arg6[%c0_14, %c0_15], %16 {strides = array<i32>} : memref<32x128xbf16, #tpu.memory_space<vmem>>, vector<32x128xbf16>,
    } else {
    }
    return
  }
  func.func @transform_0(%arg0: i32, %arg1: i32, %arg2: i32) -> (i32, i32) {
    %c0_i32 = arith.constant 0 : i32
    return %arg0, %arg2 : i32, i32
  }
  func.func @transform_1(%arg0: i32, %arg1: i32, %arg2: i32) -> (i32, i32) {
    %c0_i32 = arith.constant 0 : i32
    return %arg2, %arg1 : i32, i32
  }
  func.func @transform_2(%arg0: i32, %arg1: i32, %arg2: i32) -> (i32, i32) {
    %c0_i32 = arith.constant 0 : i32
    %c0_i32_0 = arith.constant 0 : i32
    return %c0_i32, %arg1 : i32, i32
  }
  func.func @transform_3(%arg0: i32, %arg1: i32, %arg2: i32) -> (i32, i32) {
    %c0_i32 = arith.constant 0 : i32
    return %arg0, %arg1 : i32, i32
  }
}

module attributes {stable_mosaic.version = 11 : i64} {
  func.func @_linear_kernel(%arg0: i32, %arg1: i32, %arg2: i32, %arg3: memref<8x16xbf16, #tpu.memory_space<vmem>>, %arg4: memref<16x128xbf16, #tpu.memory_space<vmem>>, %arg5: memref<1x128xf32, #tpu.memory_space<vmem>>, %arg6: memref<8x128xf32, #tpu.memory_space<vmem>>, %arg7: memref<8x128xf32, #tpu.memory_space<vmem>>) attributes {dimension_semantics = [#tpu.dimension_semantics<parallel>, #tpu.dimension_semantics<parallel>, #tpu.dimension_semantics<arbitrary>], iteration_bounds = array<i64: 1, 1, 1>, scalar_prefetch = 0 : i64, scratch_operands = 1 : i64, tpu.core_type = #tpu.core_type<tc>, window_params = [{transform_indices = @transform_0, window_bounds = array<i64: 8, 16>}, {transform_indices = @transform_1, window_bounds = array<i64: 16, 128>}, {transform_indices = @transform_2, window_bounds = array<i64: 1, 128>}, {transform_indices = @transform_3, window_bounds = array<i64: 8, 128>}]} {
    %c0_i32 = arith.constant 0 : i32
    %0 = arith.cmpi eq, %arg2, %c0_i32 : i32
    %1 = arith.extui %0 : i1 to i32
    %c0_i32_0 = arith.constant 0 : i32
    %2 = arith.cmpi ne, %1, %c0_i32_0 : i32
    scf.if %2 {
      %cst_10 = arith.constant 0.000000e+00 : f32
      %12 = vector.broadcast %cst_10 : f32 to vector<8x128xf32>
      %c0_11 = arith.constant 0 : index
      %c0_12 = arith.constant 0 : index
      %13 = vector.load %arg7[%c0_11, %c0_12] : memref<8x128xf32, #tpu.memory_space<vmem>>, vector<8x128xf32>
      tpu.vector_store %arg7[%c0_11, %c0_12], %12 {strides = array<i32>} : memref<8x128xf32, #tpu.memory_space<vmem>>, vector<8x128xf32>,
    } else {
    }
    %c0 = arith.constant 0 : index
    %c0_1 = arith.constant 0 : index
    %3 = vector.load %arg7[%c0, %c0_1] : memref<8x128xf32, #tpu.memory_space<vmem>>, vector<8x128xf32>
    %c0_2 = arith.constant 0 : index
    %c0_3 = arith.constant 0 : index
    %4 = vector.load %arg3[%c0_2, %c0_3] : memref<8x16xbf16, #tpu.memory_space<vmem>>, vector<8x16xbf16>
    %c0_4 = arith.constant 0 : index
    %c0_5 = arith.constant 0 : index
    %5 = vector.load %arg4[%c0_4, %c0_5] : memref<16x128xbf16, #tpu.memory_space<vmem>>, vector<16x128xbf16>
    %cst = arith.constant dense<0.000000e+00> : vector<8x128xf32>
    %6 = tpu.matmul %4, %5, %cst {dimension_numbers = #tpu.dot_dimension_numbers<[1], [0], [0], [1], [0, 0, 1, 1], [], []>} : vector<8x16xbf16>, vector<16x128xbf16>, vector<8x128xf32> -> vector<8x128xf32>
    %7 = arith.addf %3, %6 : vector<8x128xf32>
    %c0_6 = arith.constant 0 : index
    %c0_7 = arith.constant 0 : index
    %8 = vector.load %arg7[%c0_6, %c0_7] : memref<8x128xf32, #tpu.memory_space<vmem>>, vector<8x128xf32>
    tpu.vector_store %arg7[%c0_6, %c0_7], %7 {strides = array<i32>} : memref<8x128xf32, #tpu.memory_space<vmem>>, vector<8x128xf32>,
    %c0_i32_8 = arith.constant 0 : i32
    %9 = arith.cmpi eq, %arg2, %c0_i32_8 : i32
    %10 = arith.extui %9 : i1 to i32
    %c0_i32_9 = arith.constant 0 : i32
    %11 = arith.cmpi ne, %10, %c0_i32_9 : i32
    scf.if %11 {
      %c0_10 = arith.constant 0 : index
      %c0_11 = arith.constant 0 : index
      %12 = vector.load %arg7[%c0_10, %c0_11] : memref<8x128xf32, #tpu.memory_space<vmem>>, vector<8x128xf32>
      %c0_12 = arith.constant 0 : index
      %c0_13 = arith.constant 0 : index
      %13 = vector.load %arg5[%c0_12, %c0_13] : memref<1x128xf32, #tpu.memory_space<vmem>>, vector<1x128xf32>
      %14 = vector.broadcast %13 : vector<1x128xf32> to vector<8x128xf32>
      %15 = arith.addf %12, %14 : vector<8x128xf32>
      %c0_14 = arith.constant 0 : index
      %c0_15 = arith.constant 0 : index
      %16 = vector.load %arg6[%c0_14, %c0_15] : memref<8x128xf32, #tpu.memory_space<vmem>>, vector<8x128xf32>
      tpu.vector_store %arg6[%c0_14, %c0_15], %15 {strides = array<i32>} : memref<8x128xf32, #tpu.memory_space<vmem>>, vector<8x128xf32>,
    } else {
    }
    return
  }
  func.func @transform_0(%arg0: i32, %arg1: i32, %arg2: i32) -> (i32, i32) {
    %c0_i32 = arith.constant 0 : i32
    return %arg0, %arg2 : i32, i32
  }
  func.func @transform_1(%arg0: i32, %arg1: i32, %arg2: i32) -> (i32, i32) {
    %c0_i32 = arith.constant 0 : i32
    return %arg2, %arg1 : i32, i32
  }
  func.func @transform_2(%arg0: i32, %arg1: i32, %arg2: i32) -> (i32, i32) {
    %c0_i32 = arith.constant 0 : i32
    %c0_i32_0 = arith.constant 0 : i32
    return %c0_i32, %arg1 : i32, i32
  }
  func.func @transform_3(%arg0: i32, %arg1: i32, %arg2: i32) -> (i32, i32) {
    %c0_i32 = arith.constant 0 : i32
    return %arg0, %arg1 : i32, i32
  }
}

module attributes {stable_mosaic.version = 11 : i64} {
  func.func @_attn_kernel(%arg0: i32, %arg1: memref<4x8x96xbf16, #tpu.memory_space<vmem>>, %arg2: memref<4x1x32xbf16, #tpu.memory_space<vmem>>, %arg3: memref<4x8x32xbf16, #tpu.memory_space<vmem>>) attributes {dimension_semantics = [#tpu.dimension_semantics<parallel>], iteration_bounds = array<i64: 1>, scalar_prefetch = 0 : i64, scratch_operands = 0 : i64, tpu.core_type = #tpu.core_type<tc>, window_params = [{transform_indices = @transform_0, window_bounds = array<i64: 4, 8, 96>}, {transform_indices = @transform_1, window_bounds = array<i64: 4, 1, 32>}, {transform_indices = @transform_2, window_bounds = array<i64: 4, 8, 32>}]} {
    %c0 = arith.constant 0 : index
    %c0_0 = arith.constant 0 : index
    %c0_1 = arith.constant 0 : index
    %0 = vector.load %arg1[%c0, %c0_0, %c0_1] : memref<4x8x96xbf16, #tpu.memory_space<vmem>>, vector<4x8x96xbf16>
    %1 = arith.extf %0 : vector<4x8x96xbf16> to vector<4x8x96xf32>
    %c0_2 = arith.constant 0 : index
    %c0_3 = arith.constant 0 : index
    %c0_4 = arith.constant 0 : index
    %2 = vector.load %arg2[%c0_2, %c0_3, %c0_4] : memref<4x1x32xbf16, #tpu.memory_space<vmem>>, vector<4x1x32xbf16>
    %3 = arith.extf %2 : vector<4x1x32xbf16> to vector<4x1x32xf32>
    %4 = vector.extract_strided_slice %1 {offsets = [0, 0, 0], sizes = [4, 8, 16], strides = [1, 1, 1]} : vector<4x8x96xf32> to vector<4x8x16xf32>
    %5 = vector.extract_strided_slice %1 {offsets = [0, 0, 32], sizes = [4, 8, 16], strides = [1, 1, 1]} : vector<4x8x96xf32> to vector<4x8x16xf32>
    %6 = vector.extract_strided_slice %1 {offsets = [0, 0, 64], sizes = [4, 8, 16], strides = [1, 1, 1]} : vector<4x8x96xf32> to vector<4x8x16xf32>
    %7 = vector.extract_strided_slice %3 {offsets = [0, 0, 0], sizes = [4, 1, 16], strides = [1, 1, 1]} : vector<4x1x32xf32> to vector<4x1x16xf32>
    "tpu.trace_start"() <{level = 10 : i32, message = "bqd,bkd->bqk"}> : () -> ()
    %cst = arith.constant dense<0.000000e+00> : vector<4x8x8xf32>
    %8 = tpu.matmul %4, %5, %cst {dimension_numbers = #tpu.dot_dimension_numbers<[2], [2], [1], [1], [0, 0, 0, 1, 1, 1], [0], [0]>} : vector<4x8x16xf32>, vector<4x8x16xf32>, vector<4x8x8xf32> -> vector<4x8x8xf32>
    "tpu.trace_stop"() : () -> ()
    %cst_5 = arith.constant 2.500000e-01 : f32
    %9 = vector.broadcast %cst_5 : f32 to vector<4x8x8xf32>
    %10 = arith.mulf %8, %9 : vector<4x8x8xf32>
    %11 = vector.broadcast %7 : vector<4x1x16xf32> to vector<4x8x16xf32>
    %12 = arith.mulf %4, %11 : vector<4x8x16xf32>
    %cst_6 = arith.constant dense<0.000000e+00> : vector<4x8xf32>
    %13 = vector.multi_reduction <add>, %12, %cst_6 [2] : vector<4x8x16xf32> to vector<4x8xf32>
    %14 = vector.shape_cast %13 : vector<4x8xf32> to vector<4x8x1xf32>
    %cst_7 = arith.constant 2.500000e-01 : f32
    %15 = vector.broadcast %cst_7 : f32 to vector<4x8x1xf32>
    %16 = arith.mulf %14, %15 : vector<4x8x1xf32>
    %cst_8 = arith.constant dense<0xFF800000> : vector<4x8xf32>
    %17 = vector.multi_reduction <maximumf>, %10, %cst_8 [2] : vector<4x8x8xf32> to vector<4x8xf32>
    %18 = vector.shape_cast %17 : vector<4x8xf32> to vector<4x8x1xf32>
    %19 = arith.maximumf %18, %16 : vector<4x8x1xf32>
    %20 = vector.broadcast %19 : vector<4x8x1xf32> to vector<4x8x8xf32>
    %21 = arith.subf %10, %20 : vector<4x8x8xf32>
    %22 = math.exp %21 : vector<4x8x8xf32>
    %23 = arith.subf %16, %19 : vector<4x8x1xf32>
    %24 = math.exp %23 : vector<4x8x1xf32>
    %cst_9 = arith.constant dense<0.000000e+00> : vector<4x8xf32>
    %25 = vector.multi_reduction <add>, %22, %cst_9 [2] : vector<4x8x8xf32> to vector<4x8xf32>
    %26 = vector.shape_cast %25 : vector<4x8xf32> to vector<4x8x1xf32>
    %27 = arith.addf %26, %24 : vector<4x8x1xf32>
    %28 = tpu.reciprocal %27 {approx = true} : vector<4x8x1xf32> -> vector<4x8x1xf32>
    "tpu.trace_start"() <{level = 10 : i32, message = "bqk,bkd->bqd"}> : () -> ()
    %cst_10 = arith.constant dense<0.000000e+00> : vector<4x8x16xf32>
    %29 = tpu.matmul %22, %6, %cst_10 {dimension_numbers = #tpu.dot_dimension_numbers<[2], [1], [1], [2], [0, 0, 0, 1, 1, 2], [0], [0]>} : vector<4x8x8xf32>, vector<4x8x16xf32>, vector<4x8x16xf32> -> vector<4x8x16xf32>
    "tpu.trace_stop"() : () -> ()
    %30 = vector.broadcast %24 : vector<4x8x1xf32> to vector<4x8x16xf32>
    %31 = vector.broadcast %7 : vector<4x1x16xf32> to vector<4x8x16xf32>
    %32 = arith.mulf %30, %31 : vector<4x8x16xf32>
    %33 = arith.addf %29, %32 : vector<4x8x16xf32>
    %34 = vector.broadcast %28 : vector<4x8x1xf32> to vector<4x8x16xf32>
    %35 = arith.mulf %33, %34 : vector<4x8x16xf32>
    %36 = vector.extract_strided_slice %1 {offsets = [0, 0, 16], sizes = [4, 8, 16], strides = [1, 1, 1]} : vector<4x8x96xf32> to vector<4x8x16xf32>
    %37 = vector.extract_strided_slice %1 {offsets = [0, 0, 48], sizes = [4, 8, 16], strides = [1, 1, 1]} : vector<4x8x96xf32> to vector<4x8x16xf32>
    %38 = vector.extract_strided_slice %1 {offsets = [0, 0, 80], sizes = [4, 8, 16], strides = [1, 1, 1]} : vector<4x8x96xf32> to vector<4x8x16xf32>
    %39 = vector.extract_strided_slice %3 {offsets = [0, 0, 16], sizes = [4, 1, 16], strides = [1, 1, 1]} : vector<4x1x32xf32> to vector<4x1x16xf32>
    "tpu.trace_start"() <{level = 10 : i32, message = "bqd,bkd->bqk"}> : () -> ()
    %cst_11 = arith.constant dense<0.000000e+00> : vector<4x8x8xf32>
    %40 = tpu.matmul %36, %37, %cst_11 {dimension_numbers = #tpu.dot_dimension_numbers<[2], [2], [1], [1], [0, 0, 0, 1, 1, 1], [0], [0]>} : vector<4x8x16xf32>, vector<4x8x16xf32>, vector<4x8x8xf32> -> vector<4x8x8xf32>
    "tpu.trace_stop"() : () -> ()
    %cst_12 = arith.constant 2.500000e-01 : f32
    %41 = vector.broadcast %cst_12 : f32 to vector<4x8x8xf32>
    %42 = arith.mulf %40, %41 : vector<4x8x8xf32>
    %43 = vector.broadcast %39 : vector<4x1x16xf32> to vector<4x8x16xf32>
    %44 = arith.mulf %36, %43 : vector<4x8x16xf32>
    %cst_13 = arith.constant dense<0.000000e+00> : vector<4x8xf32>
    %45 = vector.multi_reduction <add>, %44, %cst_13 [2] : vector<4x8x16xf32> to vector<4x8xf32>
    %46 = vector.shape_cast %45 : vector<4x8xf32> to vector<4x8x1xf32>
    %cst_14 = arith.constant 2.500000e-01 : f32
    %47 = vector.broadcast %cst_14 : f32 to vector<4x8x1xf32>
    %48 = arith.mulf %46, %47 : vector<4x8x1xf32>
    %cst_15 = arith.constant dense<0xFF800000> : vector<4x8xf32>
    %49 = vector.multi_reduction <maximumf>, %42, %cst_15 [2] : vector<4x8x8xf32> to vector<4x8xf32>
    %50 = vector.shape_cast %49 : vector<4x8xf32> to vector<4x8x1xf32>
    %51 = arith.maximumf %50, %48 : vector<4x8x1xf32>
    %52 = vector.broadcast %51 : vector<4x8x1xf32> to vector<4x8x8xf32>
    %53 = arith.subf %42, %52 : vector<4x8x8xf32>
    %54 = math.exp %53 : vector<4x8x8xf32>
    %55 = arith.subf %48, %51 : vector<4x8x1xf32>
    %56 = math.exp %55 : vector<4x8x1xf32>
    %cst_16 = arith.constant dense<0.000000e+00> : vector<4x8xf32>
    %57 = vector.multi_reduction <add>, %54, %cst_16 [2] : vector<4x8x8xf32> to vector<4x8xf32>
    %58 = vector.shape_cast %57 : vector<4x8xf32> to vector<4x8x1xf32>
    %59 = arith.addf %58, %56 : vector<4x8x1xf32>
    %60 = tpu.reciprocal %59 {approx = true} : vector<4x8x1xf32> -> vector<4x8x1xf32>
    "tpu.trace_start"() <{level = 10 : i32, message = "bqk,bkd->bqd"}> : () -> ()
    %cst_17 = arith.constant dense<0.000000e+00> : vector<4x8x16xf32>
    %61 = tpu.matmul %54, %38, %cst_17 {dimension_numbers = #tpu.dot_dimension_numbers<[2], [1], [1], [2], [0, 0, 0, 1, 1, 2], [0], [0]>} : vector<4x8x8xf32>, vector<4x8x16xf32>, vector<4x8x16xf32> -> vector<4x8x16xf32>
    "tpu.trace_stop"() : () -> ()
    %62 = vector.broadcast %56 : vector<4x8x1xf32> to vector<4x8x16xf32>
    %63 = vector.broadcast %39 : vector<4x1x16xf32> to vector<4x8x16xf32>
    %64 = arith.mulf %62, %63 : vector<4x8x16xf32>
    %65 = arith.addf %61, %64 : vector<4x8x16xf32>
    %66 = vector.broadcast %60 : vector<4x8x1xf32> to vector<4x8x16xf32>
    %67 = arith.mulf %65, %66 : vector<4x8x16xf32>
    %68 = tpu.concatenate %35, %67 in 2 : vector<4x8x16xf32>, vector<4x8x16xf32> -> vector<4x8x32xf32>
    %69 = arith.truncf %68 : vector<4x8x32xf32> to vector<4x8x32xbf16>
    %c0_18 = arith.constant 0 : index
    %c0_19 = arith.constant 0 : index
    %c0_20 = arith.constant 0 : index
    %70 = vector.load %arg3[%c0_18, %c0_19, %c0_20] : memref<4x8x32xbf16, #tpu.memory_space<vmem>>, vector<4x8x32xbf16>
    tpu.vector_store %arg3[%c0_18, %c0_19, %c0_20], %69 {strides = array<i32>} : memref<4x8x32xbf16, #tpu.memory_space<vmem>>, vector<4x8x32xbf16>,
    return
  }
  func.func @transform_0(%arg0: i32) -> (i32, i32, i32) {
    %c0_i32 = arith.constant 0 : i32
    %c0_i32_0 = arith.constant 0 : i32
    %c0_i32_1 = arith.constant 0 : i32
    return %arg0, %c0_i32, %c0_i32_0 : i32, i32, i32
  }
  func.func @transform_1(%arg0: i32) -> (i32, i32, i32) {
    %c0_i32 = arith.constant 0 : i32
    %c0_i32_0 = arith.constant 0 : i32
    %c0_i32_1 = arith.constant 0 : i32
    return %arg0, %c0_i32, %c0_i32_0 : i32, i32, i32
  }
  func.func @transform_2(%arg0: i32) -> (i32, i32, i32) {
    %c0_i32 = arith.constant 0 : i32
    %c0_i32_0 = arith.constant 0 : i32
    %c0_i32_1 = arith.constant 0 : i32
    return %arg0, %c0_i32, %c0_i32_0 : i32, i32, i32
  }
}

module attributes {stable_mosaic.version = 11 : i64} {
  func.func @_ln_res_kernel(%arg0: i32, %arg1: memref<32x32xbf16, #tpu.memory_space<vmem>>, %arg2: memref<32x32xbf16, #tpu.memory_space<vmem>>, %arg3: memref<1x32xf32, #tpu.memory_space<vmem>>, %arg4: memref<1x32xf32, #tpu.memory_space<vmem>>, %arg5: memref<32x32xbf16, #tpu.memory_space<vmem>>) attributes {dimension_semantics = [#tpu.dimension_semantics<parallel>], iteration_bounds = array<i64: 1>, scalar_prefetch = 0 : i64, scratch_operands = 0 : i64, tpu.core_type = #tpu.core_type<tc>, window_params = [{transform_indices = @transform_0, window_bounds = array<i64: 32, 32>}, {transform_indices = @transform_1, window_bounds = array<i64: 32, 32>}, {pipeline_mode = #tpu.pipeline_mode<synchronous>, transform_indices = @transform_2, window_bounds = array<i64: 1, 32>}, {pipeline_mode = #tpu.pipeline_mode<synchronous>, transform_indices = @transform_3, window_bounds = array<i64: 1, 32>}, {transform_indices = @transform_4, window_bounds = array<i64: 32, 32>}]} {
    %c0 = arith.constant 0 : index
    %c0_0 = arith.constant 0 : index
    %0 = vector.load %arg1[%c0, %c0_0] : memref<32x32xbf16, #tpu.memory_space<vmem>>, vector<32x32xbf16>
    %1 = arith.extf %0 : vector<32x32xbf16> to vector<32x32xf32>
    %c0_1 = arith.constant 0 : index
    %c0_2 = arith.constant 0 : index
    %2 = vector.load %arg2[%c0_1, %c0_2] : memref<32x32xbf16, #tpu.memory_space<vmem>>, vector<32x32xbf16>
    %3 = arith.extf %2 : vector<32x32xbf16> to vector<32x32xf32>
    %4 = arith.addf %1, %3 : vector<32x32xf32>
    %c0_3 = arith.constant 0 : index
    %c0_4 = arith.constant 0 : index
    %5 = vector.load %arg3[%c0_3, %c0_4] : memref<1x32xf32, #tpu.memory_space<vmem>>, vector<1x32xf32>
    %c0_5 = arith.constant 0 : index
    %c0_6 = arith.constant 0 : index
    %6 = vector.load %arg4[%c0_5, %c0_6] : memref<1x32xf32, #tpu.memory_space<vmem>>, vector<1x32xf32>
    %cst = arith.constant dense<0.000000e+00> : vector<32xf32>
    %7 = vector.multi_reduction <add>, %4, %cst [1] : vector<32x32xf32> to vector<32xf32>
    %8 = vector.shape_cast %7 : vector<32xf32> to vector<32x1xf32>
    %cst_7 = arith.constant 3.200000e+01 : f32
    %9 = vector.broadcast %cst_7 : f32 to vector<32x1xf32>
    %10 = arith.divf %8, %9 : vector<32x1xf32>
    %11 = vector.broadcast %10 : vector<32x1xf32> to vector<32x32xf32>
    %12 = arith.subf %4, %11 : vector<32x32xf32>
    %13 = arith.mulf %12, %12 : vector<32x32xf32>
    %cst_8 = arith.constant dense<0.000000e+00> : vector<32xf32>
    %14 = vector.multi_reduction <add>, %13, %cst_8 [1] : vector<32x32xf32> to vector<32xf32>
    %15 = vector.shape_cast %14 : vector<32xf32> to vector<32x1xf32>
    %cst_9 = arith.constant 3.200000e+01 : f32
    %16 = vector.broadcast %cst_9 : f32 to vector<32x1xf32>
    %17 = arith.divf %15, %16 : vector<32x1xf32>
    %18 = vector.broadcast %10 : vector<32x1xf32> to vector<32x32xf32>
    %19 = arith.subf %4, %18 : vector<32x32xf32>
    %cst_10 = arith.constant 9.99999974E-6 : f32
    %20 = vector.broadcast %cst_10 : f32 to vector<32x1xf32>
    %21 = arith.addf %17, %20 : vector<32x1xf32>
    %22 = math.rsqrt %21 : vector<32x1xf32>
    %23 = vector.broadcast %22 : vector<32x1xf32> to vector<32x32xf32>
    %24 = arith.mulf %19, %23 : vector<32x32xf32>
    %25 = vector.broadcast %5 : vector<1x32xf32> to vector<32x32xf32>
    %26 = arith.mulf %24, %25 : vector<32x32xf32>
    %27 = vector.broadcast %6 : vector<1x32xf32> to vector<32x32xf32>
    %28 = arith.addf %26, %27 : vector<32x32xf32>
    %29 = arith.truncf %28 : vector<32x32xf32> to vector<32x32xbf16>
    %c0_11 = arith.constant 0 : index
    %c0_12 = arith.constant 0 : index
    %30 = vector.load %arg5[%c0_11, %c0_12] : memref<32x32xbf16, #tpu.memory_space<vmem>>, vector<32x32xbf16>
    tpu.vector_store %arg5[%c0_11, %c0_12], %29 {strides = array<i32>} : memref<32x32xbf16, #tpu.memory_space<vmem>>, vector<32x32xbf16>,
    return
  }
  func.func @transform_0(%arg0: i32) -> (i32, i32) {
    %c0_i32 = arith.constant 0 : i32
    %c0_i32_0 = arith.constant 0 : i32
    return %arg0, %c0_i32 : i32, i32
  }
  func.func @transform_1(%arg0: i32) -> (i32, i32) {
    %c0_i32 = arith.constant 0 : i32
    %c0_i32_0 = arith.constant 0 : i32
    return %arg0, %c0_i32 : i32, i32
  }
  func.func @transform_2(%arg0: i32) -> (i32, i32) {
    %c0_i32 = arith.constant 0 : i32
    %c0_i32_0 = arith.constant 0 : i32
    %c0_i32_1 = arith.constant 0 : i32
    return %c0_i32, %c0_i32_0 : i32, i32
  }
  func.func @transform_3(%arg0: i32) -> (i32, i32) {
    %c0_i32 = arith.constant 0 : i32
    %c0_i32_0 = arith.constant 0 : i32
    %c0_i32_1 = arith.constant 0 : i32
    return %c0_i32, %c0_i32_0 : i32, i32
  }
  func.func @transform_4(%arg0: i32) -> (i32, i32) {
    %c0_i32 = arith.constant 0 : i32
    %c0_i32_0 = arith.constant 0 : i32
    return %arg0, %c0_i32 : i32, i32
  }
}

module attributes {stable_mosaic.version = 11 : i64} {
  func.func @_linear_kernel(%arg0: i32, %arg1: i32, %arg2: i32, %arg3: memref<32x64xbf16, #tpu.memory_space<vmem>>, %arg4: memref<64x128xbf16, #tpu.memory_space<vmem>>, %arg5: memref<1x128xf32, #tpu.memory_space<vmem>>, %arg6: memref<32x128xbf16, #tpu.memory_space<vmem>>, %arg7: memref<32x128xf32, #tpu.memory_space<vmem>>) attributes {dimension_semantics = [#tpu.dimension_semantics<parallel>, #tpu.dimension_semantics<parallel>, #tpu.dimension_semantics<arbitrary>], iteration_bounds = array<i64: 1, 1, 1>, scalar_prefetch = 0 : i64, scratch_operands = 1 : i64, tpu.core_type = #tpu.core_type<tc>, window_params = [{transform_indices = @transform_0, window_bounds = array<i64: 32, 64>}, {transform_indices = @transform_1, window_bounds = array<i64: 64, 128>}, {transform_indices = @transform_2, window_bounds = array<i64: 1, 128>}, {transform_indices = @transform_3, window_bounds = array<i64: 32, 128>}]} {
    %c0_i32 = arith.constant 0 : i32
    %0 = arith.cmpi eq, %arg2, %c0_i32 : i32
    %1 = arith.extui %0 : i1 to i32
    %c0_i32_0 = arith.constant 0 : i32
    %2 = arith.cmpi ne, %1, %c0_i32_0 : i32
    scf.if %2 {
      %cst_10 = arith.constant 0.000000e+00 : f32
      %12 = vector.broadcast %cst_10 : f32 to vector<32x128xf32>
      %c0_11 = arith.constant 0 : index
      %c0_12 = arith.constant 0 : index
      %13 = vector.load %arg7[%c0_11, %c0_12] : memref<32x128xf32, #tpu.memory_space<vmem>>, vector<32x128xf32>
      tpu.vector_store %arg7[%c0_11, %c0_12], %12 {strides = array<i32>} : memref<32x128xf32, #tpu.memory_space<vmem>>, vector<32x128xf32>,
    } else {
    }
    %c0 = arith.constant 0 : index
    %c0_1 = arith.constant 0 : index
    %3 = vector.load %arg7[%c0, %c0_1] : memref<32x128xf32, #tpu.memory_space<vmem>>, vector<32x128xf32>
    %c0_2 = arith.constant 0 : index
    %c0_3 = arith.constant 0 : index
    %4 = vector.load %arg3[%c0_2, %c0_3] : memref<32x64xbf16, #tpu.memory_space<vmem>>, vector<32x64xbf16>
    %c0_4 = arith.constant 0 : index
    %c0_5 = arith.constant 0 : index
    %5 = vector.load %arg4[%c0_4, %c0_5] : memref<64x128xbf16, #tpu.memory_space<vmem>>, vector<64x128xbf16>
    %cst = arith.constant dense<0.000000e+00> : vector<32x128xf32>
    %6 = tpu.matmul %4, %5, %cst {dimension_numbers = #tpu.dot_dimension_numbers<[1], [0], [0], [1], [0, 0, 1, 1], [], []>} : vector<32x64xbf16>, vector<64x128xbf16>, vector<32x128xf32> -> vector<32x128xf32>
    %7 = arith.addf %3, %6 : vector<32x128xf32>
    %c0_6 = arith.constant 0 : index
    %c0_7 = arith.constant 0 : index
    %8 = vector.load %arg7[%c0_6, %c0_7] : memref<32x128xf32, #tpu.memory_space<vmem>>, vector<32x128xf32>
    tpu.vector_store %arg7[%c0_6, %c0_7], %7 {strides = array<i32>} : memref<32x128xf32, #tpu.memory_space<vmem>>, vector<32x128xf32>,
    %c0_i32_8 = arith.constant 0 : i32
    %9 = arith.cmpi eq, %arg2, %c0_i32_8 : i32
    %10 = arith.extui %9 : i1 to i32
    %c0_i32_9 = arith.constant 0 : i32
    %11 = arith.cmpi ne, %10, %c0_i32_9 : i32
    scf.if %11 {
      %c0_10 = arith.constant 0 : index
      %c0_11 = arith.constant 0 : index
      %12 = vector.load %arg7[%c0_10, %c0_11] : memref<32x128xf32, #tpu.memory_space<vmem>>, vector<32x128xf32>
      %c0_12 = arith.constant 0 : index
      %c0_13 = arith.constant 0 : index
      %13 = vector.load %arg5[%c0_12, %c0_13] : memref<1x128xf32, #tpu.memory_space<vmem>>, vector<1x128xf32>
      %14 = vector.broadcast %13 : vector<1x128xf32> to vector<32x128xf32>
      %15 = arith.addf %12, %14 : vector<32x128xf32>
      %16 = arith.truncf %15 : vector<32x128xf32> to vector<32x128xbf16>
      %c0_14 = arith.constant 0 : index
      %c0_15 = arith.constant 0 : index
      %17 = vector.load %arg6[%c0_14, %c0_15] : memref<32x128xbf16, #tpu.memory_space<vmem>>, vector<32x128xbf16>
      tpu.vector_store %arg6[%c0_14, %c0_15], %16 {strides = array<i32>} : memref<32x128xbf16, #tpu.memory_space<vmem>>, vector<32x128xbf16>,
    } else {
    }
    return
  }
  func.func @transform_0(%arg0: i32, %arg1: i32, %arg2: i32) -> (i32, i32) {
    %c0_i32 = arith.constant 0 : i32
    return %arg0, %arg2 : i32, i32
  }
  func.func @transform_1(%arg0: i32, %arg1: i32, %arg2: i32) -> (i32, i32) {
    %c0_i32 = arith.constant 0 : i32
    return %arg2, %arg1 : i32, i32
  }
  func.func @transform_2(%arg0: i32, %arg1: i32, %arg2: i32) -> (i32, i32) {
    %c0_i32 = arith.constant 0 : i32
    %c0_i32_0 = arith.constant 0 : i32
    return %c0_i32, %arg1 : i32, i32
  }
  func.func @transform_3(%arg0: i32, %arg1: i32, %arg2: i32) -> (i32, i32) {
    %c0_i32 = arith.constant 0 : i32
    return %arg0, %arg1 : i32, i32
  }
}

module attributes {stable_mosaic.version = 11 : i64} {
  func.func @_linear_kernel(%arg0: i32, %arg1: i32, %arg2: i32, %arg3: memref<32x32xbf16, #tpu.memory_space<vmem>>, %arg4: memref<32x128xbf16, #tpu.memory_space<vmem>>, %arg5: memref<1x128xf32, #tpu.memory_space<vmem>>, %arg6: memref<32x128xbf16, #tpu.memory_space<vmem>>, %arg7: memref<32x128xf32, #tpu.memory_space<vmem>>) attributes {dimension_semantics = [#tpu.dimension_semantics<parallel>, #tpu.dimension_semantics<parallel>, #tpu.dimension_semantics<arbitrary>], iteration_bounds = array<i64: 1, 1, 1>, scalar_prefetch = 0 : i64, scratch_operands = 1 : i64, tpu.core_type = #tpu.core_type<tc>, window_params = [{transform_indices = @transform_0, window_bounds = array<i64: 32, 32>}, {transform_indices = @transform_1, window_bounds = array<i64: 32, 128>}, {transform_indices = @transform_2, window_bounds = array<i64: 1, 128>}, {transform_indices = @transform_3, window_bounds = array<i64: 32, 128>}]} {
    %c0_i32 = arith.constant 0 : i32
    %0 = arith.cmpi eq, %arg2, %c0_i32 : i32
    %1 = arith.extui %0 : i1 to i32
    %c0_i32_0 = arith.constant 0 : i32
    %2 = arith.cmpi ne, %1, %c0_i32_0 : i32
    scf.if %2 {
      %cst_10 = arith.constant 0.000000e+00 : f32
      %12 = vector.broadcast %cst_10 : f32 to vector<32x128xf32>
      %c0_11 = arith.constant 0 : index
      %c0_12 = arith.constant 0 : index
      %13 = vector.load %arg7[%c0_11, %c0_12] : memref<32x128xf32, #tpu.memory_space<vmem>>, vector<32x128xf32>
      tpu.vector_store %arg7[%c0_11, %c0_12], %12 {strides = array<i32>} : memref<32x128xf32, #tpu.memory_space<vmem>>, vector<32x128xf32>,
    } else {
    }
    %c0 = arith.constant 0 : index
    %c0_1 = arith.constant 0 : index
    %3 = vector.load %arg7[%c0, %c0_1] : memref<32x128xf32, #tpu.memory_space<vmem>>, vector<32x128xf32>
    %c0_2 = arith.constant 0 : index
    %c0_3 = arith.constant 0 : index
    %4 = vector.load %arg3[%c0_2, %c0_3] : memref<32x32xbf16, #tpu.memory_space<vmem>>, vector<32x32xbf16>
    %c0_4 = arith.constant 0 : index
    %c0_5 = arith.constant 0 : index
    %5 = vector.load %arg4[%c0_4, %c0_5] : memref<32x128xbf16, #tpu.memory_space<vmem>>, vector<32x128xbf16>
    %cst = arith.constant dense<0.000000e+00> : vector<32x128xf32>
    %6 = tpu.matmul %4, %5, %cst {dimension_numbers = #tpu.dot_dimension_numbers<[1], [0], [0], [1], [0, 0, 1, 1], [], []>} : vector<32x32xbf16>, vector<32x128xbf16>, vector<32x128xf32> -> vector<32x128xf32>
    %7 = arith.addf %3, %6 : vector<32x128xf32>
    %c0_6 = arith.constant 0 : index
    %c0_7 = arith.constant 0 : index
    %8 = vector.load %arg7[%c0_6, %c0_7] : memref<32x128xf32, #tpu.memory_space<vmem>>, vector<32x128xf32>
    tpu.vector_store %arg7[%c0_6, %c0_7], %7 {strides = array<i32>} : memref<32x128xf32, #tpu.memory_space<vmem>>, vector<32x128xf32>,
    %c0_i32_8 = arith.constant 0 : i32
    %9 = arith.cmpi eq, %arg2, %c0_i32_8 : i32
    %10 = arith.extui %9 : i1 to i32
    %c0_i32_9 = arith.constant 0 : i32
    %11 = arith.cmpi ne, %10, %c0_i32_9 : i32
    scf.if %11 {
      %c0_10 = arith.constant 0 : index
      %c0_11 = arith.constant 0 : index
      %12 = vector.load %arg7[%c0_10, %c0_11] : memref<32x128xf32, #tpu.memory_space<vmem>>, vector<32x128xf32>
      %c0_12 = arith.constant 0 : index
      %c0_13 = arith.constant 0 : index
      %13 = vector.load %arg5[%c0_12, %c0_13] : memref<1x128xf32, #tpu.memory_space<vmem>>, vector<1x128xf32>
      %14 = vector.broadcast %13 : vector<1x128xf32> to vector<32x128xf32>
      %15 = arith.addf %12, %14 : vector<32x128xf32>
      %16 = arith.mulf %15, %15 : vector<32x128xf32>
      %17 = arith.mulf %15, %16 : vector<32x128xf32>
      %cst_14 = arith.constant 4.471500e-02 : f32
      %18 = vector.broadcast %cst_14 : f32 to vector<32x128xf32>
      %19 = arith.mulf %18, %17 : vector<32x128xf32>
      %20 = arith.addf %15, %19 : vector<32x128xf32>
      %cst_15 = arith.constant 0.797884583 : f32
      %21 = vector.broadcast %cst_15 : f32 to vector<32x128xf32>
      %22 = arith.mulf %21, %20 : vector<32x128xf32>
      %23 = math.tanh %22 : vector<32x128xf32>
      %cst_16 = arith.constant 1.000000e+00 : f32
      %24 = vector.broadcast %cst_16 : f32 to vector<32x128xf32>
      %25 = arith.addf %24, %23 : vector<32x128xf32>
      %cst_17 = arith.constant 5.000000e-01 : f32
      %26 = vector.broadcast %cst_17 : f32 to vector<32x128xf32>
      %27 = arith.mulf %26, %25 : vector<32x128xf32>
      %28 = arith.mulf %15, %27 : vector<32x128xf32>
      %29 = arith.truncf %28 : vector<32x128xf32> to vector<32x128xbf16>
      %c0_18 = arith.constant 0 : index
      %c0_19 = arith.constant 0 : index
      %30 = vector.load %arg6[%c0_18, %c0_19] : memref<32x128xbf16, #tpu.memory_space<vmem>>, vector<32x128xbf16>
      tpu.vector_store %arg6[%c0_18, %c0_19], %29 {strides = array<i32>} : memref<32x128xbf16, #tpu.memory_space<vmem>>, vector<32x128xbf16>,
    } else {
    }
    return
  }
  func.func @transform_0(%arg0: i32, %arg1: i32, %arg2: i32) -> (i32, i32) {
    %c0_i32 = arith.constant 0 : i32
    return %arg0, %arg2 : i32, i32
  }
  func.func @transform_1(%arg0: i32, %arg1: i32, %arg2: i32) -> (i32, i32) {
    %c0_i32 = arith.constant 0 : i32
    return %arg2, %arg1 : i32, i32
  }
  func.func @transform_2(%arg0: i32, %arg1: i32, %arg2: i32) -> (i32, i32) {
    %c0_i32 = arith.constant 0 : i32
    %c0_i32_0 = arith.constant 0 : i32
    return %c0_i32, %arg1 : i32, i32
  }
  func.func @transform_3(%arg0: i32, %arg1: i32, %arg2: i32) -> (i32, i32) {
    %c0_i32 = arith.constant 0 : i32
    return %arg0, %arg1 : i32, i32
  }
}

module attributes {stable_mosaic.version = 11 : i64} {
  func.func @_linear_kernel(%arg0: i32, %arg1: i32, %arg2: i32, %arg3: memref<32x32xbf16, #tpu.memory_space<vmem>>, %arg4: memref<32x256xbf16, #tpu.memory_space<vmem>>, %arg5: memref<1x256xf32, #tpu.memory_space<vmem>>, %arg6: memref<32x256xf32, #tpu.memory_space<vmem>>, %arg7: memref<32x256xf32, #tpu.memory_space<vmem>>) attributes {dimension_semantics = [#tpu.dimension_semantics<parallel>, #tpu.dimension_semantics<parallel>, #tpu.dimension_semantics<arbitrary>], iteration_bounds = array<i64: 1, 1, 1>, scalar_prefetch = 0 : i64, scratch_operands = 1 : i64, tpu.core_type = #tpu.core_type<tc>, window_params = [{transform_indices = @transform_0, window_bounds = array<i64: 32, 32>}, {transform_indices = @transform_1, window_bounds = array<i64: 32, 256>}, {transform_indices = @transform_2, window_bounds = array<i64: 1, 256>}, {transform_indices = @transform_3, window_bounds = array<i64: 32, 256>}]} {
    %c0_i32 = arith.constant 0 : i32
    %0 = arith.cmpi eq, %arg2, %c0_i32 : i32
    %1 = arith.extui %0 : i1 to i32
    %c0_i32_0 = arith.constant 0 : i32
    %2 = arith.cmpi ne, %1, %c0_i32_0 : i32
    scf.if %2 {
      %cst_10 = arith.constant 0.000000e+00 : f32
      %12 = vector.broadcast %cst_10 : f32 to vector<32x256xf32>
      %c0_11 = arith.constant 0 : index
      %c0_12 = arith.constant 0 : index
      %13 = vector.load %arg7[%c0_11, %c0_12] : memref<32x256xf32, #tpu.memory_space<vmem>>, vector<32x256xf32>
      tpu.vector_store %arg7[%c0_11, %c0_12], %12 {strides = array<i32>} : memref<32x256xf32, #tpu.memory_space<vmem>>, vector<32x256xf32>,
    } else {
    }
    %c0 = arith.constant 0 : index
    %c0_1 = arith.constant 0 : index
    %3 = vector.load %arg7[%c0, %c0_1] : memref<32x256xf32, #tpu.memory_space<vmem>>, vector<32x256xf32>
    %c0_2 = arith.constant 0 : index
    %c0_3 = arith.constant 0 : index
    %4 = vector.load %arg3[%c0_2, %c0_3] : memref<32x32xbf16, #tpu.memory_space<vmem>>, vector<32x32xbf16>
    %c0_4 = arith.constant 0 : index
    %c0_5 = arith.constant 0 : index
    %5 = vector.load %arg4[%c0_4, %c0_5] : memref<32x256xbf16, #tpu.memory_space<vmem>>, vector<32x256xbf16>
    %cst = arith.constant dense<0.000000e+00> : vector<32x256xf32>
    %6 = tpu.matmul %4, %5, %cst {dimension_numbers = #tpu.dot_dimension_numbers<[1], [0], [0], [1], [0, 0, 1, 1], [], []>} : vector<32x32xbf16>, vector<32x256xbf16>, vector<32x256xf32> -> vector<32x256xf32>
    %7 = arith.addf %3, %6 : vector<32x256xf32>
    %c0_6 = arith.constant 0 : index
    %c0_7 = arith.constant 0 : index
    %8 = vector.load %arg7[%c0_6, %c0_7] : memref<32x256xf32, #tpu.memory_space<vmem>>, vector<32x256xf32>
    tpu.vector_store %arg7[%c0_6, %c0_7], %7 {strides = array<i32>} : memref<32x256xf32, #tpu.memory_space<vmem>>, vector<32x256xf32>,
    %c0_i32_8 = arith.constant 0 : i32
    %9 = arith.cmpi eq, %arg2, %c0_i32_8 : i32
    %10 = arith.extui %9 : i1 to i32
    %c0_i32_9 = arith.constant 0 : i32
    %11 = arith.cmpi ne, %10, %c0_i32_9 : i32
    scf.if %11 {
      %c0_10 = arith.constant 0 : index
      %c0_11 = arith.constant 0 : index
      %12 = vector.load %arg7[%c0_10, %c0_11] : memref<32x256xf32, #tpu.memory_space<vmem>>, vector<32x256xf32>
      %c0_12 = arith.constant 0 : index
      %c0_13 = arith.constant 0 : index
      %13 = vector.load %arg5[%c0_12, %c0_13] : memref<1x256xf32, #tpu.memory_space<vmem>>, vector<1x256xf32>
      %14 = vector.broadcast %13 : vector<1x256xf32> to vector<32x256xf32>
      %15 = arith.addf %12, %14 : vector<32x256xf32>
      %c0_14 = arith.constant 0 : index
      %c0_15 = arith.constant 0 : index
      %16 = vector.load %arg6[%c0_14, %c0_15] : memref<32x256xf32, #tpu.memory_space<vmem>>, vector<32x256xf32>
      tpu.vector_store %arg6[%c0_14, %c0_15], %15 {strides = array<i32>} : memref<32x256xf32, #tpu.memory_space<vmem>>, vector<32x256xf32>,
    } else {
    }
    return
  }
  func.func @transform_0(%arg0: i32, %arg1: i32, %arg2: i32) -> (i32, i32) {
    %c0_i32 = arith.constant 0 : i32
    return %arg0, %arg2 : i32, i32
  }
  func.func @transform_1(%arg0: i32, %arg1: i32, %arg2: i32) -> (i32, i32) {
    %c0_i32 = arith.constant 0 : i32
    return %arg2, %arg1 : i32, i32
  }
  func.func @transform_2(%arg0: i32, %arg1: i32, %arg2: i32) -> (i32, i32) {
    %c0_i32 = arith.constant 0 : i32
    %c0_i32_0 = arith.constant 0 : i32
    return %c0_i32, %arg1 : i32, i32
  }
  func.func @transform_3(%arg0: i32, %arg1: i32, %arg2: i32) -> (i32, i32) {
    %c0_i32 = arith.constant 0 : i32
    return %arg0, %arg1 : i32, i32
  }
}

</mosaic_0001>

<llo_original>
// kernel: decoder_forward.20
$region0: #{decoder_forward.20}
  #allocation0 [shape = 'u32[]', space=smem, size = 0x4, offset = 0x4, fixed_abs, tag = 'smem constant byte address 0x4 - core index']
  #allocation1 [shape = 'u32[144,128]{1,0:T(1,128)}', space=vmem, size = 0x12000, scoped, tag = 'internal scratch']
  %s0 = inlined_call_operand.vmem [shape: bf16[32,32], index: 0, kind: input, shape index: {}]
  %s1 = inlined_call_operand.vmem [shape: f32[1,32], index: 1, kind: input, shape index: {}]
  %s2 = inlined_call_operand.vmem [shape: f32[1,32], index: 2, kind: input, shape index: {}]
  %s3 = inlined_call_operand.vmem [shape: bf16[32,32], index: 3, kind: output, shape index: {}]
  %s4 = sld [smem:[#allocation0]]
  $region22: #{decoder_forward.20} parent=0
    _
  %s6 = ssub.s32 1, %s4
  %s7 = scalar_select 0, %s6, %s4
  // Predicated region
  $region2: #{decoder_forward.20} parent=0 // pred_check
    _
  $region3: #{decoder_forward.20} parent=0 // pred_check_branch
    %9 = sbr.rel (0) target = $region5
  $region4: #{decoder_forward.20} parent=0 // pred_region
    _
  $region5: #{decoder_forward.20} parent=0 // pred_fallthru
    _
  // Predicated region
  $region6: #{decoder_forward.20} parent=0 // pred_check
    _
  $region7: #{decoder_forward.20} parent=0 // pred_check_branch
    %11 = sbr.rel (0) target = $region9
  $region8: #{decoder_forward.20} parent=0 // pred_region
    _
  $region9: #{decoder_forward.20} parent=0 // pred_fallthru
    _
  // Predicated region
  $region10: #{decoder_forward.20} parent=0 // pred_check
    _
  $region11: #{decoder_forward.20} parent=0 // pred_check_branch
    %13 = sbr.rel (0) target = $region13
  $region12: #{decoder_forward.20} parent=0 // pred_region
    _
  $region13: #{decoder_forward.20} parent=0 // pred_fallthru
    _
  %v14 = vld [vmem:[%s0] sm:$0xf]
  %v15 = vld [vmem:[%s0 + $0x4] sm:$0xf]
  %v16 = vld [vmem:[%s0 + $0x8] sm:$0xf]
  %v17 = vld [vmem:[%s0 + $0xc] sm:$0xf]
  %v18 = vunpack.c.l.bf16 %v14
  %v19 = vunpack.c.l.bf16 %v15
  %v20 = vunpack.c.l.bf16 %v16
  %v21 = vunpack.c.l.bf16 %v17
  %v22 = vld [vmem:[%s1] sm:$0x1]
  %v23 = vld [vmem:[%s2] sm:$0x1]
  %vm24 = vcmask 261120
  %v25 = vsel %vm24, %v18, 0.0
  %26 = vadd.xlane.f32.xlu0 %v25
  %v27 = vpop.xlane.xlu0 %26
  %v28 = vsel %vm24, %v19, 0.0
  %29 = vadd.xlane.f32.xlu0 %v28
  %v30 = vpop.xlane.xlu0 %29
  %v31 = vsel %vm24, %v20, 0.0
  %32 = vadd.xlane.f32.xlu0 %v31
  %v33 = vpop.xlane.xlu0 %32
  %v34 = vsel %vm24, %v21, 0.0
  %35 = vadd.xlane.f32.xlu0 %v34
  %v36 = vpop.xlane.xlu0 %35
  %v37 = vrcp.pop 32.0
  %v38 = vmul.f32 %v27, %v37
  %v39 = vmul.f32 %v30, %v37
  %v40 = vmul.f32 %v33, %v37
  %v41 = vmul.f32 %v36, %v37
  %v42 = vsub.f32 %v18, %v38
  %v43 = vsub.f32 %v19, %v39
  %v44 = vsub.f32 %v20, %v40
  %v45 = vsub.f32 %v21, %v41
  %v46 = vmul.f32 %v42, %v42
  %v47 = vmul.f32 %v43, %v43
  %v48 = vmul.f32 %v44, %v44
  %v49 = vmul.f32 %v45, %v45
  %v50 = vsel %vm24, %v46, 0.0
  %51 = vadd.xlane.f32.xlu0 %v50
  %v52 = vpop.xlane.xlu0 %51
  %v53 = vsel %vm24, %v47, 0.0
  %54 = vadd.xlane.f32.xlu0 %v53
  %v55 = vpop.xlane.xlu0 %54
  %v56 = vsel %vm24, %v48, 0.0
  %57 = vadd.xlane.f32.xlu0 %v56
  %v58 = vpop.xlane.xlu0 %57
  %v59 = vsel %vm24, %v49, 0.0
  %60 = vadd.xlane.f32.xlu0 %v59
  %v61 = vpop.xlane.xlu0 %60
  %v62 = vmul.f32 %v52, %v37
  %v63 = vmul.f32 %v55, %v37
  %v64 = vmul.f32 %v58, %v37
  %v65 = vmul.f32 %v61, %v37
  %v66 = vadd.f32 %v62, 1e-05
  %v67 = vadd.f32 %v63, 1e-05
  %v68 = vadd.f32 %v64, 1e-05
  %v69 = vadd.f32 %v65, 1e-05
  %v70 = vrsqrt.pop %v66
  %v71 = vrsqrt.pop %v67
  %v72 = vrsqrt.pop %v68
  %v73 = vrsqrt.pop %v69
  %v74 = vmul.f32 %v42, %v70
  %v75 = vmul.f32 %v43, %v71
  %v76 = vmul.f32 %v44, %v72
  %v77 = vmul.f32 %v45, %v73
  %v79 = vlaneseq
  %v80 = vshrl.u32 %v79, 7
  %v81 = vsub.s32 0, %v80
  %v82 = vrot.slane %v22, %v81
  %v84 = vmul.f32 %v74, %v82
  %v85 = vmul.f32 %v75, %v82
  %v86 = vmul.f32 %v76, %v82
  %v87 = vmul.f32 %v77, %v82
  %v89 = vlaneseq
  %v90 = vshrl.u32 %v89, 7
  %v91 = vsub.s32 0, %v90
  %v92 = vrot.slane %v23, %v91
  %v94 = vadd.f32 %v84, %v92
  %v95 = vadd.f32 %v85, %v92
  %v96 = vadd.f32 %v86, %v92
  %v97 = vadd.f32 %v87, %v92
  %v98 = vpack.c.bf16 %v95, %v94
  %v99 = vpack.c.bf16 %v97, %v96
  %v102 = vunpack.c.l.b16 %v98
  %v103 = vunpack.c.h.b16 %v98
  %v104 = vunpack.c.l.b16 %v99
  %v105 = vunpack.c.h.b16 %v99
  %v106 = vpack.c.b16 %v102, %v102
  %v107 = vpack.c.b16 %v103, %v103
  %v108 = vpack.c.b16 %v104, %v104
  %v109 = vpack.c.b16 %v105, %v105
  %vm114 = vcmask 257024
  %115 = vst.msk [vmem:[%s3] sm:$0xf] %vm114, %v106
  %116 = vst.msk [vmem:[%s3 + $0x4] sm:$0xf] %vm114, %v107
  %117 = vst.msk [vmem:[%s3 + $0x8] sm:$0xf] %vm114, %v108
  %118 = vst.msk [vmem:[%s3 + $0xc] sm:$0xf] %vm114, %v109
  // Predicated region
  $region14: #{decoder_forward.20} parent=0 // pred_check
    _
  $region15: #{decoder_forward.20} parent=0 // pred_check_branch
    %120 = sbr.rel (0) target = $region17
  $region16: #{decoder_forward.20} parent=0 // pred_region
    _
  $region17: #{decoder_forward.20} parent=0 // pred_fallthru
    _
  // Predicated region
  $region18: #{decoder_forward.20} parent=0 // pred_check
    _
  $region19: #{decoder_forward.20} parent=0 // pred_check_branch
    %122 = sbr.rel (0) target = $region21
  $region20: #{decoder_forward.20} parent=0 // pred_region
    _
  $region21: #{decoder_forward.20} parent=0 // pred_fallthru
    _

// kernel: decoder_forward.21
$region0: #{decoder_forward.21}
  #allocation0 [shape = 'u32[]', space=smem, size = 0x4, offset = 0x4, fixed_abs, tag = 'smem constant byte address 0x4 - core index']
  #allocation1 [shape = 'u32[144,128]{1,0:T(1,128)}', space=vmem, size = 0x12000, scoped, tag = 'internal scratch']
  #allocation2 [shape = 'f32[32,128]{1,0:T(8,128)}', space=vmem, size = 0x4000, scoped, tag = 'scratch operand']
  %s0 = inlined_call_operand.vmem [shape: bf16[32,32], index: 0, kind: input, shape index: {}]
  %s1 = inlined_call_operand.vmem [shape: bf16[32,128], index: 1, kind: input, shape index: {}]
  %s2 = inlined_call_operand.vmem [shape: f32[1,128], index: 2, kind: input, shape index: {}]
  %s3 = inlined_call_operand.vmem [shape: bf16[32,128], index: 3, kind: output, shape index: {}]
  %s4 = sld [smem:[#allocation0]]
  $region30: #{decoder_forward.21} parent=0
    _
  %s6 = ssub.s32 1, %s4
  %s7 = scalar_select 0, %s6, %s4
  // Predicated region
  $region2: #{decoder_forward.21} parent=0 // pred_check
    _
  $region3: #{decoder_forward.21} parent=0 // pred_check_branch
    %9 = sbr.rel (0) target = $region5
  $region4: #{decoder_forward.21} parent=0 // pred_region
    _
  $region5: #{decoder_forward.21} parent=0 // pred_fallthru
    _
  // Predicated region
  $region6: #{decoder_forward.21} parent=0 // pred_check
    _
  $region7: #{decoder_forward.21} parent=0 // pred_check_branch
    %11 = sbr.rel (0) target = $region9
  $region8: #{decoder_forward.21} parent=0 // pred_region
    _
  $region9: #{decoder_forward.21} parent=0 // pred_fallthru
    _
  // Predicated region
  $region10: #{decoder_forward.21} parent=0 // pred_check
    _
  $region11: #{decoder_forward.21} parent=0 // pred_check_branch
    %13 = sbr.rel (0) target = $region13
  $region12: #{decoder_forward.21} parent=0 // pred_region
    _
  $region13: #{decoder_forward.21} parent=0 // pred_fallthru
    _
  %p15 = scmp.eq.s32.totalorder 0, 0
  // Predicated region
  $region14: #{decoder_forward.21} parent=0 // pred_check
    %p16 = pneg %p15
  $region15: #{decoder_forward.21} parent=0 // pred_check_branch
    %18 = sbr.rel (%p16) target = $region17
  $region16: #{decoder_forward.21} parent=0 // pred_region
    %19 = vst [vmem:[#allocation2] sm:$0xff] 0.0
    %20 = vst [vmem:[#allocation2 + $0x8] sm:$0xff] 0.0
    %21 = vst [vmem:[#allocation2 + $0x10] sm:$0xff] 0.0
    %22 = vst [vmem:[#allocation2 + $0x18] sm:$0xff] 0.0
  $region17: #{decoder_forward.21} parent=0 // pred_fallthru
    _
  %v23 = vld [vmem:[#allocation2] sm:$0xff]
  %v24 = vld [vmem:[#allocation2 + $0x8] sm:$0xff]
  %v25 = vld [vmem:[#allocation2 + $0x10] sm:$0xff]
  %v26 = vld [vmem:[#allocation2 + $0x18] sm:$0xff]
  %v27 = vld [vmem:[%s0] sm:$0xf]
  %v28 = vld [vmem:[%s0 + $0x4] sm:$0xf]
  %v29 = vld [vmem:[%s0 + $0x8] sm:$0xf]
  %v30 = vld [vmem:[%s0 + $0xc] sm:$0xf]
  %v31 = vld [vmem:[%s1] sm:$0xf]
  %v32 = vld [vmem:[%s1 + $0x4] sm:$0xf]
  %v33 = vld [vmem:[%s1 + $0x8] sm:$0xf]
  %v34 = vld [vmem:[%s1 + $0xc] sm:$0xf]
  %v39 = vunpack.c.l.b16 %v27
  %v40 = vunpack.c.l.b16 %v28
  %v41 = vunpack.c.l.b16 %v29
  %v42 = vunpack.c.l.b16 %v30
  %v43 = vpack.c.b16 %v40, %v39
  %v44 = vpack.c.b16 %v42, %v41
  %v49 = vunpack.c.l.b16 %v31
  %v50 = vunpack.c.l.b16 %v32
  %v51 = vunpack.c.l.b16 %v33
  %v52 = vunpack.c.l.b16 %v34
  %v53 = vpack.c.b16 %v50, %v49
  %v54 = vpack.c.b16 %v52, %v51
  %vm57 = vcmask 261120
  %v59 = vsel %vm57, %v43, 0
  %v62 = vsel %vm57, %v44, 0
  %64 = vmatprep.subr.bf16.mxu0 0
  %65 = vmatpush1.bf16.msra.mxu0 %v53
  %66 = vmatprep.subr.bf16.mxu0 0
  %67 = vmatpush1.bf16.msra.mxu0 %v54
  %68 = vmatprep.subr.bf16.mxu0 0
  %69 = vmatpush1.bf16.msra.mxu0 0
  %70 = vmatprep.subr.bf16.mxu0 0
  %71 = vmatpush1.bf16.msra.mxu0 0
  %72 = vmatprep.subr.bf16.mxu0 0
  %73 = vmatpush1.bf16.msra.mxu0 0
  %74 = vmatprep.subr.bf16.mxu0 0
  %75 = vmatpush1.bf16.msra.mxu0 0
  %76 = vmatprep.subr.bf16.mxu0 0
  %77 = vmatpush1.bf16.msra.mxu0 0
  %78 = vmatprep.subr.bf16.mxu0 0
  %79 = vmatpush1.bf16.msra.mxu0 0
  %80 = vmatprep.subr.bf16.mxu0 0
  %81 = vmatpush1.bf16.msra.mxu0 0
  %82 = vmatprep.subr.bf16.mxu0 0
  %83 = vmatpush1.bf16.msra.mxu0 0
  %84 = vmatprep.subr.bf16.mxu0 0
  %85 = vmatpush1.bf16.msra.mxu0 0
  %86 = vmatprep.subr.bf16.mxu0 0
  %87 = vmatpush1.bf16.msra.mxu0 0
  %88 = vmatprep.subr.bf16.mxu0 0
  %89 = vmatpush1.bf16.msra.mxu0 0
  %90 = vmatprep.subr.bf16.mxu0 0
  %91 = vmatpush1.bf16.msra.mxu0 0
  %92 = vmatprep.subr.bf16.mxu0 0
  %93 = vmatpush1.bf16.msra.mxu0 0
  %94 = vmatprep.subr.bf16.mxu0 0
  %95 = vmatpush1.bf16.msra.mxu0 0
  %96 = vmatprep.mubr.bf16.mxu0 0
  %97 = vmatmul.mubr.bf16.gmra.mrb[0].mxu0 %v59
  %v98 = vpop.f32.mrb[0].mxu0
  %v99 = vadd.f32 0.0, %v98
  %v100 = vpop.f32.mrb[0].mxu0
  %v101 = vpop.f32.mrb[0].mxu0
  %v102 = vadd.f32 0.0, %v101
  %v103 = vpop.f32.mrb[0].mxu0
  %104 = vmatprep.mubr.bf16.mxu0 0
  %105 = vmatmul.mubr.bf16.gmra.mrb[0].mxu0 %v62
  %v106 = vpop.f32.mrb[0].mxu0
  %v107 = vadd.f32 0.0, %v106
  %v108 = vpop.f32.mrb[0].mxu0
  %v109 = vpop.f32.mrb[0].mxu0
  %v110 = vadd.f32 0.0, %v109
  %v111 = vpop.f32.mrb[0].mxu0
  %112 = vdwg.mxu0
  %v113 = vadd.f32 %v23, %v99
  %v114 = vadd.f32 %v24, %v102
  %v115 = vadd.f32 %v25, %v107
  %v116 = vadd.f32 %v26, %v110
  %117 = vst [vmem:[#allocation2] sm:$0xff] %v113
  %118 = vst [vmem:[#allocation2 + $0x8] sm:$0xff] %v114
  %119 = vst [vmem:[#allocation2 + $0x10] sm:$0xff] %v115
  %120 = vst [vmem:[#allocation2 + $0x18] sm:$0xff] %v116
  // Predicated region
  $region18: #{decoder_forward.21} parent=0 // pred_check
    %p121 = pneg %p15
  $region19: #{decoder_forward.21} parent=0 // pred_check_branch
    %123 = sbr.rel (%p121) target = $region21
  $region20: #{decoder_forward.21} parent=0 // pred_region
    %v124 = vld [vmem:[#allocation2] sm:$0xff]
    %v125 = vld [vmem:[#allocation2 + $0x8] sm:$0xff]
    %v126 = vld [vmem:[#allocation2 + $0x10] sm:$0xff]
    %v127 = vld [vmem:[#allocation2 + $0x18] sm:$0xff]
    %v128 = vld [vmem:[%s2] sm:$0x1]
    %v130 = vlaneseq
    %v131 = vshrl.u32 %v130, 7
    %v132 = vsub.s32 0, %v131
    %v133 = vrot.slane %v128, %v132
    %v135 = vadd.f32 %v124, %v133
    %v136 = vadd.f32 %v125, %v133
    %v137 = vadd.f32 %v126, %v133
    %v138 = vadd.f32 %v127, %v133
    %v139 = vpack.c.bf16 %v136, %v135
    %v140 = vpack.c.bf16 %v138, %v137
    %v143 = vunpack.c.l.b16 %v139
    %v144 = vunpack.c.h.b16 %v139
    %v145 = vunpack.c.l.b16 %v140
    %v146 = vunpack.c.h.b16 %v140
    %v147 = vpack.c.b16 %v143, %v143
    %v148 = vpack.c.b16 %v144, %v144
    %v149 = vpack.c.b16 %v145, %v145
    %v150 = vpack.c.b16 %v146, %v146
    %155 = vst [vmem:[%s3] sm:$0xf] %v147
    %156 = vst [vmem:[%s3 + $0x4] sm:$0xf] %v148
    %157 = vst [vmem:[%s3 + $0x8] sm:$0xf] %v149
    %158 = vst [vmem:[%s3 + $0xc] sm:$0xf] %v150
  $region21: #{decoder_forward.21} parent=0 // pred_fallthru
    _
  // Predicated region
  $region22: #{decoder_forward.21} parent=0 // pred_check
    _
  $region23: #{decoder_forward.21} parent=0 // pred_check_branch
    %160 = sbr.rel (0) target = $region25
  $region24: #{decoder_forward.21} parent=0 // pred_region
    _
  $region25: #{decoder_forward.21} parent=0 // pred_fallthru
    _
  // Predicated region
  $region26: #{decoder_forward.21} parent=0 // pred_check
    _
  $region27: #{decoder_forward.21} parent=0 // pred_check_branch
    %162 = sbr.rel (0) target = $region29
  $region28: #{decoder_forward.21} parent=0 // pred_region
    _
  $region29: #{decoder_forward.21} parent=0 // pred_fallthru
    _

// kernel: decoder_forward.19
$region0: #{decoder_forward.19}
  #allocation0 [shape = 'u32[]', space=smem, size = 0x4, offset = 0x4, fixed_abs, tag = 'smem constant byte address 0x4 - core index']
  #allocation1 [shape = 'u32[144,128]{1,0:T(1,128)}', space=vmem, size = 0x12000, scoped, tag = 'internal scratch']
  #allocation2 [shape = 'f32[8,128]{1,0:T(8,128)}', space=vmem, size = 0x1000, scoped, tag = 'scratch operand']
  %s0 = inlined_call_operand.vmem [shape: bf16[8,16], index: 0, kind: input, shape index: {}]
  %s1 = inlined_call_operand.vmem [shape: bf16[16,128], index: 1, kind: input, shape index: {}]
  %s2 = inlined_call_operand.vmem [shape: f32[1,128], index: 2, kind: input, shape index: {}]
  %s3 = inlined_call_operand.vmem [shape: f32[8,128], index: 3, kind: output, shape index: {}]
  %s4 = sld [smem:[#allocation0]]
  $region30: #{decoder_forward.19} parent=0
    _
  %s6 = ssub.s32 1, %s4
  %s7 = scalar_select 0, %s6, %s4
  // Predicated region
  $region2: #{decoder_forward.19} parent=0 // pred_check
    _
  $region3: #{decoder_forward.19} parent=0 // pred_check_branch
    %9 = sbr.rel (0) target = $region5
  $region4: #{decoder_forward.19} parent=0 // pred_region
    _
  $region5: #{decoder_forward.19} parent=0 // pred_fallthru
    _
  // Predicated region
  $region6: #{decoder_forward.19} parent=0 // pred_check
    _
  $region7: #{decoder_forward.19} parent=0 // pred_check_branch
    %11 = sbr.rel (0) target = $region9
  $region8: #{decoder_forward.19} parent=0 // pred_region
    _
  $region9: #{decoder_forward.19} parent=0 // pred_fallthru
    _
  // Predicated region
  $region10: #{decoder_forward.19} parent=0 // pred_check
    _
  $region11: #{decoder_forward.19} parent=0 // pred_check_branch
    %13 = sbr.rel (0) target = $region13
  $region12: #{decoder_forward.19} parent=0 // pred_region
    _
  $region13: #{decoder_forward.19} parent=0 // pred_fallthru
    _
  %p15 = scmp.eq.s32.totalorder 0, 0
  // Predicated region
  $region14: #{decoder_forward.19} parent=0 // pred_check
    %p16 = pneg %p15
  $region15: #{decoder_forward.19} parent=0 // pred_check_branch
    %18 = sbr.rel (%p16) target = $region17
  $region16: #{decoder_forward.19} parent=0 // pred_region
    %19 = vst [vmem:[#allocation2] sm:$0xff] 0.0
  $region17: #{decoder_forward.19} parent=0 // pred_fallthru
    _
  %v20 = vld [vmem:[#allocation2] sm:$0xff]
  %v21 = vld [vmem:[%s0] sm:$0xf]
  %v22 = vld [vmem:[%s1] sm:$0xf]
  %v23 = vld [vmem:[%s1 + $0x4] sm:$0xf]
  %v26 = vunpack.c.l.b16 %v22
  %v27 = vunpack.c.l.b16 %v23
  %v28 = vpack.c.b16 %v27, %v26
  %vm30 = vcmask 130048
  %v32 = vsel %vm30, %v21, 0
  %34 = vmatprep.subr.bf16.mxu0 0
  %35 = vmatpush1.bf16.msra.mxu0 %v28
  %36 = vmatprep.subr.bf16.mxu0 0
  %37 = vmatpush1.bf16.msra.mxu0 0
  %38 = vmatprep.subr.bf16.mxu0 0
  %39 = vmatpush1.bf16.msra.mxu0 0
  %40 = vmatprep.subr.bf16.mxu0 0
  %41 = vmatpush1.bf16.msra.mxu0 0
  %42 = vmatprep.subr.bf16.mxu0 0
  %43 = vmatpush1.bf16.msra.mxu0 0
  %44 = vmatprep.subr.bf16.mxu0 0
  %45 = vmatpush1.bf16.msra.mxu0 0
  %46 = vmatprep.subr.bf16.mxu0 0
  %47 = vmatpush1.bf16.msra.mxu0 0
  %48 = vmatprep.subr.bf16.mxu0 0
  %49 = vmatpush1.bf16.msra.mxu0 0
  %50 = vmatprep.subr.bf16.mxu0 0
  %51 = vmatpush1.bf16.msra.mxu0 0
  %52 = vmatprep.subr.bf16.mxu0 0
  %53 = vmatpush1.bf16.msra.mxu0 0
  %54 = vmatprep.subr.bf16.mxu0 0
  %55 = vmatpush1.bf16.msra.mxu0 0
  %56 = vmatprep.subr.bf16.mxu0 0
  %57 = vmatpush1.bf16.msra.mxu0 0
  %58 = vmatprep.subr.bf16.mxu0 0
  %59 = vmatpush1.bf16.msra.mxu0 0
  %60 = vmatprep.subr.bf16.mxu0 0
  %61 = vmatpush1.bf16.msra.mxu0 0
  %62 = vmatprep.subr.bf16.mxu0 0
  %63 = vmatpush1.bf16.msra.mxu0 0
  %64 = vmatprep.subr.bf16.mxu0 0
  %65 = vmatpush1.bf16.msra.mxu0 0
  %66 = vmatprep.mubr.bf16.mxu0 0
  %67 = vmatmul.mubr.bf16.gmra.mrb[0].mxu0 %v32
  %v68 = vpop.f32.mrb[0].mxu0
  %v69 = vadd.f32 0.0, %v68
  %v70 = vpop.f32.mrb[0].mxu0
  %v71 = vpop.f32.mrb[0].mxu0
  %v72 = vpop.f32.mrb[0].mxu0
  %73 = vdwg.mxu0
  %v74 = vadd.f32 %v20, %v69
  %75 = vst [vmem:[#allocation2] sm:$0xff] %v74
  // Predicated region
  $region18: #{decoder_forward.19} parent=0 // pred_check
    %p76 = pneg %p15
  $region19: #{decoder_forward.19} parent=0 // pred_check_branch
    %78 = sbr.rel (%p76) target = $region21
  $region20: #{decoder_forward.19} parent=0 // pred_region
    %v79 = vld [vmem:[#allocation2] sm:$0xff]
    %v80 = vld [vmem:[%s2] sm:$0x1]
    %v82 = vlaneseq
    %v83 = vshrl.u32 %v82, 7
    %v84 = vsub.s32 0, %v83
    %v85 = vrot.slane %v80, %v84
    %v87 = vadd.f32 %v79, %v85
    %88 = vst [vmem:[%s3] sm:$0xff] %v87
  $region21: #{decoder_forward.19} parent=0 // pred_fallthru
    _
  // Predicated region
  $region22: #{decoder_forward.19} parent=0 // pred_check
    _
  $region23: #{decoder_forward.19} parent=0 // pred_check_branch
    %90 = sbr.rel (0) target = $region25
  $region24: #{decoder_forward.19} parent=0 // pred_region
    _
  $region25: #{decoder_forward.19} parent=0 // pred_fallthru
    _
  // Predicated region
  $region26: #{decoder_forward.19} parent=0 // pred_check
    _
  $region27: #{decoder_forward.19} parent=0 // pred_check_branch
    %92 = sbr.rel (0) target = $region29
  $region28: #{decoder_forward.19} parent=0 // pred_region
    _
  $region29: #{decoder_forward.19} parent=0 // pred_fallthru
    _

// kernel: decoder_forward.22
$region0: #{decoder_forward.22}
  #allocation0 [shape = 'u32[]', space=smem, size = 0x4, offset = 0x4, fixed_abs, tag = 'smem constant byte address 0x4 - core index']
  #allocation1 [shape = 'u32[144,128]{1,0:T(1,128)}', space=vmem, size = 0x12000, scoped, tag = 'internal scratch']
  %s0 = inlined_call_operand.vmem [shape: bf16[4,8,96], index: 0, kind: input, shape index: {}]
  %s1 = inlined_call_operand.vmem [shape: bf16[4,1,32], index: 1, kind: input, shape index: {}]
  %s2 = inlined_call_operand.vmem [shape: bf16[4,8,32], index: 2, kind: output, shape index: {}]
  %s3 = sld [smem:[#allocation0]]
  $region18: #{decoder_forward.22} parent=0
    _
  %s5 = ssub.s32 1, %s3
  %s6 = scalar_select 0, %s5, %s3
  // Predicated region
  $region2: #{decoder_forward.22} parent=0 // pred_check
    _
  $region3: #{decoder_forward.22} parent=0 // pred_check_branch
    %8 = sbr.rel (0) target = $region5
  $region4: #{decoder_forward.22} parent=0 // pred_region
    _
  $region5: #{decoder_forward.22} parent=0 // pred_fallthru
    _
  // Predicated region
  $region6: #{decoder_forward.22} parent=0 // pred_check
    _
  $region7: #{decoder_forward.22} parent=0 // pred_check_branch
    %10 = sbr.rel (0) target = $region9
  $region8: #{decoder_forward.22} parent=0 // pred_region
    _
  $region9: #{decoder_forward.22} parent=0 // pred_fallthru
    _
  %v11 = vld [vmem:[%s0] sm:$0xf]
  %v12 = vld [vmem:[%s0 + $0x4] sm:$0xf]
  %v13 = vld [vmem:[%s0 + $0x8] sm:$0xf]
  %v14 = vld [vmem:[%s0 + $0xc] sm:$0xf]
  %v15 = vunpack.c.l.bf16 %v11
  %v16 = vunpack.c.l.bf16 %v12
  %v17 = vunpack.c.l.bf16 %v13
  %v18 = vunpack.c.l.bf16 %v14
  %v19 = vld [vmem:[%s1] sm:$0x1]
  %v20 = vld [vmem:[%s1 + $0x1] sm:$0x1]
  %v21 = vld [vmem:[%s1 + $0x2] sm:$0x1]
  %v22 = vld [vmem:[%s1 + $0x3] sm:$0x1]
  %v23 = vunpack.c.l.bf16 %v19
  %v24 = vunpack.c.l.bf16 %v20
  %v25 = vunpack.c.l.bf16 %v21
  %v26 = vunpack.c.l.bf16 %v22
  %28 = vrot.lane.b32.xlu0 %v15, 96
  %v29 = vpop.permute.xlu0 %28
  %vm30 = vcmask 130048
  %v31 = vsel %vm30, %v15, 0
  %v33 = vsel %vm30, %v29, 0
  %35 = vmatprep.subr.mxu0 0.0
  %36 = vmatpush1.xpose.msra.mxu0 %v33
  %37 = vmatprep.subr.mxu0 0.0
  %38 = vmatpush1.xpose.msra.mxu0 0.0
  %39 = vmatprep.subr.mxu0 0.0
  %40 = vmatpush1.xpose.msra.mxu0 0.0
  %41 = vmatprep.subr.mxu0 0.0
  %42 = vmatpush1.xpose.msra.mxu0 0.0
  %43 = vmatprep.subr.mxu0 0.0
  %44 = vmatpush1.xpose.msra.mxu0 0.0
  %45 = vmatprep.subr.mxu0 0.0
  %46 = vmatpush1.xpose.msra.mxu0 0.0
  %47 = vmatprep.subr.mxu0 0.0
  %48 = vmatpush1.xpose.msra.mxu0 0.0
  %49 = vmatprep.subr.mxu0 0.0
  %50 = vmatpush1.xpose.msra.mxu0 0.0
  %51 = vmatprep.subr.mxu0 0.0
  %52 = vmatpush1.xpose.msra.mxu0 0.0
  %53 = vmatprep.subr.mxu0 0.0
  %54 = vmatpush1.xpose.msra.mxu0 0.0
  %55 = vmatprep.subr.mxu0 0.0
  %56 = vmatpush1.xpose.msra.mxu0 0.0
  %57 = vmatprep.subr.mxu0 0.0
  %58 = vmatpush1.xpose.msra.mxu0 0.0
  %59 = vmatprep.subr.mxu0 0.0
  %60 = vmatpush1.xpose.msra.mxu0 0.0
  %61 = vmatprep.subr.mxu0 0.0
  %62 = vmatpush1.xpose.msra.mxu0 0.0
  %63 = vmatprep.subr.mxu0 0.0
  %64 = vmatpush1.xpose.msra.mxu0 0.0
  %65 = vmatprep.subr.mxu0 0.0
  %66 = vmatpush1.xpose.msra.mxu0 0.0
  %67 = vmatprep.subr.mxu0 0.0
  %68 = vmatpush1.xpose.msra.mxu0 0.0
  %69 = vmatprep.subr.mxu0 0.0
  %70 = vmatpush1.xpose.msra.mxu0 0.0
  %71 = vmatprep.subr.mxu0 0.0
  %72 = vmatpush1.xpose.msra.mxu0 0.0
  %73 = vmatprep.subr.mxu0 0.0
  %74 = vmatpush1.xpose.msra.mxu0 0.0
  %75 = vmatprep.subr.mxu0 0.0
  %76 = vmatpush1.xpose.msra.mxu0 0.0
  %77 = vmatprep.subr.mxu0 0.0
  %78 = vmatpush1.xpose.msra.mxu0 0.0
  %79 = vmatprep.subr.mxu0 0.0
  %80 = vmatpush1.xpose.msra.mxu0 0.0
  %81 = vmatprep.subr.mxu0 0.0
  %82 = vmatpush1.xpose.msra.mxu0 0.0
  %83 = vmatprep.subr.mxu0 0.0
  %84 = vmatpush1.xpose.msra.mxu0 0.0
  %85 = vmatprep.subr.mxu0 0.0
  %86 = vmatpush1.xpose.msra.mxu0 0.0
  %87 = vmatprep.subr.mxu0 0.0
  %88 = vmatpush1.xpose.msra.mxu0 0.0
  %89 = vmatprep.subr.mxu0 0.0
  %90 = vmatpush1.xpose.msra.mxu0 0.0
  %91 = vmatprep.subr.mxu0 0.0
  %92 = vmatpush1.xpose.msra.mxu0 0.0
  %93 = vmatprep.subr.mxu0 0.0
  %94 = vmatpush1.xpose.msra.mxu0 0.0
  %95 = vmatprep.subr.mxu0 0.0
  %96 = vmatpush1.xpose.msra.mxu0 0.0
  %97 = vmatprep.subr.mxu0 0.0
  %98 = vmatpush1.xpose.msra.mxu0 0.0
  %99 = vmatprep.mubr.f32.mxu0 0.0
  %100 = vmatmul.mubr.f32.gmra.mrb[0].mxu0 %v31
  %v101 = vpop.f32.mrb[0].mxu0
  %v102 = vadd.f32 0.0, %v101
  %v103 = vpop.f32.mrb[0].mxu0
  %104 = vdwg.mxu0
  %106 = vrot.lane.b32.xlu0 %v16, 96
  %v107 = vpop.permute.xlu0 %106
  %v108 = vsel %vm30, %v16, 0
  %v110 = vsel %vm30, %v107, 0
  %112 = vmatprep.subr.mxu0 0.0
  %113 = vmatpush1.xpose.msra.mxu0 %v110
  %114 = vmatprep.subr.mxu0 0.0
  %115 = vmatpush1.xpose.msra.mxu0 0.0
  %116 = vmatprep.subr.mxu0 0.0
  %117 = vmatpush1.xpose.msra.mxu0 0.0
  %118 = vmatprep.subr.mxu0 0.0
  %119 = vmatpush1.xpose.msra.mxu0 0.0
  %120 = vmatprep.subr.mxu0 0.0
  %121 = vmatpush1.xpose.msra.mxu0 0.0
  %122 = vmatprep.subr.mxu0 0.0
  %123 = vmatpush1.xpose.msra.mxu0 0.0
  %124 = vmatprep.subr.mxu0 0.0
  %125 = vmatpush1.xpose.msra.mxu0 0.0
  %126 = vmatprep.subr.mxu0 0.0
  %127 = vmatpush1.xpose.msra.mxu0 0.0
  %128 = vmatprep.subr.mxu0 0.0
  %129 = vmatpush1.xpose.msra.mxu0 0.0
  %130 = vmatprep.subr.mxu0 0.0
  %131 = vmatpush1.xpose.msra.mxu0 0.0
  %132 = vmatprep.subr.mxu0 0.0
  %133 = vmatpush1.xpose.msra.mxu0 0.0
  %134 = vmatprep.subr.mxu0 0.0
  %135 = vmatpush1.xpose.msra.mxu0 0.0
  %136 = vmatprep.subr.mxu0 0.0
  %137 = vmatpush1.xpose.msra.mxu0 0.0
  %138 = vmatprep.subr.mxu0 0.0
  %139 = vmatpush1.xpose.msra.mxu0 0.0
  %140 = vmatprep.subr.mxu0 0.0
  %141 = vmatpush1.xpose.msra.mxu0 0.0
  %142 = vmatprep.subr.mxu0 0.0
  %143 = vmatpush1.xpose.msra.mxu0 0.0
  %144 = vmatprep.subr.mxu0 0.0
  %145 = vmatpush1.xpose.msra.mxu0 0.0
  %146 = vmatprep.subr.mxu0 0.0
  %147 = vmatpush1.xpose.msra.mxu0 0.0
  %148 = vmatprep.subr.mxu0 0.0
  %149 = vmatpush1.xpose.msra.mxu0 0.0
  %150 = vmatprep.subr.mxu0 0.0
  %151 = vmatpush1.xpose.msra.mxu0 0.0
  %152 = vmatprep.subr.mxu0 0.0
  %153 = vmatpush1.xpose.msra.mxu0 0.0
  %154 = vmatprep.subr.mxu0 0.0
  %155 = vmatpush1.xpose.msra.mxu0 0.0
  %156 = vmatprep.subr.mxu0 0.0
  %157 = vmatpush1.xpose.msra.mxu0 0.0
  %158 = vmatprep.subr.mxu0 0.0
  %159 = vmatpush1.xpose.msra.mxu0 0.0
  %160 = vmatprep.subr.mxu0 0.0
  %161 = vmatpush1.xpose.msra.mxu0 0.0
  %162 = vmatprep.subr.mxu0 0.0
  %163 = vmatpush1.xpose.msra.mxu0 0.0
  %164 = vmatprep.subr.mxu0 0.0
  %165 = vmatpush1.xpose.msra.mxu0 0.0
  %166 = vmatprep.subr.mxu0 0.0
  %167 = vmatpush1.xpose.msra.mxu0 0.0
  %168 = vmatprep.subr.mxu0 0.0
  %169 = vmatpush1.xpose.msra.mxu0 0.0
  %170 = vmatprep.subr.mxu0 0.0
  %171 = vmatpush1.xpose.msra.mxu0 0.0
  %172 = vmatprep.subr.mxu0 0.0
  %173 = vmatpush1.xpose.msra.mxu0 0.0
  %174 = vmatprep.subr.mxu0 0.0
  %175 = vmatpush1.xpose.msra.mxu0 0.0
  %176 = vmatprep.mubr.f32.mxu0 0.0
  %177 = vmatmul.mubr.f32.gmra.mrb[0].mxu0 %v108
  %v178 = vpop.f32.mrb[0].mxu0
  %v179 = vadd.f32 0.0, %v178
  %v180 = vpop.f32.mrb[0].mxu0
  %181 = vdwg.mxu0
  %183 = vrot.lane.b32.xlu0 %v17, 96
  %v184 = vpop.permute.xlu0 %183
  %v185 = vsel %vm30, %v17, 0
  %v187 = vsel %vm30, %v184, 0
  %189 = vmatprep.subr.mxu0 0.0
  %190 = vmatpush1.xpose.msra.mxu0 %v187
  %191 = vmatprep.subr.mxu0 0.0
  %192 = vmatpush1.xpose.msra.mxu0 0.0
  %193 = vmatprep.subr.mxu0 0.0
  %194 = vmatpush1.xpose.msra.mxu0 0.0
  %195 = vmatprep.subr.mxu0 0.0
  %196 = vmatpush1.xpose.msra.mxu0 0.0
  %197 = vmatprep.subr.mxu0 0.0
  %198 = vmatpush1.xpose.msra.mxu0 0.0
  %199 = vmatprep.subr.mxu0 0.0
  %200 = vmatpush1.xpose.msra.mxu0 0.0
  %201 = vmatprep.subr.mxu0 0.0
  %202 = vmatpush1.xpose.msra.mxu0 0.0
  %203 = vmatprep.subr.mxu0 0.0
  %204 = vmatpush1.xpose.msra.mxu0 0.0
  %205 = vmatprep.subr.mxu0 0.0
  %206 = vmatpush1.xpose.msra.mxu0 0.0
  %207 = vmatprep.subr.mxu0 0.0
  %208 = vmatpush1.xpose.msra.mxu0 0.0
  %209 = vmatprep.subr.mxu0 0.0
  %210 = vmatpush1.xpose.msra.mxu0 0.0
  %211 = vmatprep.subr.mxu0 0.0
  %212 = vmatpush1.xpose.msra.mxu0 0.0
  %213 = vmatprep.subr.mxu0 0.0
  %214 = vmatpush1.xpose.msra.mxu0 0.0
  %215 = vmatprep.subr.mxu0 0.0
  %216 = vmatpush1.xpose.msra.mxu0 0.0
  %217 = vmatprep.subr.mxu0 0.0
  %218 = vmatpush1.xpose.msra.mxu0 0.0
  %219 = vmatprep.subr.mxu0 0.0
  %220 = vmatpush1.xpose.msra.mxu0 0.0
  %221 = vmatprep.subr.mxu0 0.0
  %222 = vmatpush1.xpose.msra.mxu0 0.0
  %223 = vmatprep.subr.mxu0 0.0
  %224 = vmatpush1.xpose.msra.mxu0 0.0
  %225 = vmatprep.subr.mxu0 0.0
  %226 = vmatpush1.xpose.msra.mxu0 0.0
  %227 = vmatprep.subr.mxu0 0.0
  %228 = vmatpush1.xpose.msra.mxu0 0.0
  %229 = vmatprep.subr.mxu0 0.0
  %230 = vmatpush1.xpose.msra.mxu0 0.0
  %231 = vmatprep.subr.mxu0 0.0
  %232 = vmatpush1.xpose.msra.mxu0 0.0
  %233 = vmatprep.subr.mxu0 0.0
  %234 = vmatpush1.xpose.msra.mxu0 0.0
  %235 = vmatprep.subr.mxu0 0.0
  %236 = vmatpush1.xpose.msra.mxu0 0.0
  %237 = vmatprep.subr.mxu0 0.0
  %238 = vmatpush1.xpose.msra.mxu0 0.0
  %239 = vmatprep.subr.mxu0 0.0
  %240 = vmatpush1.xpose.msra.mxu0 0.0
  %241 = vmatprep.subr.mxu0 0.0
  %242 = vmatpush1.xpose.msra.mxu0 0.0
  %243 = vmatprep.subr.mxu0 0.0
  %244 = vmatpush1.xpose.msra.mxu0 0.0
  %245 = vmatprep.subr.mxu0 0.0
  %246 = vmatpush1.xpose.msra.mxu0 0.0
  %247 = vmatprep.subr.mxu0 0.0
  %248 = vmatpush1.xpose.msra.mxu0 0.0
  %249 = vmatprep.subr.mxu0 0.0
  %250 = vmatpush1.xpose.msra.mxu0 0.0
  %251 = vmatprep.subr.mxu0 0.0
  %252 = vmatpush1.xpose.msra.mxu0 0.0
  %253 = vmatprep.mubr.f32.mxu0 0.0
  %254 = vmatmul.mubr.f32.gmra.mrb[0].mxu0 %v185
  %v255 = vpop.f32.mrb[0].mxu0
  %v256 = vadd.f32 0.0, %v255
  %v257 = vpop.f32.mrb[0].mxu0
  %258 = vdwg.mxu0
  %260 = vrot.lane.b32.xlu0 %v18, 96
  %v261 = vpop.permute.xlu0 %260
  %v262 = vsel %vm30, %v18, 0
  %v264 = vsel %vm30, %v261, 0
  %266 = vmatprep.subr.mxu0 0.0
  %267 = vmatpush1.xpose.msra.mxu0 %v264
  %268 = vmatprep.subr.mxu0 0.0
  %269 = vmatpush1.xpose.msra.mxu0 0.0
  %270 = vmatprep.subr.mxu0 0.0
  %271 = vmatpush1.xpose.msra.mxu0 0.0
  %272 = vmatprep.subr.mxu0 0.0
  %273 = vmatpush1.xpose.msra.mxu0 0.0
  %274 = vmatprep.subr.mxu0 0.0
  %275 = vmatpush1.xpose.msra.mxu0 0.0
  %276 = vmatprep.subr.mxu0 0.0
  %277 = vmatpush1.xpose.msra.mxu0 0.0
  %278 = vmatprep.subr.mxu0 0.0
  %279 = vmatpush1.xpose.msra.mxu0 0.0
  %280 = vmatprep.subr.mxu0 0.0
  %281 = vmatpush1.xpose.msra.mxu0 0.0
  %282 = vmatprep.subr.mxu0 0.0
  %283 = vmatpush1.xpose.msra.mxu0 0.0
  %284 = vmatprep.subr.mxu0 0.0
  %285 = vmatpush1.xpose.msra.mxu0 0.0
  %286 = vmatprep.subr.mxu0 0.0
  %287 = vmatpush1.xpose.msra.mxu0 0.0
  %288 = vmatprep.subr.mxu0 0.0
  %289 = vmatpush1.xpose.msra.mxu0 0.0
  %290 = vmatprep.subr.mxu0 0.0
  %291 = vmatpush1.xpose.msra.mxu0 0.0
  %292 = vmatprep.subr.mxu0 0.0
  %293 = vmatpush1.xpose.msra.mxu0 0.0
  %294 = vmatprep.subr.mxu0 0.0
  %295 = vmatpush1.xpose.msra.mxu0 0.0
  %296 = vmatprep.subr.mxu0 0.0
  %297 = vmatpush1.xpose.msra.mxu0 0.0
  %298 = vmatprep.subr.mxu0 0.0
  %299 = vmatpush1.xpose.msra.mxu0 0.0
  %300 = vmatprep.subr.mxu0 0.0
  %301 = vmatpush1.xpose.msra.mxu0 0.0
  %302 = vmatprep.subr.mxu0 0.0
  %303 = vmatpush1.xpose.msra.mxu0 0.0
  %304 = vmatprep.subr.mxu0 0.0
  %305 = vmatpush1.xpose.msra.mxu0 0.0
  %306 = vmatprep.subr.mxu0 0.0
  %307 = vmatpush1.xpose.msra.mxu0 0.0
  %308 = vmatprep.subr.mxu0 0.0
  %309 = vmatpush1.xpose.msra.mxu0 0.0
  %310 = vmatprep.subr.mxu0 0.0
  %311 = vmatpush1.xpose.msra.mxu0 0.0
  %312 = vmatprep.subr.mxu0 0.0
  %313 = vmatpush1.xpose.msra.mxu0 0.0
  %314 = vmatprep.subr.mxu0 0.0
  %315 = vmatpush1.xpose.msra.mxu0 0.0
  %316 = vmatprep.subr.mxu0 0.0
  %317 = vmatpush1.xpose.msra.mxu0 0.0
  %318 = vmatprep.subr.mxu0 0.0
  %319 = vmatpush1.xpose.msra.mxu0 0.0
  %320 = vmatprep.subr.mxu0 0.0
  %321 = vmatpush1.xpose.msra.mxu0 0.0
  %322 = vmatprep.subr.mxu0 0.0
  %323 = vmatpush1.xpose.msra.mxu0 0.0
  %324 = vmatprep.subr.mxu0 0.0
  %325 = vmatpush1.xpose.msra.mxu0 0.0
  %326 = vmatprep.subr.mxu0 0.0
  %327 = vmatpush1.xpose.msra.mxu0 0.0
  %328 = vmatprep.subr.mxu0 0.0
  %329 = vmatpush1.xpose.msra.mxu0 0.0
  %330 = vmatprep.mubr.f32.mxu0 0.0
  %331 = vmatmul.mubr.f32.gmra.mrb[0].mxu0 %v262
  %v332 = vpop.f32.mrb[0].mxu0
  %v333 = vadd.f32 0.0, %v332
  %v334 = vpop.f32.mrb[0].mxu0
  %335 = vdwg.mxu0
  %v336 = vmul.f32 %v102, 0.25
  %v337 = vmul.f32 %v179, 0.25
  %v338 = vmul.f32 %v256, 0.25
  %v339 = vmul.f32 %v333, 0.25
  %v340 = vlaneseq
  %v341 = vshrl.u32 %v340, 7
  %v342 = vsub.s32 0, %v341
  %v343 = vrot.slane %v23, %v342
  %v344 = vlaneseq
  %v345 = vshrl.u32 %v344, 7
  %v346 = vsub.s32 0, %v345
  %v347 = vrot.slane %v24, %v346
  %v348 = vlaneseq
  %v349 = vshrl.u32 %v348, 7
  %v350 = vsub.s32 0, %v349
  %v351 = vrot.slane %v25, %v350
  %v352 = vlaneseq
  %v353 = vshrl.u32 %v352, 7
  %v354 = vsub.s32 0, %v353
  %v355 = vrot.slane %v26, %v354
  %v356 = vmul.f32 %v15, %v343
  %v357 = vmul.f32 %v16, %v347
  %v358 = vmul.f32 %v17, %v351
  %v359 = vmul.f32 %v18, %v355
  %v360 = vsel %vm30, %v356, 0.0
  %361 = vadd.xlane.f32.xlu0 %v360
  %v362 = vpop.xlane.xlu0 %361
  %v363 = vsel %vm30, %v357, 0.0
  %364 = vadd.xlane.f32.xlu0 %v363
  %v365 = vpop.xlane.xlu0 %364
  %v366 = vsel %vm30, %v358, 0.0
  %367 = vadd.xlane.f32.xlu0 %v366
  %v368 = vpop.xlane.xlu0 %367
  %v369 = vsel %vm30, %v359, 0.0
  %370 = vadd.xlane.f32.xlu0 %v369
  %v371 = vpop.xlane.xlu0 %370
  %v372 = vmul.f32 %v362, 0.25
  %v373 = vmul.f32 %v365, 0.25
  %v374 = vmul.f32 %v368, 0.25
  %v375 = vmul.f32 %v371, 0.25
  %vm376 = vcmask 64512
  %v377 = vsel %vm376, %v336, -inf
  %378 = vmax.xlane.f32.xlu0 %v377
  %v379 = vpop.xlane.xlu0 %378
  %v380 = vsel %vm376, %v337, -inf
  %381 = vmax.xlane.f32.xlu0 %v380
  %v382 = vpop.xlane.xlu0 %381
  %v383 = vsel %vm376, %v338, -inf
  %384 = vmax.xlane.f32.xlu0 %v383
  %v385 = vpop.xlane.xlu0 %384
  %v386 = vsel %vm376, %v339, -inf
  %387 = vmax.xlane.f32.xlu0 %v386
  %v388 = vpop.xlane.xlu0 %387
  %v389 = vmax.f32 %v379, %v372
  %v390 = vmax.f32 %v382, %v373
  %v391 = vmax.f32 %v385, %v374
  %v392 = vmax.f32 %v388, %v375
  %v393 = vsub.f32 %v336, %v389
  %v394 = vsub.f32 %v337, %v390
  %v395 = vsub.f32 %v338, %v391
  %v396 = vsub.f32 %v339, %v392
  %v397 = vmul.f32 %v393, 1.442695
  %v398 = vpow.pop %v397
  %v399 = vmul.f32 %v394, 1.442695
  %v400 = vpow.pop %v399
  %v401 = vmul.f32 %v395, 1.442695
  %v402 = vpow.pop %v401
  %v403 = vmul.f32 %v396, 1.442695
  %v404 = vpow.pop %v403
  %v405 = vsub.f32 %v372, %v389
  %v406 = vsub.f32 %v373, %v390
  %v407 = vsub.f32 %v374, %v391
  %v408 = vsub.f32 %v375, %v392
  %v409 = vmul.f32 %v405, 1.442695
  %v410 = vpow.pop %v409
  %v411 = vmul.f32 %v406, 1.442695
  %v412 = vpow.pop %v411
  %v413 = vmul.f32 %v407, 1.442695
  %v414 = vpow.pop %v413
  %v415 = vmul.f32 %v408, 1.442695
  %v416 = vpow.pop %v415
  %v417 = vsel %vm376, %v398, 0.0
  %418 = vadd.xlane.f32.xlu0 %v417
  %v419 = vpop.xlane.xlu0 %418
  %v420 = vsel %vm376, %v400, 0.0
  %421 = vadd.xlane.f32.xlu0 %v420
  %v422 = vpop.xlane.xlu0 %421
  %v423 = vsel %vm376, %v402, 0.0
  %424 = vadd.xlane.f32.xlu0 %v423
  %v425 = vpop.xlane.xlu0 %424
  %v426 = vsel %vm376, %v404, 0.0
  %427 = vadd.xlane.f32.xlu0 %v426
  %v428 = vpop.xlane.xlu0 %427
  %v429 = vadd.f32 %v419, %v410
  %v430 = vadd.f32 %v422, %v412
  %v431 = vadd.f32 %v425, %v414
  %v432 = vadd.f32 %v428, %v416
  %v433 = vrcp.pop %v429
  %v434 = vrcp.pop %v430
  %v435 = vrcp.pop %v431
  %v436 = vrcp.pop %v432
  %v437 = vmul.f32 %v410, %v343
  %v438 = vmul.f32 %v412, %v347
  %v439 = vmul.f32 %v414, %v351
  %v440 = vmul.f32 %v416, %v355
  %441 = vrot.lane.b32.xlu0 %v15, 64
  %v442 = vpop.permute.xlu0 %441
  %v445 = vsel %vm376, %v398, 0
  %447 = vmatprep.subr.mxu0 0.0
  %448 = vmatpush1.msra.mxu0 %v442
  %449 = vmatprep.subr.mxu0 0.0
  %450 = vmatpush1.msra.mxu0 0.0
  %451 = vmatprep.subr.mxu0 0.0
  %452 = vmatpush1.msra.mxu0 0.0
  %453 = vmatprep.subr.mxu0 0.0
  %454 = vmatpush1.msra.mxu0 0.0
  %455 = vmatprep.subr.mxu0 0.0
  %456 = vmatpush1.msra.mxu0 0.0
  %457 = vmatprep.subr.mxu0 0.0
  %458 = vmatpush1.msra.mxu0 0.0
  %459 = vmatprep.subr.mxu0 0.0
  %460 = vmatpush1.msra.mxu0 0.0
  %461 = vmatprep.subr.mxu0 0.0
  %462 = vmatpush1.msra.mxu0 0.0
  %463 = vmatprep.subr.mxu0 0.0
  %464 = vmatpush1.msra.mxu0 0.0
  %465 = vmatprep.subr.mxu0 0.0
  %466 = vmatpush1.msra.mxu0 0.0
  %467 = vmatprep.subr.mxu0 0.0
  %468 = vmatpush1.msra.mxu0 0.0
  %469 = vmatprep.subr.mxu0 0.0
  %470 = vmatpush1.msra.mxu0 0.0
  %471 = vmatprep.subr.mxu0 0.0
  %472 = vmatpush1.msra.mxu0 0.0
  %473 = vmatprep.subr.mxu0 0.0
  %474 = vmatpush1.msra.mxu0 0.0
  %475 = vmatprep.subr.mxu0 0.0
  %476 = vmatpush1.msra.mxu0 0.0
  %477 = vmatprep.subr.mxu0 0.0
  %478 = vmatpush1.msra.mxu0 0.0
  %479 = vmatprep.subr.mxu0 0.0
  %480 = vmatpush1.msra.mxu0 0.0
  %481 = vmatprep.subr.mxu0 0.0
  %482 = vmatpush1.msra.mxu0 0.0
  %483 = vmatprep.subr.mxu0 0.0
  %484 = vmatpush1.msra.mxu0 0.0
  %485 = vmatprep.subr.mxu0 0.0
  %486 = vmatpush1.msra.mxu0 0.0
  %487 = vmatprep.subr.mxu0 0.0
  %488 = vmatpush1.msra.mxu0 0.0
  %489 = vmatprep.subr.mxu0 0.0
  %490 = vmatpush1.msra.mxu0 0.0
  %491 = vmatprep.subr.mxu0 0.0
  %492 = vmatpush1.msra.mxu0 0.0
  %493 = vmatprep.subr.mxu0 0.0
  %494 = vmatpush1.msra.mxu0 0.0
  %495 = vmatprep.subr.mxu0 0.0
  %496 = vmatpush1.msra.mxu0 0.0
  %497 = vmatprep.subr.mxu0 0.0
  %498 = vmatpush1.msra.mxu0 0.0
  %499 = vmatprep.subr.mxu0 0.0
  %500 = vmatpush1.msra.mxu0 0.0
  %501 = vmatprep.subr.mxu0 0.0
  %502 = vmatpush1.msra.mxu0 0.0
  %503 = vmatprep.subr.mxu0 0.0
  %504 = vmatpush1.msra.mxu0 0.0
  %505 = vmatprep.subr.mxu0 0.0
  %506 = vmatpush1.msra.mxu0 0.0
  %507 = vmatprep.subr.mxu0 0.0
  %508 = vmatpush1.msra.mxu0 0.0
  %509 = vmatprep.subr.mxu0 0.0
  %510 = vmatpush1.msra.mxu0 0.0
  %511 = vmatprep.mubr.f32.mxu0 0.0
  %512 = vmatmul.mubr.f32.gmra.mrb[0].mxu0 %v445
  %v513 = vpop.f32.mrb[0].mxu0
  %v514 = vadd.f32 %v437, %v513
  %v515 = vpop.f32.mrb[0].mxu0
  %516 = vdwg.mxu0
  %517 = vrot.lane.b32.xlu0 %v16, 64
  %v518 = vpop.permute.xlu0 %517
  %v521 = vsel %vm376, %v400, 0
  %523 = vmatprep.subr.mxu0 0.0
  %524 = vmatpush1.msra.mxu0 %v518
  %525 = vmatprep.subr.mxu0 0.0
  %526 = vmatpush1.msra.mxu0 0.0
  %527 = vmatprep.subr.mxu0 0.0
  %528 = vmatpush1.msra.mxu0 0.0
  %529 = vmatprep.subr.mxu0 0.0
  %530 = vmatpush1.msra.mxu0 0.0
  %531 = vmatprep.subr.mxu0 0.0
  %532 = vmatpush1.msra.mxu0 0.0
  %533 = vmatprep.subr.mxu0 0.0
  %534 = vmatpush1.msra.mxu0 0.0
  %535 = vmatprep.subr.mxu0 0.0
  %536 = vmatpush1.msra.mxu0 0.0
  %537 = vmatprep.subr.mxu0 0.0
  %538 = vmatpush1.msra.mxu0 0.0
  %539 = vmatprep.subr.mxu0 0.0
  %540 = vmatpush1.msra.mxu0 0.0
  %541 = vmatprep.subr.mxu0 0.0
  %542 = vmatpush1.msra.mxu0 0.0
  %543 = vmatprep.subr.mxu0 0.0
  %544 = vmatpush1.msra.mxu0 0.0
  %545 = vmatprep.subr.mxu0 0.0
  %546 = vmatpush1.msra.mxu0 0.0
  %547 = vmatprep.subr.mxu0 0.0
  %548 = vmatpush1.msra.mxu0 0.0
  %549 = vmatprep.subr.mxu0 0.0
  %550 = vmatpush1.msra.mxu0 0.0
  %551 = vmatprep.subr.mxu0 0.0
  %552 = vmatpush1.msra.mxu0 0.0
  %553 = vmatprep.subr.mxu0 0.0
  %554 = vmatpush1.msra.mxu0 0.0
  %555 = vmatprep.subr.mxu0 0.0
  %556 = vmatpush1.msra.mxu0 0.0
  %557 = vmatprep.subr.mxu0 0.0
  %558 = vmatpush1.msra.mxu0 0.0
  %559 = vmatprep.subr.mxu0 0.0
  %560 = vmatpush1.msra.mxu0 0.0
  %561 = vmatprep.subr.mxu0 0.0
  %562 = vmatpush1.msra.mxu0 0.0
  %563 = vmatprep.subr.mxu0 0.0
  %564 = vmatpush1.msra.mxu0 0.0
  %565 = vmatprep.subr.mxu0 0.0
  %566 = vmatpush1.msra.mxu0 0.0
  %567 = vmatprep.subr.mxu0 0.0
  %568 = vmatpush1.msra.mxu0 0.0
  %569 = vmatprep.subr.mxu0 0.0
  %570 = vmatpush1.msra.mxu0 0.0
  %571 = vmatprep.subr.mxu0 0.0
  %572 = vmatpush1.msra.mxu0 0.0
  %573 = vmatprep.subr.mxu0 0.0
  %574 = vmatpush1.msra.mxu0 0.0
  %575 = vmatprep.subr.mxu0 0.0
  %576 = vmatpush1.msra.mxu0 0.0
  %577 = vmatprep.subr.mxu0 0.0
  %578 = vmatpush1.msra.mxu0 0.0
  %579 = vmatprep.subr.mxu0 0.0
  %580 = vmatpush1.msra.mxu0 0.0
  %581 = vmatprep.subr.mxu0 0.0
  %582 = vmatpush1.msra.mxu0 0.0
  %583 = vmatprep.subr.mxu0 0.0
  %584 = vmatpush1.msra.mxu0 0.0
  %585 = vmatprep.subr.mxu0 0.0
  %586 = vmatpush1.msra.mxu0 0.0
  %587 = vmatprep.mubr.f32.mxu0 0.0
  %588 = vmatmul.mubr.f32.gmra.mrb[0].mxu0 %v521
  %v589 = vpop.f32.mrb[0].mxu0
  %v590 = vadd.f32 %v438, %v589
  %v591 = vpop.f32.mrb[0].mxu0
  %592 = vdwg.mxu0
  %593 = vrot.lane.b32.xlu0 %v17, 64
  %v594 = vpop.permute.xlu0 %593
  %v597 = vsel %vm376, %v402, 0
  %599 = vmatprep.subr.mxu0 0.0
  %600 = vmatpush1.msra.mxu0 %v594
  %601 = vmatprep.subr.mxu0 0.0
  %602 = vmatpush1.msra.mxu0 0.0
  %603 = vmatprep.subr.mxu0 0.0
  %604 = vmatpush1.msra.mxu0 0.0
  %605 = vmatprep.subr.mxu0 0.0
  %606 = vmatpush1.msra.mxu0 0.0
  %607 = vmatprep.subr.mxu0 0.0
  %608 = vmatpush1.msra.mxu0 0.0
  %609 = vmatprep.subr.mxu0 0.0
  %610 = vmatpush1.msra.mxu0 0.0
  %611 = vmatprep.subr.mxu0 0.0
  %612 = vmatpush1.msra.mxu0 0.0
  %613 = vmatprep.subr.mxu0 0.0
  %614 = vmatpush1.msra.mxu0 0.0
  %615 = vmatprep.subr.mxu0 0.0
  %616 = vmatpush1.msra.mxu0 0.0
  %617 = vmatprep.subr.mxu0 0.0
  %618 = vmatpush1.msra.mxu0 0.0
  %619 = vmatprep.subr.mxu0 0.0
  %620 = vmatpush1.msra.mxu0 0.0
  %621 = vmatprep.subr.mxu0 0.0
  %622 = vmatpush1.msra.mxu0 0.0
  %623 = vmatprep.subr.mxu0 0.0
  %624 = vmatpush1.msra.mxu0 0.0
  %625 = vmatprep.subr.mxu0 0.0
  %626 = vmatpush1.msra.mxu0 0.0
  %627 = vmatprep.subr.mxu0 0.0
  %628 = vmatpush1.msra.mxu0 0.0
  %629 = vmatprep.subr.mxu0 0.0
  %630 = vmatpush1.msra.mxu0 0.0
  %631 = vmatprep.subr.mxu0 0.0
  %632 = vmatpush1.msra.mxu0 0.0
  %633 = vmatprep.subr.mxu0 0.0
  %634 = vmatpush1.msra.mxu0 0.0
  %635 = vmatprep.subr.mxu0 0.0
  %636 = vmatpush1.msra.mxu0 0.0
  %637 = vmatprep.subr.mxu0 0.0
  %638 = vmatpush1.msra.mxu0 0.0
  %639 = vmatprep.subr.mxu0 0.0
  %640 = vmatpush1.msra.mxu0 0.0
  %641 = vmatprep.subr.mxu0 0.0
  %642 = vmatpush1.msra.mxu0 0.0
  %643 = vmatprep.subr.mxu0 0.0
  %644 = vmatpush1.msra.mxu0 0.0
  %645 = vmatprep.subr.mxu0 0.0
  %646 = vmatpush1.msra.mxu0 0.0
  %647 = vmatprep.subr.mxu0 0.0
  %648 = vmatpush1.msra.mxu0 0.0
  %649 = vmatprep.subr.mxu0 0.0
  %650 = vmatpush1.msra.mxu0 0.0
  %651 = vmatprep.subr.mxu0 0.0
  %652 = vmatpush1.msra.mxu0 0.0
  %653 = vmatprep.subr.mxu0 0.0
  %654 = vmatpush1.msra.mxu0 0.0
  %655 = vmatprep.subr.mxu0 0.0
  %656 = vmatpush1.msra.mxu0 0.0
  %657 = vmatprep.subr.mxu0 0.0
  %658 = vmatpush1.msra.mxu0 0.0
  %659 = vmatprep.subr.mxu0 0.0
  %660 = vmatpush1.msra.mxu0 0.0
  %661 = vmatprep.subr.mxu0 0.0
  %662 = vmatpush1.msra.mxu0 0.0
  %663 = vmatprep.mubr.f32.mxu0 0.0
  %664 = vmatmul.mubr.f32.gmra.mrb[0].mxu0 %v597
  %v665 = vpop.f32.mrb[0].mxu0
  %v666 = vadd.f32 %v439, %v665
  %v667 = vpop.f32.mrb[0].mxu0
  %668 = vdwg.mxu0
  %669 = vrot.lane.b32.xlu0 %v18, 64
  %v670 = vpop.permute.xlu0 %669
  %v673 = vsel %vm376, %v404, 0
  %675 = vmatprep.subr.mxu0 0.0
  %676 = vmatpush1.msra.mxu0 %v670
  %677 = vmatprep.subr.mxu0 0.0
  %678 = vmatpush1.msra.mxu0 0.0
  %679 = vmatprep.subr.mxu0 0.0
  %680 = vmatpush1.msra.mxu0 0.0
  %681 = vmatprep.subr.mxu0 0.0
  %682 = vmatpush1.msra.mxu0 0.0
  %683 = vmatprep.subr.mxu0 0.0
  %684 = vmatpush1.msra.mxu0 0.0
  %685 = vmatprep.subr.mxu0 0.0
  %686 = vmatpush1.msra.mxu0 0.0
  %687 = vmatprep.subr.mxu0 0.0
  %688 = vmatpush1.msra.mxu0 0.0
  %689 = vmatprep.subr.mxu0 0.0
  %690 = vmatpush1.msra.mxu0 0.0
  %691 = vmatprep.subr.mxu0 0.0
  %692 = vmatpush1.msra.mxu0 0.0
  %693 = vmatprep.subr.mxu0 0.0
  %694 = vmatpush1.msra.mxu0 0.0
  %695 = vmatprep.subr.mxu0 0.0
  %696 = vmatpush1.msra.mxu0 0.0
  %697 = vmatprep.subr.mxu0 0.0
  %698 = vmatpush1.msra.mxu0 0.0
  %699 = vmatprep.subr.mxu0 0.0
  %700 = vmatpush1.msra.mxu0 0.0
  %701 = vmatprep.subr.mxu0 0.0
  %702 = vmatpush1.msra.mxu0 0.0
  %703 = vmatprep.subr.mxu0 0.0
  %704 = vmatpush1.msra.mxu0 0.0
  %705 = vmatprep.subr.mxu0 0.0
  %706 = vmatpush1.msra.mxu0 0.0
  %707 = vmatprep.subr.mxu0 0.0
  %708 = vmatpush1.msra.mxu0 0.0
  %709 = vmatprep.subr.mxu0 0.0
  %710 = vmatpush1.msra.mxu0 0.0
  %711 = vmatprep.subr.mxu0 0.0
  %712 = vmatpush1.msra.mxu0 0.0
  %713 = vmatprep.subr.mxu0 0.0
  %714 = vmatpush1.msra.mxu0 0.0
  %715 = vmatprep.subr.mxu0 0.0
  %716 = vmatpush1.msra.mxu0 0.0
  %717 = vmatprep.subr.mxu0 0.0
  %718 = vmatpush1.msra.mxu0 0.0
  %719 = vmatprep.subr.mxu0 0.0
  %720 = vmatpush1.msra.mxu0 0.0
  %721 = vmatprep.subr.mxu0 0.0
  %722 = vmatpush1.msra.mxu0 0.0
  %723 = vmatprep.subr.mxu0 0.0
  %724 = vmatpush1.msra.mxu0 0.0
  %725 = vmatprep.subr.mxu0 0.0
  %726 = vmatpush1.msra.mxu0 0.0
  %727 = vmatprep.subr.mxu0 0.0
  %728 = vmatpush1.msra.mxu0 0.0
  %729 = vmatprep.subr.mxu0 0.0
  %730 = vmatpush1.msra.mxu0 0.0
  %731 = vmatprep.subr.mxu0 0.0
  %732 = vmatpush1.msra.mxu0 0.0
  %733 = vmatprep.subr.mxu0 0.0
  %734 = vmatpush1.msra.mxu0 0.0
  %735 = vmatprep.subr.mxu0 0.0
  %736 = vmatpush1.msra.mxu0 0.0
  %737 = vmatprep.subr.mxu0 0.0
  %738 = vmatpush1.msra.mxu0 0.0
  %739 = vmatprep.mubr.f32.mxu0 0.0
  %740 = vmatmul.mubr.f32.gmra.mrb[0].mxu0 %v673
  %v741 = vpop.f32.mrb[0].mxu0
  %v742 = vadd.f32 %v440, %v741
  %v743 = vpop.f32.mrb[0].mxu0
  %744 = vdwg.mxu0
  %v745 = vmul.f32 %v514, %v433
  %v746 = vmul.f32 %v590, %v434
  %v747 = vmul.f32 %v666, %v435
  %v748 = vmul.f32 %v742, %v436
  %749 = vrot.lane.b32.xlu0 %v15, 112
  %v750 = vpop.permute.xlu0 %749
  %751 = vrot.lane.b32.xlu0 %v15, 80
  %v752 = vpop.permute.xlu0 %751
  %v753 = vsel %vm30, %v750, 0
  %v755 = vsel %vm30, %v752, 0
  %757 = vmatprep.subr.mxu0 0.0
  %758 = vmatpush1.xpose.msra.mxu0 %v755
  %759 = vmatprep.subr.mxu0 0.0
  %760 = vmatpush1.xpose.msra.mxu0 0.0
  %761 = vmatprep.subr.mxu0 0.0
  %762 = vmatpush1.xpose.msra.mxu0 0.0
  %763 = vmatprep.subr.mxu0 0.0
  %764 = vmatpush1.xpose.msra.mxu0 0.0
  %765 = vmatprep.subr.mxu0 0.0
  %766 = vmatpush1.xpose.msra.mxu0 0.0
  %767 = vmatprep.subr.mxu0 0.0
  %768 = vmatpush1.xpose.msra.mxu0 0.0
  %769 = vmatprep.subr.mxu0 0.0
  %770 = vmatpush1.xpose.msra.mxu0 0.0
  %771 = vmatprep.subr.mxu0 0.0
  %772 = vmatpush1.xpose.msra.mxu0 0.0
  %773 = vmatprep.subr.mxu0 0.0
  %774 = vmatpush1.xpose.msra.mxu0 0.0
  %775 = vmatprep.subr.mxu0 0.0
  %776 = vmatpush1.xpose.msra.mxu0 0.0
  %777 = vmatprep.subr.mxu0 0.0
  %778 = vmatpush1.xpose.msra.mxu0 0.0
  %779 = vmatprep.subr.mxu0 0.0
  %780 = vmatpush1.xpose.msra.mxu0 0.0
  %781 = vmatprep.subr.mxu0 0.0
  %782 = vmatpush1.xpose.msra.mxu0 0.0
  %783 = vmatprep.subr.mxu0 0.0
  %784 = vmatpush1.xpose.msra.mxu0 0.0
  %785 = vmatprep.subr.mxu0 0.0
  %786 = vmatpush1.xpose.msra.mxu0 0.0
  %787 = vmatprep.subr.mxu0 0.0
  %788 = vmatpush1.xpose.msra.mxu0 0.0
  %789 = vmatprep.subr.mxu0 0.0
  %790 = vmatpush1.xpose.msra.mxu0 0.0
  %791 = vmatprep.subr.mxu0 0.0
  %792 = vmatpush1.xpose.msra.mxu0 0.0
  %793 = vmatprep.subr.mxu0 0.0
  %794 = vmatpush1.xpose.msra.mxu0 0.0
  %795 = vmatprep.subr.mxu0 0.0
  %796 = vmatpush1.xpose.msra.mxu0 0.0
  %797 = vmatprep.subr.mxu0 0.0
  %798 = vmatpush1.xpose.msra.mxu0 0.0
  %799 = vmatprep.subr.mxu0 0.0
  %800 = vmatpush1.xpose.msra.mxu0 0.0
  %801 = vmatprep.subr.mxu0 0.0
  %802 = vmatpush1.xpose.msra.mxu0 0.0
  %803 = vmatprep.subr.mxu0 0.0
  %804 = vmatpush1.xpose.msra.mxu0 0.0
  %805 = vmatprep.subr.mxu0 0.0
  %806 = vmatpush1.xpose.msra.mxu0 0.0
  %807 = vmatprep.subr.mxu0 0.0
  %808 = vmatpush1.xpose.msra.mxu0 0.0
  %809 = vmatprep.subr.mxu0 0.0
  %810 = vmatpush1.xpose.msra.mxu0 0.0
  %811 = vmatprep.subr.mxu0 0.0
  %812 = vmatpush1.xpose.msra.mxu0 0.0
  %813 = vmatprep.subr.mxu0 0.0
  %814 = vmatpush1.xpose.msra.mxu0 0.0
  %815 = vmatprep.subr.mxu0 0.0
  %816 = vmatpush1.xpose.msra.mxu0 0.0
  %817 = vmatprep.subr.mxu0 0.0
  %818 = vmatpush1.xpose.msra.mxu0 0.0
  %819 = vmatprep.subr.mxu0 0.0
  %820 = vmatpush1.xpose.msra.mxu0 0.0
  %821 = vmatprep.mubr.f32.mxu0 0.0
  %822 = vmatmul.mubr.f32.gmra.mrb[0].mxu0 %v753
  %v823 = vpop.f32.mrb[0].mxu0
  %v824 = vadd.f32 0.0, %v823
  %v825 = vpop.f32.mrb[0].mxu0
  %826 = vdwg.mxu0
  %827 = vrot.lane.b32.xlu0 %v16, 112
  %v828 = vpop.permute.xlu0 %827
  %829 = vrot.lane.b32.xlu0 %v16, 80
  %v830 = vpop.permute.xlu0 %829
  %v831 = vsel %vm30, %v828, 0
  %v833 = vsel %vm30, %v830, 0
  %835 = vmatprep.subr.mxu0 0.0
  %836 = vmatpush1.xpose.msra.mxu0 %v833
  %837 = vmatprep.subr.mxu0 0.0
  %838 = vmatpush1.xpose.msra.mxu0 0.0
  %839 = vmatprep.subr.mxu0 0.0
  %840 = vmatpush1.xpose.msra.mxu0 0.0
  %841 = vmatprep.subr.mxu0 0.0
  %842 = vmatpush1.xpose.msra.mxu0 0.0
  %843 = vmatprep.subr.mxu0 0.0
  %844 = vmatpush1.xpose.msra.mxu0 0.0
  %845 = vmatprep.subr.mxu0 0.0
  %846 = vmatpush1.xpose.msra.mxu0 0.0
  %847 = vmatprep.subr.mxu0 0.0
  %848 = vmatpush1.xpose.msra.mxu0 0.0
  %849 = vmatprep.subr.mxu0 0.0
  %850 = vmatpush1.xpose.msra.mxu0 0.0
  %851 = vmatprep.subr.mxu0 0.0
  %852 = vmatpush1.xpose.msra.mxu0 0.0
  %853 = vmatprep.subr.mxu0 0.0
  %854 = vmatpush1.xpose.msra.mxu0 0.0
  %855 = vmatprep.subr.mxu0 0.0
  %856 = vmatpush1.xpose.msra.mxu0 0.0
  %857 = vmatprep.subr.mxu0 0.0
  %858 = vmatpush1.xpose.msra.mxu0 0.0
  %859 = vmatprep.subr.mxu0 0.0
  %860 = vmatpush1.xpose.msra.mxu0 0.0
  %861 = vmatprep.subr.mxu0 0.0
  %862 = vmatpush1.xpose.msra.mxu0 0.0
  %863 = vmatprep.subr.mxu0 0.0
  %864 = vmatpush1.xpose.msra.mxu0 0.0
  %865 = vmatprep.subr.mxu0 0.0
  %866 = vmatpush1.xpose.msra.mxu0 0.0
  %867 = vmatprep.subr.mxu0 0.0
  %868 = vmatpush1.xpose.msra.mxu0 0.0
  %869 = vmatprep.subr.mxu0 0.0
  %870 = vmatpush1.xpose.msra.mxu0 0.0
  %871 = vmatprep.subr.mxu0 0.0
  %872 = vmatpush1.xpose.msra.mxu0 0.0
  %873 = vmatprep.subr.mxu0 0.0
  %874 = vmatpush1.xpose.msra.mxu0 0.0
  %875 = vmatprep.subr.mxu0 0.0
  %876 = vmatpush1.xpose.msra.mxu0 0.0
  %877 = vmatprep.subr.mxu0 0.0
  %878 = vmatpush1.xpose.msra.mxu0 0.0
  %879 = vmatprep.subr.mxu0 0.0
  %880 = vmatpush1.xpose.msra.mxu0 0.0
  %881 = vmatprep.subr.mxu0 0.0
  %882 = vmatpush1.xpose.msra.mxu0 0.0
  %883 = vmatprep.subr.mxu0 0.0
  %884 = vmatpush1.xpose.msra.mxu0 0.0
  %885 = vmatprep.subr.mxu0 0.0
  %886 = vmatpush1.xpose.msra.mxu0 0.0
  %887 = vmatprep.subr.mxu0 0.0
  %888 = vmatpush1.xpose.msra.mxu0 0.0
  %889 = vmatprep.subr.mxu0 0.0
  %890 = vmatpush1.xpose.msra.mxu0 0.0
  %891 = vmatprep.subr.mxu0 0.0
  %892 = vmatpush1.xpose.msra.mxu0 0.0
  %893 = vmatprep.subr.mxu0 0.0
  %894 = vmatpush1.xpose.msra.mxu0 0.0
  %895 = vmatprep.subr.mxu0 0.0
  %896 = vmatpush1.xpose.msra.mxu0 0.0
  %897 = vmatprep.subr.mxu0 0.0
  %898 = vmatpush1.xpose.msra.mxu0 0.0
  %899 = vmatprep.mubr.f32.mxu0 0.0
  %900 = vmatmul.mubr.f32.gmra.mrb[0].mxu0 %v831
  %v901 = vpop.f32.mrb[0].mxu0
  %v902 = vadd.f32 0.0, %v901
  %v903 = vpop.f32.mrb[0].mxu0
  %904 = vdwg.mxu0
  %905 = vrot.lane.b32.xlu0 %v17, 112
  %v906 = vpop.permute.xlu0 %905
  %907 = vrot.lane.b32.xlu0 %v17, 80
  %v908 = vpop.permute.xlu0 %907
  %v909 = vsel %vm30, %v906, 0
  %v911 = vsel %vm30, %v908, 0
  %913 = vmatprep.subr.mxu0 0.0
  %914 = vmatpush1.xpose.msra.mxu0 %v911
  %915 = vmatprep.subr.mxu0 0.0
  %916 = vmatpush1.xpose.msra.mxu0 0.0
  %917 = vmatprep.subr.mxu0 0.0
  %918 = vmatpush1.xpose.msra.mxu0 0.0
  %919 = vmatprep.subr.mxu0 0.0
  %920 = vmatpush1.xpose.msra.mxu0 0.0
  %921 = vmatprep.subr.mxu0 0.0
  %922 = vmatpush1.xpose.msra.mxu0 0.0
  %923 = vmatprep.subr.mxu0 0.0
  %924 = vmatpush1.xpose.msra.mxu0 0.0
  %925 = vmatprep.subr.mxu0 0.0
  %926 = vmatpush1.xpose.msra.mxu0 0.0
  %927 = vmatprep.subr.mxu0 0.0
  %928 = vmatpush1.xpose.msra.mxu0 0.0
  %929 = vmatprep.subr.mxu0 0.0
  %930 = vmatpush1.xpose.msra.mxu0 0.0
  %931 = vmatprep.subr.mxu0 0.0
  %932 = vmatpush1.xpose.msra.mxu0 0.0
  %933 = vmatprep.subr.mxu0 0.0
  %934 = vmatpush1.xpose.msra.mxu0 0.0
  %935 = vmatprep.subr.mxu0 0.0
  %936 = vmatpush1.xpose.msra.mxu0 0.0
  %937 = vmatprep.subr.mxu0 0.0
  %938 = vmatpush1.xpose.msra.mxu0 0.0
  %939 = vmatprep.subr.mxu0 0.0
  %940 = vmatpush1.xpose.msra.mxu0 0.0
  %941 = vmatprep.subr.mxu0 0.0
  %942 = vmatpush1.xpose.msra.mxu0 0.0
  %943 = vmatprep.subr.mxu0 0.0
  %944 = vmatpush1.xpose.msra.mxu0 0.0
  %945 = vmatprep.subr.mxu0 0.0
  %946 = vmatpush1.xpose.msra.mxu0 0.0
  %947 = vmatprep.subr.mxu0 0.0
  %948 = vmatpush1.xpose.msra.mxu0 0.0
  %949 = vmatprep.subr.mxu0 0.0
  %950 = vmatpush1.xpose.msra.mxu0 0.0
  %951 = vmatprep.subr.mxu0 0.0
  %952 = vmatpush1.xpose.msra.mxu0 0.0
  %953 = vmatprep.subr.mxu0 0.0
  %954 = vmatpush1.xpose.msra.mxu0 0.0
  %955 = vmatprep.subr.mxu0 0.0
  %956 = vmatpush1.xpose.msra.mxu0 0.0
  %957 = vmatprep.subr.mxu0 0.0
  %958 = vmatpush1.xpose.msra.mxu0 0.0
  %959 = vmatprep.subr.mxu0 0.0
  %960 = vmatpush1.xpose.msra.mxu0 0.0
  %961 = vmatprep.subr.mxu0 0.0
  %962 = vmatpush1.xpose.msra.mxu0 0.0
  %963 = vmatprep.subr.mxu0 0.0
  %964 = vmatpush1.xpose.msra.mxu0 0.0
  %965 = vmatprep.subr.mxu0 0.0
  %966 = vmatpush1.xpose.msra.mxu0 0.0
  %967 = vmatprep.subr.mxu0 0.0
  %968 = vmatpush1.xpose.msra.mxu0 0.0
  %969 = vmatprep.subr.mxu0 0.0
  %970 = vmatpush1.xpose.msra.mxu0 0.0
  %971 = vmatprep.subr.mxu0 0.0
  %972 = vmatpush1.xpose.msra.mxu0 0.0
  %973 = vmatprep.subr.mxu0 0.0
  %974 = vmatpush1.xpose.msra.mxu0 0.0
  %975 = vmatprep.subr.mxu0 0.0
  %976 = vmatpush1.xpose.msra.mxu0 0.0
  %977 = vmatprep.mubr.f32.mxu0 0.0
  %978 = vmatmul.mubr.f32.gmra.mrb[0].mxu0 %v909
  %v979 = vpop.f32.mrb[0].mxu0
  %v980 = vadd.f32 0.0, %v979
  %v981 = vpop.f32.mrb[0].mxu0
  %982 = vdwg.mxu0
  %983 = vrot.lane.b32.xlu0 %v18, 112
  %v984 = vpop.permute.xlu0 %983
  %985 = vrot.lane.b32.xlu0 %v18, 80
  %v986 = vpop.permute.xlu0 %985
  %v987 = vsel %vm30, %v984, 0
  %v989 = vsel %vm30, %v986, 0
  %991 = vmatprep.subr.mxu0 0.0
  %992 = vmatpush1.xpose.msra.mxu0 %v989
  %993 = vmatprep.subr.mxu0 0.0
  %994 = vmatpush1.xpose.msra.mxu0 0.0
  %995 = vmatprep.subr.mxu0 0.0
  %996 = vmatpush1.xpose.msra.mxu0 0.0
  %997 = vmatprep.subr.mxu0 0.0
  %998 = vmatpush1.xpose.msra.mxu0 0.0
  %999 = vmatprep.subr.mxu0 0.0
  %1000 = vmatpush1.xpose.msra.mxu0 0.0
  %1001 = vmatprep.subr.mxu0 0.0
  %1002 = vmatpush1.xpose.msra.mxu0 0.0
  %1003 = vmatprep.subr.mxu0 0.0
  %1004 = vmatpush1.xpose.msra.mxu0 0.0
  %1005 = vmatprep.subr.mxu0 0.0
  %1006 = vmatpush1.xpose.msra.mxu0 0.0
  %1007 = vmatprep.subr.mxu0 0.0
  %1008 = vmatpush1.xpose.msra.mxu0 0.0
  %1009 = vmatprep.subr.mxu0 0.0
  %1010 = vmatpush1.xpose.msra.mxu0 0.0
  %1011 = vmatprep.subr.mxu0 0.0
  %1012 = vmatpush1.xpose.msra.mxu0 0.0
  %1013 = vmatprep.subr.mxu0 0.0
  %1014 = vmatpush1.xpose.msra.mxu0 0.0
  %1015 = vmatprep.subr.mxu0 0.0
  %1016 = vmatpush1.xpose.msra.mxu0 0.0
  %1017 = vmatprep.subr.mxu0 0.0
  %1018 = vmatpush1.xpose.msra.mxu0 0.0
  %1019 = vmatprep.subr.mxu0 0.0
  %1020 = vmatpush1.xpose.msra.mxu0 0.0
  %1021 = vmatprep.subr.mxu0 0.0
  %1022 = vmatpush1.xpose.msra.mxu0 0.0
  %1023 = vmatprep.subr.mxu0 0.0
  %1024 = vmatpush1.xpose.msra.mxu0 0.0
  %1025 = vmatprep.subr.mxu0 0.0
  %1026 = vmatpush1.xpose.msra.mxu0 0.0
  %1027 = vmatprep.subr.mxu0 0.0
  %1028 = vmatpush1.xpose.msra.mxu0 0.0
  %1029 = vmatprep.subr.mxu0 0.0
  %1030 = vmatpush1.xpose.msra.mxu0 0.0
  %1031 = vmatprep.subr.mxu0 0.0
  %1032 = vmatpush1.xpose.msra.mxu0 0.0
  %1033 = vmatprep.subr.mxu0 0.0
  %1034 = vmatpush1.xpose.msra.mxu0 0.0
  %1035 = vmatprep.subr.mxu0 0.0
  %1036 = vmatpush1.xpose.msra.mxu0 0.0
  %1037 = vmatprep.subr.mxu0 0.0
  %1038 = vmatpush1.xpose.msra.mxu0 0.0
  %1039 = vmatprep.subr.mxu0 0.0
  %1040 = vmatpush1.xpose.msra.mxu0 0.0
  %1041 = vmatprep.subr.mxu0 0.0
  %1042 = vmatpush1.xpose.msra.mxu0 0.0
  %1043 = vmatprep.subr.mxu0 0.0
  %1044 = vmatpush1.xpose.msra.mxu0 0.0
  %1045 = vmatprep.subr.mxu0 0.0
  %1046 = vmatpush1.xpose.msra.mxu0 0.0
  %1047 = vmatprep.subr.mxu0 0.0
  %1048 = vmatpush1.xpose.msra.mxu0 0.0
  %1049 = vmatprep.subr.mxu0 0.0
  %1050 = vmatpush1.xpose.msra.mxu0 0.0
  %1051 = vmatprep.subr.mxu0 0.0
  %1052 = vmatpush1.xpose.msra.mxu0 0.0
  %1053 = vmatprep.subr.mxu0 0.0
  %1054 = vmatpush1.xpose.msra.mxu0 0.0
  %1055 = vmatprep.mubr.f32.mxu0 0.0
  %1056 = vmatmul.mubr.f32.gmra.mrb[0].mxu0 %v987
  %v1057 = vpop.f32.mrb[0].mxu0
  %v1058 = vadd.f32 0.0, %v1057
  %v1059 = vpop.f32.mrb[0].mxu0
  %1060 = vdwg.mxu0
  %v1061 = vmul.f32 %v824, 0.25
  %v1062 = vmul.f32 %v902, 0.25
  %v1063 = vmul.f32 %v980, 0.25
  %v1064 = vmul.f32 %v1058, 0.25
  %1069 = vrot.lane.b32.xlu0 %v356, 112
  %v1070 = vpop.permute.xlu0 %1069
  %1071 = vrot.lane.b32.xlu0 %v357, 112
  %v1072 = vpop.permute.xlu0 %1071
  %1073 = vrot.lane.b32.xlu0 %v358, 112
  %v1074 = vpop.permute.xlu0 %1073
  %1075 = vrot.lane.b32.xlu0 %v359, 112
  %v1076 = vpop.permute.xlu0 %1075
  %v1081 = vsel %vm30, %v1070, 0.0
  %1082 = vadd.xlane.f32.xlu0 %v1081
  %v1083 = vpop.xlane.xlu0 %1082
  %v1084 = vsel %vm30, %v1072, 0.0
  %1085 = vadd.xlane.f32.xlu0 %v1084
  %v1086 = vpop.xlane.xlu0 %1085
  %v1087 = vsel %vm30, %v1074, 0.0
  %1088 = vadd.xlane.f32.xlu0 %v1087
  %v1089 = vpop.xlane.xlu0 %1088
  %v1090 = vsel %vm30, %v1076, 0.0
  %1091 = vadd.xlane.f32.xlu0 %v1090
  %v1092 = vpop.xlane.xlu0 %1091
  %v1093 = vmul.f32 %v1083, 0.25
  %v1094 = vmul.f32 %v1086, 0.25
  %v1095 = vmul.f32 %v1089, 0.25
  %v1096 = vmul.f32 %v1092, 0.25
  %v1097 = vsel %vm376, %v1061, -inf
  %1098 = vmax.xlane.f32.xlu0 %v1097
  %v1099 = vpop.xlane.xlu0 %1098
  %v1100 = vsel %vm376, %v1062, -inf
  %1101 = vmax.xlane.f32.xlu0 %v1100
  %v1102 = vpop.xlane.xlu0 %1101
  %v1103 = vsel %vm376, %v1063, -inf
  %1104 = vmax.xlane.f32.xlu0 %v1103
  %v1105 = vpop.xlane.xlu0 %1104
  %v1106 = vsel %vm376, %v1064, -inf
  %1107 = vmax.xlane.f32.xlu0 %v1106
  %v1108 = vpop.xlane.xlu0 %1107
  %v1109 = vmax.f32 %v1099, %v1093
  %v1110 = vmax.f32 %v1102, %v1094
  %v1111 = vmax.f32 %v1105, %v1095
  %v1112 = vmax.f32 %v1108, %v1096
  %v1113 = vsub.f32 %v1061, %v1109
  %v1114 = vsub.f32 %v1062, %v1110
  %v1115 = vsub.f32 %v1063, %v1111
  %v1116 = vsub.f32 %v1064, %v1112
  %v1117 = vmul.f32 %v1113, 1.442695
  %v1118 = vpow.pop %v1117
  %v1119 = vmul.f32 %v1114, 1.442695
  %v1120 = vpow.pop %v1119
  %v1121 = vmul.f32 %v1115, 1.442695
  %v1122 = vpow.pop %v1121
  %v1123 = vmul.f32 %v1116, 1.442695
  %v1124 = vpow.pop %v1123
  %v1125 = vsub.f32 %v1093, %v1109
  %v1126 = vsub.f32 %v1094, %v1110
  %v1127 = vsub.f32 %v1095, %v1111
  %v1128 = vsub.f32 %v1096, %v1112
  %v1129 = vmul.f32 %v1125, 1.442695
  %v1130 = vpow.pop %v1129
  %v1131 = vmul.f32 %v1126, 1.442695
  %v1132 = vpow.pop %v1131
  %v1133 = vmul.f32 %v1127, 1.442695
  %v1134 = vpow.pop %v1133
  %v1135 = vmul.f32 %v1128, 1.442695
  %v1136 = vpow.pop %v1135
  %v1137 = vsel %vm376, %v1118, 0.0
  %1138 = vadd.xlane.f32.xlu0 %v1137
  %v1139 = vpop.xlane.xlu0 %1138
  %v1140 = vsel %vm376, %v1120, 0.0
  %1141 = vadd.xlane.f32.xlu0 %v1140
  %v1142 = vpop.xlane.xlu0 %1141
  %v1143 = vsel %vm376, %v1122, 0.0
  %1144 = vadd.xlane.f32.xlu0 %v1143
  %v1145 = vpop.xlane.xlu0 %1144
  %v1146 = vsel %vm376, %v1124, 0.0
  %1147 = vadd.xlane.f32.xlu0 %v1146
  %v1148 = vpop.xlane.xlu0 %1147
  %v1149 = vadd.f32 %v1139, %v1130
  %v1150 = vadd.f32 %v1142, %v1132
  %v1151 = vadd.f32 %v1145, %v1134
  %v1152 = vadd.f32 %v1148, %v1136
  %v1153 = vrcp.pop %v1149
  %v1154 = vrcp.pop %v1150
  %v1155 = vrcp.pop %v1151
  %v1156 = vrcp.pop %v1152
  %v1157 = vmul.f32 %v1130, %v343
  %v1158 = vmul.f32 %v1132, %v347
  %v1159 = vmul.f32 %v1134, %v351
  %v1160 = vmul.f32 %v1136, %v355
  %1161 = vrot.lane.b32.xlu0 %v15, 48
  %v1162 = vpop.permute.xlu0 %1161
  %1165 = vrot.lane.b32.xlu0 %v1157, 112
  %v1166 = vpop.permute.xlu0 %1165
  %v1169 = vsel %vm376, %v1118, 0
  %1171 = vmatprep.subr.mxu0 0.0
  %1172 = vmatpush1.msra.mxu0 %v1162
  %1173 = vmatprep.subr.mxu0 0.0
  %1174 = vmatpush1.msra.mxu0 0.0
  %1175 = vmatprep.subr.mxu0 0.0
  %1176 = vmatpush1.msra.mxu0 0.0
  %1177 = vmatprep.subr.mxu0 0.0
  %1178 = vmatpush1.msra.mxu0 0.0
  %1179 = vmatprep.subr.mxu0 0.0
  %1180 = vmatpush1.msra.mxu0 0.0
  %1181 = vmatprep.subr.mxu0 0.0
  %1182 = vmatpush1.msra.mxu0 0.0
  %1183 = vmatprep.subr.mxu0 0.0
  %1184 = vmatpush1.msra.mxu0 0.0
  %1185 = vmatprep.subr.mxu0 0.0
  %1186 = vmatpush1.msra.mxu0 0.0
  %1187 = vmatprep.subr.mxu0 0.0
  %1188 = vmatpush1.msra.mxu0 0.0
  %1189 = vmatprep.subr.mxu0 0.0
  %1190 = vmatpush1.msra.mxu0 0.0
  %1191 = vmatprep.subr.mxu0 0.0
  %1192 = vmatpush1.msra.mxu0 0.0
  %1193 = vmatprep.subr.mxu0 0.0
  %1194 = vmatpush1.msra.mxu0 0.0
  %1195 = vmatprep.subr.mxu0 0.0
  %1196 = vmatpush1.msra.mxu0 0.0
  %1197 = vmatprep.subr.mxu0 0.0
  %1198 = vmatpush1.msra.mxu0 0.0
  %1199 = vmatprep.subr.mxu0 0.0
  %1200 = vmatpush1.msra.mxu0 0.0
  %1201 = vmatprep.subr.mxu0 0.0
  %1202 = vmatpush1.msra.mxu0 0.0
  %1203 = vmatprep.subr.mxu0 0.0
  %1204 = vmatpush1.msra.mxu0 0.0
  %1205 = vmatprep.subr.mxu0 0.0
  %1206 = vmatpush1.msra.mxu0 0.0
  %1207 = vmatprep.subr.mxu0 0.0
  %1208 = vmatpush1.msra.mxu0 0.0
  %1209 = vmatprep.subr.mxu0 0.0
  %1210 = vmatpush1.msra.mxu0 0.0
  %1211 = vmatprep.subr.mxu0 0.0
  %1212 = vmatpush1.msra.mxu0 0.0
  %1213 = vmatprep.subr.mxu0 0.0
  %1214 = vmatpush1.msra.mxu0 0.0
  %1215 = vmatprep.subr.mxu0 0.0
  %1216 = vmatpush1.msra.mxu0 0.0
  %1217 = vmatprep.subr.mxu0 0.0
  %1218 = vmatpush1.msra.mxu0 0.0
  %1219 = vmatprep.subr.mxu0 0.0
  %1220 = vmatpush1.msra.mxu0 0.0
  %1221 = vmatprep.subr.mxu0 0.0
  %1222 = vmatpush1.msra.mxu0 0.0
  %1223 = vmatprep.subr.mxu0 0.0
  %1224 = vmatpush1.msra.mxu0 0.0
  %1225 = vmatprep.subr.mxu0 0.0
  %1226 = vmatpush1.msra.mxu0 0.0
  %1227 = vmatprep.subr.mxu0 0.0
  %1228 = vmatpush1.msra.mxu0 0.0
  %1229 = vmatprep.subr.mxu0 0.0
  %1230 = vmatpush1.msra.mxu0 0.0
  %1231 = vmatprep.subr.mxu0 0.0
  %1232 = vmatpush1.msra.mxu0 0.0
  %1233 = vmatprep.subr.mxu0 0.0
  %1234 = vmatpush1.msra.mxu0 0.0
  %1235 = vmatprep.mubr.f32.mxu0 0.0
  %1236 = vmatmul.mubr.f32.gmra.mrb[0].mxu0 %v1169
  %v1237 = vpop.f32.mrb[0].mxu0
  %v1238 = vadd.f32 %v1166, %v1237
  %v1239 = vpop.f32.mrb[0].mxu0
  %1240 = vdwg.mxu0
  %1241 = vrot.lane.b32.xlu0 %v16, 48
  %v1242 = vpop.permute.xlu0 %1241
  %1245 = vrot.lane.b32.xlu0 %v1158, 112
  %v1246 = vpop.permute.xlu0 %1245
  %v1249 = vsel %vm376, %v1120, 0
  %1251 = vmatprep.subr.mxu0 0.0
  %1252 = vmatpush1.msra.mxu0 %v1242
  %1253 = vmatprep.subr.mxu0 0.0
  %1254 = vmatpush1.msra.mxu0 0.0
  %1255 = vmatprep.subr.mxu0 0.0
  %1256 = vmatpush1.msra.mxu0 0.0
  %1257 = vmatprep.subr.mxu0 0.0
  %1258 = vmatpush1.msra.mxu0 0.0
  %1259 = vmatprep.subr.mxu0 0.0
  %1260 = vmatpush1.msra.mxu0 0.0
  %1261 = vmatprep.subr.mxu0 0.0
  %1262 = vmatpush1.msra.mxu0 0.0
  %1263 = vmatprep.subr.mxu0 0.0
  %1264 = vmatpush1.msra.mxu0 0.0
  %1265 = vmatprep.subr.mxu0 0.0
  %1266 = vmatpush1.msra.mxu0 0.0
  %1267 = vmatprep.subr.mxu0 0.0
  %1268 = vmatpush1.msra.mxu0 0.0
  %1269 = vmatprep.subr.mxu0 0.0
  %1270 = vmatpush1.msra.mxu0 0.0
  %1271 = vmatprep.subr.mxu0 0.0
  %1272 = vmatpush1.msra.mxu0 0.0
  %1273 = vmatprep.subr.mxu0 0.0
  %1274 = vmatpush1.msra.mxu0 0.0
  %1275 = vmatprep.subr.mxu0 0.0
  %1276 = vmatpush1.msra.mxu0 0.0
  %1277 = vmatprep.subr.mxu0 0.0
  %1278 = vmatpush1.msra.mxu0 0.0
  %1279 = vmatprep.subr.mxu0 0.0
  %1280 = vmatpush1.msra.mxu0 0.0
  %1281 = vmatprep.subr.mxu0 0.0
  %1282 = vmatpush1.msra.mxu0 0.0
  %1283 = vmatprep.subr.mxu0 0.0
  %1284 = vmatpush1.msra.mxu0 0.0
  %1285 = vmatprep.subr.mxu0 0.0
  %1286 = vmatpush1.msra.mxu0 0.0
  %1287 = vmatprep.subr.mxu0 0.0
  %1288 = vmatpush1.msra.mxu0 0.0
  %1289 = vmatprep.subr.mxu0 0.0
  %1290 = vmatpush1.msra.mxu0 0.0
  %1291 = vmatprep.subr.mxu0 0.0
  %1292 = vmatpush1.msra.mxu0 0.0
  %1293 = vmatprep.subr.mxu0 0.0
  %1294 = vmatpush1.msra.mxu0 0.0
  %1295 = vmatprep.subr.mxu0 0.0
  %1296 = vmatpush1.msra.mxu0 0.0
  %1297 = vmatprep.subr.mxu0 0.0
  %1298 = vmatpush1.msra.mxu0 0.0
  %1299 = vmatprep.subr.mxu0 0.0
  %1300 = vmatpush1.msra.mxu0 0.0
  %1301 = vmatprep.subr.mxu0 0.0
  %1302 = vmatpush1.msra.mxu0 0.0
  %1303 = vmatprep.subr.mxu0 0.0
  %1304 = vmatpush1.msra.mxu0 0.0
  %1305 = vmatprep.subr.mxu0 0.0
  %1306 = vmatpush1.msra.mxu0 0.0
  %1307 = vmatprep.subr.mxu0 0.0
  %1308 = vmatpush1.msra.mxu0 0.0
  %1309 = vmatprep.subr.mxu0 0.0
  %1310 = vmatpush1.msra.mxu0 0.0
  %1311 = vmatprep.subr.mxu0 0.0
  %1312 = vmatpush1.msra.mxu0 0.0
  %1313 = vmatprep.subr.mxu0 0.0
  %1314 = vmatpush1.msra.mxu0 0.0
  %1315 = vmatprep.mubr.f32.mxu0 0.0
  %1316 = vmatmul.mubr.f32.gmra.mrb[0].mxu0 %v1249
  %v1317 = vpop.f32.mrb[0].mxu0
  %v1318 = vadd.f32 %v1246, %v1317
  %v1319 = vpop.f32.mrb[0].mxu0
  %1320 = vdwg.mxu0
  %1321 = vrot.lane.b32.xlu0 %v17, 48
  %v1322 = vpop.permute.xlu0 %1321
  %1325 = vrot.lane.b32.xlu0 %v1159, 112
  %v1326 = vpop.permute.xlu0 %1325
  %v1329 = vsel %vm376, %v1122, 0
  %1331 = vmatprep.subr.mxu0 0.0
  %1332 = vmatpush1.msra.mxu0 %v1322
  %1333 = vmatprep.subr.mxu0 0.0
  %1334 = vmatpush1.msra.mxu0 0.0
  %1335 = vmatprep.subr.mxu0 0.0
  %1336 = vmatpush1.msra.mxu0 0.0
  %1337 = vmatprep.subr.mxu0 0.0
  %1338 = vmatpush1.msra.mxu0 0.0
  %1339 = vmatprep.subr.mxu0 0.0
  %1340 = vmatpush1.msra.mxu0 0.0
  %1341 = vmatprep.subr.mxu0 0.0
  %1342 = vmatpush1.msra.mxu0 0.0
  %1343 = vmatprep.subr.mxu0 0.0
  %1344 = vmatpush1.msra.mxu0 0.0
  %1345 = vmatprep.subr.mxu0 0.0
  %1346 = vmatpush1.msra.mxu0 0.0
  %1347 = vmatprep.subr.mxu0 0.0
  %1348 = vmatpush1.msra.mxu0 0.0
  %1349 = vmatprep.subr.mxu0 0.0
  %1350 = vmatpush1.msra.mxu0 0.0
  %1351 = vmatprep.subr.mxu0 0.0
  %1352 = vmatpush1.msra.mxu0 0.0
  %1353 = vmatprep.subr.mxu0 0.0
  %1354 = vmatpush1.msra.mxu0 0.0
  %1355 = vmatprep.subr.mxu0 0.0
  %1356 = vmatpush1.msra.mxu0 0.0
  %1357 = vmatprep.subr.mxu0 0.0
  %1358 = vmatpush1.msra.mxu0 0.0
  %1359 = vmatprep.subr.mxu0 0.0
  %1360 = vmatpush1.msra.mxu0 0.0
  %1361 = vmatprep.subr.mxu0 0.0
  %1362 = vmatpush1.msra.mxu0 0.0
  %1363 = vmatprep.subr.mxu0 0.0
  %1364 = vmatpush1.msra.mxu0 0.0
  %1365 = vmatprep.subr.mxu0 0.0
  %1366 = vmatpush1.msra.mxu0 0.0
  %1367 = vmatprep.subr.mxu0 0.0
  %1368 = vmatpush1.msra.mxu0 0.0
  %1369 = vmatprep.subr.mxu0 0.0
  %1370 = vmatpush1.msra.mxu0 0.0
  %1371 = vmatprep.subr.mxu0 0.0
  %1372 = vmatpush1.msra.mxu0 0.0
  %1373 = vmatprep.subr.mxu0 0.0
  %1374 = vmatpush1.msra.mxu0 0.0
  %1375 = vmatprep.subr.mxu0 0.0
  %1376 = vmatpush1.msra.mxu0 0.0
  %1377 = vmatprep.subr.mxu0 0.0
  %1378 = vmatpush1.msra.mxu0 0.0
  %1379 = vmatprep.subr.mxu0 0.0
  %1380 = vmatpush1.msra.mxu0 0.0
  %1381 = vmatprep.subr.mxu0 0.0
  %1382 = vmatpush1.msra.mxu0 0.0
  %1383 = vmatprep.subr.mxu0 0.0
  %1384 = vmatpush1.msra.mxu0 0.0
  %1385 = vmatprep.subr.mxu0 0.0
  %1386 = vmatpush1.msra.mxu0 0.0
  %1387 = vmatprep.subr.mxu0 0.0
  %1388 = vmatpush1.msra.mxu0 0.0
  %1389 = vmatprep.subr.mxu0 0.0
  %1390 = vmatpush1.msra.mxu0 0.0
  %1391 = vmatprep.subr.mxu0 0.0
  %1392 = vmatpush1.msra.mxu0 0.0
  %1393 = vmatprep.subr.mxu0 0.0
  %1394 = vmatpush1.msra.mxu0 0.0
  %1395 = vmatprep.mubr.f32.mxu0 0.0
  %1396 = vmatmul.mubr.f32.gmra.mrb[0].mxu0 %v1329
  %v1397 = vpop.f32.mrb[0].mxu0
  %v1398 = vadd.f32 %v1326, %v1397
  %v1399 = vpop.f32.mrb[0].mxu0
  %1400 = vdwg.mxu0
  %1401 = vrot.lane.b32.xlu0 %v18, 48
  %v1402 = vpop.permute.xlu0 %1401
  %1405 = vrot.lane.b32.xlu0 %v1160, 112
  %v1406 = vpop.permute.xlu0 %1405
  %v1409 = vsel %vm376, %v1124, 0
  %1411 = vmatprep.subr.mxu0 0.0
  %1412 = vmatpush1.msra.mxu0 %v1402
  %1413 = vmatprep.subr.mxu0 0.0
  %1414 = vmatpush1.msra.mxu0 0.0
  %1415 = vmatprep.subr.mxu0 0.0
  %1416 = vmatpush1.msra.mxu0 0.0
  %1417 = vmatprep.subr.mxu0 0.0
  %1418 = vmatpush1.msra.mxu0 0.0
  %1419 = vmatprep.subr.mxu0 0.0
  %1420 = vmatpush1.msra.mxu0 0.0
  %1421 = vmatprep.subr.mxu0 0.0
  %1422 = vmatpush1.msra.mxu0 0.0
  %1423 = vmatprep.subr.mxu0 0.0
  %1424 = vmatpush1.msra.mxu0 0.0
  %1425 = vmatprep.subr.mxu0 0.0
  %1426 = vmatpush1.msra.mxu0 0.0
  %1427 = vmatprep.subr.mxu0 0.0
  %1428 = vmatpush1.msra.mxu0 0.0
  %1429 = vmatprep.subr.mxu0 0.0
  %1430 = vmatpush1.msra.mxu0 0.0
  %1431 = vmatprep.subr.mxu0 0.0
  %1432 = vmatpush1.msra.mxu0 0.0
  %1433 = vmatprep.subr.mxu0 0.0
  %1434 = vmatpush1.msra.mxu0 0.0
  %1435 = vmatprep.subr.mxu0 0.0
  %1436 = vmatpush1.msra.mxu0 0.0
  %1437 = vmatprep.subr.mxu0 0.0
  %1438 = vmatpush1.msra.mxu0 0.0
  %1439 = vmatprep.subr.mxu0 0.0
  %1440 = vmatpush1.msra.mxu0 0.0
  %1441 = vmatprep.subr.mxu0 0.0
  %1442 = vmatpush1.msra.mxu0 0.0
  %1443 = vmatprep.subr.mxu0 0.0
  %1444 = vmatpush1.msra.mxu0 0.0
  %1445 = vmatprep.subr.mxu0 0.0
  %1446 = vmatpush1.msra.mxu0 0.0
  %1447 = vmatprep.subr.mxu0 0.0
  %1448 = vmatpush1.msra.mxu0 0.0
  %1449 = vmatprep.subr.mxu0 0.0
  %1450 = vmatpush1.msra.mxu0 0.0
  %1451 = vmatprep.subr.mxu0 0.0
  %1452 = vmatpush1.msra.mxu0 0.0
  %1453 = vmatprep.subr.mxu0 0.0
  %1454 = vmatpush1.msra.mxu0 0.0
  %1455 = vmatprep.subr.mxu0 0.0
  %1456 = vmatpush1.msra.mxu0 0.0
  %1457 = vmatprep.subr.mxu0 0.0
  %1458 = vmatpush1.msra.mxu0 0.0
  %1459 = vmatprep.subr.mxu0 0.0
  %1460 = vmatpush1.msra.mxu0 0.0
  %1461 = vmatprep.subr.mxu0 0.0
  %1462 = vmatpush1.msra.mxu0 0.0
  %1463 = vmatprep.subr.mxu0 0.0
  %1464 = vmatpush1.msra.mxu0 0.0
  %1465 = vmatprep.subr.mxu0 0.0
  %1466 = vmatpush1.msra.mxu0 0.0
  %1467 = vmatprep.subr.mxu0 0.0
  %1468 = vmatpush1.msra.mxu0 0.0
  %1469 = vmatprep.subr.mxu0 0.0
  %1470 = vmatpush1.msra.mxu0 0.0
  %1471 = vmatprep.subr.mxu0 0.0
  %1472 = vmatpush1.msra.mxu0 0.0
  %1473 = vmatprep.subr.mxu0 0.0
  %1474 = vmatpush1.msra.mxu0 0.0
  %1475 = vmatprep.mubr.f32.mxu0 0.0
  %1476 = vmatmul.mubr.f32.gmra.mrb[0].mxu0 %v1409
  %v1477 = vpop.f32.mrb[0].mxu0
  %v1478 = vadd.f32 %v1406, %v1477
  %v1479 = vpop.f32.mrb[0].mxu0
  %1480 = vdwg.mxu0
  %v1481 = vmul.f32 %v1238, %v1153
  %v1482 = vmul.f32 %v1318, %v1154
  %v1483 = vmul.f32 %v1398, %v1155
  %v1484 = vmul.f32 %v1478, %v1156
  %1489 = vrot.lane.b32.xlu0 %v1481, 16
  %v1490 = vpop.permute.xlu0 %1489
  %1491 = vrot.lane.b32.xlu0 %v1482, 16
  %v1492 = vpop.permute.xlu0 %1491
  %1493 = vrot.lane.b32.xlu0 %v1483, 16
  %v1494 = vpop.permute.xlu0 %1493
  %1495 = vrot.lane.b32.xlu0 %v1484, 16
  %v1496 = vpop.permute.xlu0 %1495
  %v1501 = vsel %vm30, %v745, %v1490
  %v1502 = vsel %vm30, %v746, %v1492
  %v1503 = vsel %vm30, %v747, %v1494
  %v1504 = vsel %vm30, %v748, %v1496
  %v1505 = vpack.c.bf16 %v1501, %v1501
  %v1506 = vpack.c.bf16 %v1502, %v1502
  %v1507 = vpack.c.bf16 %v1503, %v1503
  %v1508 = vpack.c.bf16 %v1504, %v1504
  %vm1509 = vcmask 257024
  %1510 = vst.msk [vmem:[%s2] sm:$0xf] %vm1509, %v1505
  %1511 = vst.msk [vmem:[%s2 + $0x4] sm:$0xf] %vm1509, %v1506
  %1512 = vst.msk [vmem:[%s2 + $0x8] sm:$0xf] %vm1509, %v1507
  %1513 = vst.msk [vmem:[%s2 + $0xc] sm:$0xf] %vm1509, %v1508
  // Predicated region
  $region10: #{decoder_forward.22} parent=0 // pred_check
    _
  $region11: #{decoder_forward.22} parent=0 // pred_check_branch
    %1515 = sbr.rel (0) target = $region13
  $region12: #{decoder_forward.22} parent=0 // pred_region
    _
  $region13: #{decoder_forward.22} parent=0 // pred_fallthru
    _
  // Predicated region
  $region14: #{decoder_forward.22} parent=0 // pred_check
    _
  $region15: #{decoder_forward.22} parent=0 // pred_check_branch
    %1517 = sbr.rel (0) target = $region17
  $region16: #{decoder_forward.22} parent=0 // pred_region
    _
  $region17: #{decoder_forward.22} parent=0 // pred_fallthru
    _

// kernel: decoder_forward.24
$region0: #{decoder_forward.24}
  #allocation0 [shape = 'u32[]', space=smem, size = 0x4, offset = 0x4, fixed_abs, tag = 'smem constant byte address 0x4 - core index']
  #allocation1 [shape = 'u32[144,128]{1,0:T(1,128)}', space=vmem, size = 0x12000, scoped, tag = 'internal scratch']
  %s0 = inlined_call_operand.vmem [shape: bf16[32,32], index: 0, kind: input, shape index: {}]
  %s1 = inlined_call_operand.vmem [shape: bf16[32,32], index: 1, kind: input, shape index: {}]
  %s2 = inlined_call_operand.vmem [shape: f32[1,32], index: 2, kind: input, shape index: {}]
  %s3 = inlined_call_operand.vmem [shape: f32[1,32], index: 3, kind: input, shape index: {}]
  %s4 = inlined_call_operand.vmem [shape: bf16[32,32], index: 4, kind: output, shape index: {}]
  %s5 = sld [smem:[#allocation0]]
  $region26: #{decoder_forward.24} parent=0
    _
  %s7 = ssub.s32 1, %s5
  %s8 = scalar_select 0, %s7, %s5
  // Predicated region
  $region2: #{decoder_forward.24} parent=0 // pred_check
    _
  $region3: #{decoder_forward.24} parent=0 // pred_check_branch
    %10 = sbr.rel (0) target = $region5
  $region4: #{decoder_forward.24} parent=0 // pred_region
    _
  $region5: #{decoder_forward.24} parent=0 // pred_fallthru
    _
  // Predicated region
  $region6: #{decoder_forward.24} parent=0 // pred_check
    _
  $region7: #{decoder_forward.24} parent=0 // pred_check_branch
    %12 = sbr.rel (0) target = $region9
  $region8: #{decoder_forward.24} parent=0 // pred_region
    _
  $region9: #{decoder_forward.24} parent=0 // pred_fallthru
    _
  // Predicated region
  $region10: #{decoder_forward.24} parent=0 // pred_check
    _
  $region11: #{decoder_forward.24} parent=0 // pred_check_branch
    %14 = sbr.rel (0) target = $region13
  $region12: #{decoder_forward.24} parent=0 // pred_region
    _
  $region13: #{decoder_forward.24} parent=0 // pred_fallthru
    _
  // Predicated region
  $region14: #{decoder_forward.24} parent=0 // pred_check
    _
  $region15: #{decoder_forward.24} parent=0 // pred_check_branch
    %16 = sbr.rel (0) target = $region17
  $region16: #{decoder_forward.24} parent=0 // pred_region
    _
  $region17: #{decoder_forward.24} parent=0 // pred_fallthru
    _
  %v17 = vld [vmem:[%s0] sm:$0xf]
  %v18 = vld [vmem:[%s0 + $0x4] sm:$0xf]
  %v19 = vld [vmem:[%s0 + $0x8] sm:$0xf]
  %v20 = vld [vmem:[%s0 + $0xc] sm:$0xf]
  %v21 = vunpack.c.l.bf16 %v17
  %v22 = vunpack.c.l.bf16 %v18
  %v23 = vunpack.c.l.bf16 %v19
  %v24 = vunpack.c.l.bf16 %v20
  %v25 = vld [vmem:[%s1] sm:$0xf]
  %v26 = vld [vmem:[%s1 + $0x4] sm:$0xf]
  %v27 = vld [vmem:[%s1 + $0x8] sm:$0xf]
  %v28 = vld [vmem:[%s1 + $0xc] sm:$0xf]
  %v29 = vunpack.c.l.bf16 %v25
  %v30 = vunpack.c.l.bf16 %v26
  %v31 = vunpack.c.l.bf16 %v27
  %v32 = vunpack.c.l.bf16 %v28
  %v33 = vadd.f32 %v21, %v29
  %v34 = vadd.f32 %v22, %v30
  %v35 = vadd.f32 %v23, %v31
  %v36 = vadd.f32 %v24, %v32
  %v37 = vld [vmem:[%s2] sm:$0x1]
  %v38 = vld [vmem:[%s3] sm:$0x1]
  %vm39 = vcmask 261120
  %v40 = vsel %vm39, %v33, 0.0
  %41 = vadd.xlane.f32.xlu0 %v40
  %v42 = vpop.xlane.xlu0 %41
  %v43 = vsel %vm39, %v34, 0.0
  %44 = vadd.xlane.f32.xlu0 %v43
  %v45 = vpop.xlane.xlu0 %44
  %v46 = vsel %vm39, %v35, 0.0
  %47 = vadd.xlane.f32.xlu0 %v46
  %v48 = vpop.xlane.xlu0 %47
  %v49 = vsel %vm39, %v36, 0.0
  %50 = vadd.xlane.f32.xlu0 %v49
  %v51 = vpop.xlane.xlu0 %50
  %v52 = vrcp.pop 32.0
  %v53 = vmul.f32 %v42, %v52
  %v54 = vmul.f32 %v45, %v52
  %v55 = vmul.f32 %v48, %v52
  %v56 = vmul.f32 %v51, %v52
  %v57 = vsub.f32 %v33, %v53
  %v58 = vsub.f32 %v34, %v54
  %v59 = vsub.f32 %v35, %v55
  %v60 = vsub.f32 %v36, %v56
  %v61 = vmul.f32 %v57, %v57
  %v62 = vmul.f32 %v58, %v58
  %v63 = vmul.f32 %v59, %v59
  %v64 = vmul.f32 %v60, %v60
  %v65 = vsel %vm39, %v61, 0.0
  %66 = vadd.xlane.f32.xlu0 %v65
  %v67 = vpop.xlane.xlu0 %66
  %v68 = vsel %vm39, %v62, 0.0
  %69 = vadd.xlane.f32.xlu0 %v68
  %v70 = vpop.xlane.xlu0 %69
  %v71 = vsel %vm39, %v63, 0.0
  %72 = vadd.xlane.f32.xlu0 %v71
  %v73 = vpop.xlane.xlu0 %72
  %v74 = vsel %vm39, %v64, 0.0
  %75 = vadd.xlane.f32.xlu0 %v74
  %v76 = vpop.xlane.xlu0 %75
  %v77 = vmul.f32 %v67, %v52
  %v78 = vmul.f32 %v70, %v52
  %v79 = vmul.f32 %v73, %v52
  %v80 = vmul.f32 %v76, %v52
  %v81 = vadd.f32 %v77, 1e-05
  %v82 = vadd.f32 %v78, 1e-05
  %v83 = vadd.f32 %v79, 1e-05
  %v84 = vadd.f32 %v80, 1e-05
  %v85 = vrsqrt.pop %v81
  %v86 = vrsqrt.pop %v82
  %v87 = vrsqrt.pop %v83
  %v88 = vrsqrt.pop %v84
  %v89 = vmul.f32 %v57, %v85
  %v90 = vmul.f32 %v58, %v86
  %v91 = vmul.f32 %v59, %v87
  %v92 = vmul.f32 %v60, %v88
  %v94 = vlaneseq
  %v95 = vshrl.u32 %v94, 7
  %v96 = vsub.s32 0, %v95
  %v97 = vrot.slane %v37, %v96
  %v99 = vmul.f32 %v89, %v97
  %v100 = vmul.f32 %v90, %v97
  %v101 = vmul.f32 %v91, %v97
  %v102 = vmul.f32 %v92, %v97
  %v104 = vlaneseq
  %v105 = vshrl.u32 %v104, 7
  %v106 = vsub.s32 0, %v105
  %v107 = vrot.slane %v38, %v106
  %v109 = vadd.f32 %v99, %v107
  %v110 = vadd.f32 %v100, %v107
  %v111 = vadd.f32 %v101, %v107
  %v112 = vadd.f32 %v102, %v107
  %v113 = vpack.c.bf16 %v110, %v109
  %v114 = vpack.c.bf16 %v112, %v111
  %v117 = vunpack.c.l.b16 %v113
  %v118 = vunpack.c.h.b16 %v113
  %v119 = vunpack.c.l.b16 %v114
  %v120 = vunpack.c.h.b16 %v114
  %v121 = vpack.c.b16 %v117, %v117
  %v122 = vpack.c.b16 %v118, %v118
  %v123 = vpack.c.b16 %v119, %v119
  %v124 = vpack.c.b16 %v120, %v120
  %vm129 = vcmask 257024
  %130 = vst.msk [vmem:[%s4] sm:$0xf] %vm129, %v121
  %131 = vst.msk [vmem:[%s4 + $0x4] sm:$0xf] %vm129, %v122
  %132 = vst.msk [vmem:[%s4 + $0x8] sm:$0xf] %vm129, %v123
  %133 = vst.msk [vmem:[%s4 + $0xc] sm:$0xf] %vm129, %v124
  // Predicated region
  $region18: #{decoder_forward.24} parent=0 // pred_check
    _
  $region19: #{decoder_forward.24} parent=0 // pred_check_branch
    %135 = sbr.rel (0) target = $region21
  $region20: #{decoder_forward.24} parent=0 // pred_region
    _
  $region21: #{decoder_forward.24} parent=0 // pred_fallthru
    _
  // Predicated region
  $region22: #{decoder_forward.24} parent=0 // pred_check
    _
  $region23: #{decoder_forward.24} parent=0 // pred_check_branch
    %137 = sbr.rel (0) target = $region25
  $region24: #{decoder_forward.24} parent=0 // pred_region
    _
  $region25: #{decoder_forward.24} parent=0 // pred_fallthru
    _

// kernel: decoder_forward.26
$region0: #{decoder_forward.26}
  #allocation0 [shape = 'u32[]', space=smem, size = 0x4, offset = 0x4, fixed_abs, tag = 'smem constant byte address 0x4 - core index']
  #allocation1 [shape = 'u32[144,128]{1,0:T(1,128)}', space=vmem, size = 0x12000, scoped, tag = 'internal scratch']
  #allocation2 [shape = 'f32[32,128]{1,0:T(8,128)}', space=vmem, size = 0x4000, scoped, tag = 'scratch operand']
  %s0 = inlined_call_operand.vmem [shape: bf16[32,64], index: 0, kind: input, shape index: {}]
  %s1 = inlined_call_operand.vmem [shape: bf16[64,128], index: 1, kind: input, shape index: {}]
  %s2 = inlined_call_operand.vmem [shape: f32[1,128], index: 2, kind: input, shape index: {}]
  %s3 = inlined_call_operand.vmem [shape: bf16[32,128], index: 3, kind: output, shape index: {}]
  %s4 = sld [smem:[#allocation0]]
  $region30: #{decoder_forward.26} parent=0
    _
  %s6 = ssub.s32 1, %s4
  %s7 = scalar_select 0, %s6, %s4
  // Predicated region
  $region2: #{decoder_forward.26} parent=0 // pred_check
    _
  $region3: #{decoder_forward.26} parent=0 // pred_check_branch
    %9 = sbr.rel (0) target = $region5
  $region4: #{decoder_forward.26} parent=0 // pred_region
    _
  $region5: #{decoder_forward.26} parent=0 // pred_fallthru
    _
  // Predicated region
  $region6: #{decoder_forward.26} parent=0 // pred_check
    _
  $region7: #{decoder_forward.26} parent=0 // pred_check_branch
    %11 = sbr.rel (0) target = $region9
  $region8: #{decoder_forward.26} parent=0 // pred_region
    _
  $region9: #{decoder_forward.26} parent=0 // pred_fallthru
    _
  // Predicated region
  $region10: #{decoder_forward.26} parent=0 // pred_check
    _
  $region11: #{decoder_forward.26} parent=0 // pred_check_branch
    %13 = sbr.rel (0) target = $region13
  $region12: #{decoder_forward.26} parent=0 // pred_region
    _
  $region13: #{decoder_forward.26} parent=0 // pred_fallthru
    _
  %p15 = scmp.eq.s32.totalorder 0, 0
  // Predicated region
  $region14: #{decoder_forward.26} parent=0 // pred_check
    %p16 = pneg %p15
  $region15: #{decoder_forward.26} parent=0 // pred_check_branch
    %18 = sbr.rel (%p16) target = $region17
  $region16: #{decoder_forward.26} parent=0 // pred_region
    %19 = vst [vmem:[#allocation2] sm:$0xff] 0.0
    %20 = vst [vmem:[#allocation2 + $0x8] sm:$0xff] 0.0
    %21 = vst [vmem:[#allocation2 + $0x10] sm:$0xff] 0.0
    %22 = vst [vmem:[#allocation2 + $0x18] sm:$0xff] 0.0
  $region17: #{decoder_forward.26} parent=0 // pred_fallthru
    _
  %v23 = vld [vmem:[#allocation2] sm:$0xff]
  %v24 = vld [vmem:[#allocation2 + $0x8] sm:$0xff]
  %v25 = vld [vmem:[#allocation2 + $0x10] sm:$0xff]
  %v26 = vld [vmem:[#allocation2 + $0x18] sm:$0xff]
  %v27 = vld [vmem:[%s0] sm:$0xf]
  %v28 = vld [vmem:[%s0 + $0x4] sm:$0xf]
  %v29 = vld [vmem:[%s0 + $0x8] sm:$0xf]
  %v30 = vld [vmem:[%s0 + $0xc] sm:$0xf]
  %v31 = vld [vmem:[%s1] sm:$0xf]
  %v32 = vld [vmem:[%s1 + $0x4] sm:$0xf]
  %v33 = vld [vmem:[%s1 + $0x8] sm:$0xf]
  %v34 = vld [vmem:[%s1 + $0xc] sm:$0xf]
  %v35 = vld [vmem:[%s1 + $0x10] sm:$0xf]
  %v36 = vld [vmem:[%s1 + $0x14] sm:$0xf]
  %v37 = vld [vmem:[%s1 + $0x18] sm:$0xf]
  %v38 = vld [vmem:[%s1 + $0x1c] sm:$0xf]
  %v43 = vunpack.c.l.b16 %v27
  %v44 = vunpack.c.l.b16 %v28
  %v45 = vunpack.c.l.b16 %v29
  %v46 = vunpack.c.l.b16 %v30
  %v47 = vpack.c.b16 %v44, %v43
  %v48 = vpack.c.b16 %v46, %v45
  %v57 = vunpack.c.l.b16 %v31
  %v58 = vunpack.c.l.b16 %v32
  %v59 = vunpack.c.l.b16 %v33
  %v60 = vunpack.c.l.b16 %v34
  %v61 = vunpack.c.l.b16 %v35
  %v62 = vunpack.c.l.b16 %v36
  %v63 = vunpack.c.l.b16 %v37
  %v64 = vunpack.c.l.b16 %v38
  %v65 = vpack.c.b16 %v58, %v57
  %v66 = vpack.c.b16 %v60, %v59
  %v67 = vpack.c.b16 %v62, %v61
  %v68 = vpack.c.b16 %v64, %v63
  %vm73 = vcmask 523264
  %v75 = vsel %vm73, %v47, 0
  %v78 = vsel %vm73, %v48, 0
  %80 = vmatprep.subr.bf16.mxu0 0
  %81 = vmatpush1.bf16.msra.mxu0 %v65
  %82 = vmatprep.subr.bf16.mxu0 0
  %83 = vmatpush1.bf16.msra.mxu0 %v66
  %84 = vmatprep.subr.bf16.mxu0 0
  %85 = vmatpush1.bf16.msra.mxu0 %v67
  %86 = vmatprep.subr.bf16.mxu0 0
  %87 = vmatpush1.bf16.msra.mxu0 %v68
  %88 = vmatprep.subr.bf16.mxu0 0
  %89 = vmatpush1.bf16.msra.mxu0 0
  %90 = vmatprep.subr.bf16.mxu0 0
  %91 = vmatpush1.bf16.msra.mxu0 0
  %92 = vmatprep.subr.bf16.mxu0 0
  %93 = vmatpush1.bf16.msra.mxu0 0
  %94 = vmatprep.subr.bf16.mxu0 0
  %95 = vmatpush1.bf16.msra.mxu0 0
  %96 = vmatprep.subr.bf16.mxu0 0
  %97 = vmatpush1.bf16.msra.mxu0 0
  %98 = vmatprep.subr.bf16.mxu0 0
  %99 = vmatpush1.bf16.msra.mxu0 0
  %100 = vmatprep.subr.bf16.mxu0 0
  %101 = vmatpush1.bf16.msra.mxu0 0
  %102 = vmatprep.subr.bf16.mxu0 0
  %103 = vmatpush1.bf16.msra.mxu0 0
  %104 = vmatprep.subr.bf16.mxu0 0
  %105 = vmatpush1.bf16.msra.mxu0 0
  %106 = vmatprep.subr.bf16.mxu0 0
  %107 = vmatpush1.bf16.msra.mxu0 0
  %108 = vmatprep.subr.bf16.mxu0 0
  %109 = vmatpush1.bf16.msra.mxu0 0
  %110 = vmatprep.subr.bf16.mxu0 0
  %111 = vmatpush1.bf16.msra.mxu0 0
  %112 = vmatprep.mubr.bf16.mxu0 0
  %113 = vmatmul.mubr.bf16.gmra.mrb[0].mxu0 %v75
  %v114 = vpop.f32.mrb[0].mxu0
  %v115 = vadd.f32 0.0, %v114
  %v116 = vpop.f32.mrb[0].mxu0
  %v117 = vpop.f32.mrb[0].mxu0
  %v118 = vadd.f32 0.0, %v117
  %v119 = vpop.f32.mrb[0].mxu0
  %120 = vmatprep.mubr.bf16.mxu0 0
  %121 = vmatmul.mubr.bf16.gmra.mrb[0].mxu0 %v78
  %v122 = vpop.f32.mrb[0].mxu0
  %v123 = vadd.f32 0.0, %v122
  %v124 = vpop.f32.mrb[0].mxu0
  %v125 = vpop.f32.mrb[0].mxu0
  %v126 = vadd.f32 0.0, %v125
  %v127 = vpop.f32.mrb[0].mxu0
  %128 = vdwg.mxu0
  %v129 = vadd.f32 %v23, %v115
  %v130 = vadd.f32 %v24, %v118
  %v131 = vadd.f32 %v25, %v123
  %v132 = vadd.f32 %v26, %v126
  %133 = vst [vmem:[#allocation2] sm:$0xff] %v129
  %134 = vst [vmem:[#allocation2 + $0x8] sm:$0xff] %v130
  %135 = vst [vmem:[#allocation2 + $0x10] sm:$0xff] %v131
  %136 = vst [vmem:[#allocation2 + $0x18] sm:$0xff] %v132
  // Predicated region
  $region18: #{decoder_forward.26} parent=0 // pred_check
    %p137 = pneg %p15
  $region19: #{decoder_forward.26} parent=0 // pred_check_branch
    %139 = sbr.rel (%p137) target = $region21
  $region20: #{decoder_forward.26} parent=0 // pred_region
    %v140 = vld [vmem:[#allocation2] sm:$0xff]
    %v141 = vld [vmem:[#allocation2 + $0x8] sm:$0xff]
    %v142 = vld [vmem:[#allocation2 + $0x10] sm:$0xff]
    %v143 = vld [vmem:[#allocation2 + $0x18] sm:$0xff]
    %v144 = vld [vmem:[%s2] sm:$0x1]
    %v146 = vlaneseq
    %v147 = vshrl.u32 %v146, 7
    %v148 = vsub.s32 0, %v147
    %v149 = vrot.slane %v144, %v148
    %v151 = vadd.f32 %v140, %v149
    %v152 = vadd.f32 %v141, %v149
    %v153 = vadd.f32 %v142, %v149
    %v154 = vadd.f32 %v143, %v149
    %v155 = vpack.c.bf16 %v152, %v151
    %v156 = vpack.c.bf16 %v154, %v153
    %v159 = vunpack.c.l.b16 %v155
    %v160 = vunpack.c.h.b16 %v155
    %v161 = vunpack.c.l.b16 %v156
    %v162 = vunpack.c.h.b16 %v156
    %v163 = vpack.c.b16 %v159, %v159
    %v164 = vpack.c.b16 %v160, %v160
    %v165 = vpack.c.b16 %v161, %v161
    %v166 = vpack.c.b16 %v162, %v162
    %171 = vst [vmem:[%s3] sm:$0xf] %v163
    %172 = vst [vmem:[%s3 + $0x4] sm:$0xf] %v164
    %173 = vst [vmem:[%s3 + $0x8] sm:$0xf] %v165
    %174 = vst [vmem:[%s3 + $0xc] sm:$0xf] %v166
  $region21: #{decoder_forward.26} parent=0 // pred_fallthru
    _
  // Predicated region
  $region22: #{decoder_forward.26} parent=0 // pred_check
    _
  $region23: #{decoder_forward.26} parent=0 // pred_check_branch
    %176 = sbr.rel (0) target = $region25
  $region24: #{decoder_forward.26} parent=0 // pred_region
    _
  $region25: #{decoder_forward.26} parent=0 // pred_fallthru
    _
  // Predicated region
  $region26: #{decoder_forward.26} parent=0 // pred_check
    _
  $region27: #{decoder_forward.26} parent=0 // pred_check_branch
    %178 = sbr.rel (0) target = $region29
  $region28: #{decoder_forward.26} parent=0 // pred_region
    _
  $region29: #{decoder_forward.26} parent=0 // pred_fallthru
    _

// kernel: decoder_forward.25
$region0: #{decoder_forward.25}
  #allocation0 [shape = 'u32[]', space=smem, size = 0x4, offset = 0x4, fixed_abs, tag = 'smem constant byte address 0x4 - core index']
  #allocation1 [shape = 'u32[144,128]{1,0:T(1,128)}', space=vmem, size = 0x12000, scoped, tag = 'internal scratch']
  #allocation2 [shape = 'f32[32,128]{1,0:T(8,128)}', space=vmem, size = 0x4000, scoped, tag = 'scratch operand']
  %s0 = inlined_call_operand.vmem [shape: bf16[32,32], index: 0, kind: input, shape index: {}]
  %s1 = inlined_call_operand.vmem [shape: bf16[32,128], index: 1, kind: input, shape index: {}]
  %s2 = inlined_call_operand.vmem [shape: f32[1,128], index: 2, kind: input, shape index: {}]
  %s3 = inlined_call_operand.vmem [shape: bf16[32,128], index: 3, kind: output, shape index: {}]
  %s4 = sld [smem:[#allocation0]]
  $region30: #{decoder_forward.25} parent=0
    _
  %s6 = ssub.s32 1, %s4
  %s7 = scalar_select 0, %s6, %s4
  // Predicated region
  $region2: #{decoder_forward.25} parent=0 // pred_check
    _
  $region3: #{decoder_forward.25} parent=0 // pred_check_branch
    %9 = sbr.rel (0) target = $region5
  $region4: #{decoder_forward.25} parent=0 // pred_region
    _
  $region5: #{decoder_forward.25} parent=0 // pred_fallthru
    _
  // Predicated region
  $region6: #{decoder_forward.25} parent=0 // pred_check
    _
  $region7: #{decoder_forward.25} parent=0 // pred_check_branch
    %11 = sbr.rel (0) target = $region9
  $region8: #{decoder_forward.25} parent=0 // pred_region
    _
  $region9: #{decoder_forward.25} parent=0 // pred_fallthru
    _
  // Predicated region
  $region10: #{decoder_forward.25} parent=0 // pred_check
    _
  $region11: #{decoder_forward.25} parent=0 // pred_check_branch
    %13 = sbr.rel (0) target = $region13
  $region12: #{decoder_forward.25} parent=0 // pred_region
    _
  $region13: #{decoder_forward.25} parent=0 // pred_fallthru
    _
  %p15 = scmp.eq.s32.totalorder 0, 0
  // Predicated region
  $region14: #{decoder_forward.25} parent=0 // pred_check
    %p16 = pneg %p15
  $region15: #{decoder_forward.25} parent=0 // pred_check_branch
    %18 = sbr.rel (%p16) target = $region17
  $region16: #{decoder_forward.25} parent=0 // pred_region
    %19 = vst [vmem:[#allocation2] sm:$0xff] 0.0
    %20 = vst [vmem:[#allocation2 + $0x8] sm:$0xff] 0.0
    %21 = vst [vmem:[#allocation2 + $0x10] sm:$0xff] 0.0
    %22 = vst [vmem:[#allocation2 + $0x18] sm:$0xff] 0.0
  $region17: #{decoder_forward.25} parent=0 // pred_fallthru
    _
  %v23 = vld [vmem:[#allocation2] sm:$0xff]
  %v24 = vld [vmem:[#allocation2 + $0x8] sm:$0xff]
  %v25 = vld [vmem:[#allocation2 + $0x10] sm:$0xff]
  %v26 = vld [vmem:[#allocation2 + $0x18] sm:$0xff]
  %v27 = vld [vmem:[%s0] sm:$0xf]
  %v28 = vld [vmem:[%s0 + $0x4] sm:$0xf]
  %v29 = vld [vmem:[%s0 + $0x8] sm:$0xf]
  %v30 = vld [vmem:[%s0 + $0xc] sm:$0xf]
  %v31 = vld [vmem:[%s1] sm:$0xf]
  %v32 = vld [vmem:[%s1 + $0x4] sm:$0xf]
  %v33 = vld [vmem:[%s1 + $0x8] sm:$0xf]
  %v34 = vld [vmem:[%s1 + $0xc] sm:$0xf]
  %v39 = vunpack.c.l.b16 %v27
  %v40 = vunpack.c.l.b16 %v28
  %v41 = vunpack.c.l.b16 %v29
  %v42 = vunpack.c.l.b16 %v30
  %v43 = vpack.c.b16 %v40, %v39
  %v44 = vpack.c.b16 %v42, %v41
  %v49 = vunpack.c.l.b16 %v31
  %v50 = vunpack.c.l.b16 %v32
  %v51 = vunpack.c.l.b16 %v33
  %v52 = vunpack.c.l.b16 %v34
  %v53 = vpack.c.b16 %v50, %v49
  %v54 = vpack.c.b16 %v52, %v51
  %vm57 = vcmask 261120
  %v59 = vsel %vm57, %v43, 0
  %v62 = vsel %vm57, %v44, 0
  %64 = vmatprep.subr.bf16.mxu0 0
  %65 = vmatpush1.bf16.msra.mxu0 %v53
  %66 = vmatprep.subr.bf16.mxu0 0
  %67 = vmatpush1.bf16.msra.mxu0 %v54
  %68 = vmatprep.subr.bf16.mxu0 0
  %69 = vmatpush1.bf16.msra.mxu0 0
  %70 = vmatprep.subr.bf16.mxu0 0
  %71 = vmatpush1.bf16.msra.mxu0 0
  %72 = vmatprep.subr.bf16.mxu0 0
  %73 = vmatpush1.bf16.msra.mxu0 0
  %74 = vmatprep.subr.bf16.mxu0 0
  %75 = vmatpush1.bf16.msra.mxu0 0
  %76 = vmatprep.subr.bf16.mxu0 0
  %77 = vmatpush1.bf16.msra.mxu0 0
  %78 = vmatprep.subr.bf16.mxu0 0
  %79 = vmatpush1.bf16.msra.mxu0 0
  %80 = vmatprep.subr.bf16.mxu0 0
  %81 = vmatpush1.bf16.msra.mxu0 0
  %82 = vmatprep.subr.bf16.mxu0 0
  %83 = vmatpush1.bf16.msra.mxu0 0
  %84 = vmatprep.subr.bf16.mxu0 0
  %85 = vmatpush1.bf16.msra.mxu0 0
  %86 = vmatprep.subr.bf16.mxu0 0
  %87 = vmatpush1.bf16.msra.mxu0 0
  %88 = vmatprep.subr.bf16.mxu0 0
  %89 = vmatpush1.bf16.msra.mxu0 0
  %90 = vmatprep.subr.bf16.mxu0 0
  %91 = vmatpush1.bf16.msra.mxu0 0
  %92 = vmatprep.subr.bf16.mxu0 0
  %93 = vmatpush1.bf16.msra.mxu0 0
  %94 = vmatprep.subr.bf16.mxu0 0
  %95 = vmatpush1.bf16.msra.mxu0 0
  %96 = vmatprep.mubr.bf16.mxu0 0
  %97 = vmatmul.mubr.bf16.gmra.mrb[0].mxu0 %v59
  %v98 = vpop.f32.mrb[0].mxu0
  %v99 = vadd.f32 0.0, %v98
  %v100 = vpop.f32.mrb[0].mxu0
  %v101 = vpop.f32.mrb[0].mxu0
  %v102 = vadd.f32 0.0, %v101
  %v103 = vpop.f32.mrb[0].mxu0
  %104 = vmatprep.mubr.bf16.mxu0 0
  %105 = vmatmul.mubr.bf16.gmra.mrb[0].mxu0 %v62
  %v106 = vpop.f32.mrb[0].mxu0
  %v107 = vadd.f32 0.0, %v106
  %v108 = vpop.f32.mrb[0].mxu0
  %v109 = vpop.f32.mrb[0].mxu0
  %v110 = vadd.f32 0.0, %v109
  %v111 = vpop.f32.mrb[0].mxu0
  %112 = vdwg.mxu0
  %v113 = vadd.f32 %v23, %v99
  %v114 = vadd.f32 %v24, %v102
  %v115 = vadd.f32 %v25, %v107
  %v116 = vadd.f32 %v26, %v110
  %117 = vst [vmem:[#allocation2] sm:$0xff] %v113
  %118 = vst [vmem:[#allocation2 + $0x8] sm:$0xff] %v114
  %119 = vst [vmem:[#allocation2 + $0x10] sm:$0xff] %v115
  %120 = vst [vmem:[#allocation2 + $0x18] sm:$0xff] %v116
  // Predicated region
  $region18: #{decoder_forward.25} parent=0 // pred_check
    %p121 = pneg %p15
  $region19: #{decoder_forward.25} parent=0 // pred_check_branch
    %123 = sbr.rel (%p121) target = $region21
  $region20: #{decoder_forward.25} parent=0 // pred_region
    %v124 = vld [vmem:[#allocation2] sm:$0xff]
    %v125 = vld [vmem:[#allocation2 + $0x8] sm:$0xff]
    %v126 = vld [vmem:[#allocation2 + $0x10] sm:$0xff]
    %v127 = vld [vmem:[#allocation2 + $0x18] sm:$0xff]
    %v128 = vld [vmem:[%s2] sm:$0x1]
    %v130 = vlaneseq
    %v131 = vshrl.u32 %v130, 7
    %v132 = vsub.s32 0, %v131
    %v133 = vrot.slane %v128, %v132
    %v135 = vadd.f32 %v124, %v133
    %v136 = vadd.f32 %v125, %v133
    %v137 = vadd.f32 %v126, %v133
    %v138 = vadd.f32 %v127, %v133
    %v139 = vmul.f32 %v135, %v135
    %v140 = vmul.f32 %v136, %v136
    %v141 = vmul.f32 %v137, %v137
    %v142 = vmul.f32 %v138, %v138
    %v143 = vmul.f32 %v135, %v139
    %v144 = vmul.f32 %v136, %v140
    %v145 = vmul.f32 %v137, %v141
    %v146 = vmul.f32 %v138, %v142
    %v147 = vmul.f32 %v143, 0.044715
    %v148 = vmul.f32 %v144, 0.044715
    %v149 = vmul.f32 %v145, 0.044715
    %v150 = vmul.f32 %v146, 0.044715
    %v151 = vadd.f32 %v135, %v147
    %v152 = vadd.f32 %v136, %v148
    %v153 = vadd.f32 %v137, %v149
    %v154 = vadd.f32 %v138, %v150
    %v155 = vmul.f32 %v151, 0.7978846
    %v156 = vmul.f32 %v152, 0.7978846
    %v157 = vmul.f32 %v153, 0.7978846
    %v158 = vmul.f32 %v154, 0.7978846
    %v159 = vtanh.pop %v155
    %v160 = vtanh.pop %v156
    %v161 = vtanh.pop %v157
    %v162 = vtanh.pop %v158
    %v163 = vadd.f32 %v159, 1.0
    %v164 = vadd.f32 %v160, 1.0
    %v165 = vadd.f32 %v161, 1.0
    %v166 = vadd.f32 %v162, 1.0
    %v167 = vmul.f32 %v163, 0.5
    %v168 = vmul.f32 %v164, 0.5
    %v169 = vmul.f32 %v165, 0.5
    %v170 = vmul.f32 %v166, 0.5
    %v171 = vmul.f32 %v135, %v167
    %v172 = vmul.f32 %v136, %v168
    %v173 = vmul.f32 %v137, %v169
    %v174 = vmul.f32 %v138, %v170
    %v175 = vpack.c.bf16 %v172, %v171
    %v176 = vpack.c.bf16 %v174, %v173
    %v179 = vunpack.c.l.b16 %v175
    %v180 = vunpack.c.h.b16 %v175
    %v181 = vunpack.c.l.b16 %v176
    %v182 = vunpack.c.h.b16 %v176
    %v183 = vpack.c.b16 %v179, %v179
    %v184 = vpack.c.b16 %v180, %v180
    %v185 = vpack.c.b16 %v181, %v181
    %v186 = vpack.c.b16 %v182, %v182
    %191 = vst [vmem:[%s3] sm:$0xf] %v183
    %192 = vst [vmem:[%s3 + $0x4] sm:$0xf] %v184
    %193 = vst [vmem:[%s3 + $0x8] sm:$0xf] %v185
    %194 = vst [vmem:[%s3 + $0xc] sm:$0xf] %v186
  $region21: #{decoder_forward.25} parent=0 // pred_fallthru
    _
  // Predicated region
  $region22: #{decoder_forward.25} parent=0 // pred_check
    _
  $region23: #{decoder_forward.25} parent=0 // pred_check_branch
    %196 = sbr.rel (0) target = $region25
  $region24: #{decoder_forward.25} parent=0 // pred_region
    _
  $region25: #{decoder_forward.25} parent=0 // pred_fallthru
    _
  // Predicated region
  $region26: #{decoder_forward.25} parent=0 // pred_check
    _
  $region27: #{decoder_forward.25} parent=0 // pred_check_branch
    %198 = sbr.rel (0) target = $region29
  $region28: #{decoder_forward.25} parent=0 // pred_region
    _
  $region29: #{decoder_forward.25} parent=0 // pred_fallthru
    _

// kernel: decoder_forward.37
$region0: #{decoder_forward.37}
  #allocation0 [shape = 'u32[]', space=smem, size = 0x4, offset = 0x4, fixed_abs, tag = 'smem constant byte address 0x4 - core index']
  #allocation1 [shape = 'u32[144,128]{1,0:T(1,128)}', space=vmem, size = 0x12000, scoped, tag = 'internal scratch']
  #allocation2 [shape = 'f32[32,256]{1,0:T(8,128)}', space=vmem, size = 0x8000, scoped, tag = 'scratch operand']
  %s0 = inlined_call_operand.vmem [shape: bf16[32,32], index: 0, kind: input, shape index: {}]
  %s1 = inlined_call_operand.vmem [shape: bf16[32,256], index: 1, kind: input, shape index: {}]
  %s2 = inlined_call_operand.vmem [shape: f32[1,256], index: 2, kind: input, shape index: {}]
  %s3 = inlined_call_operand.hbm [shape: f32[32,256], index: 3, kind: output, shape index: {}]
  %s4 = sld [smem:[#allocation0]]
  $region30: #{decoder_forward.37} parent=0
    _
  %s6 = ssub.s32 1, %s4
  %s7 = scalar_select 0, %s6, %s4
  $region1: #{decoder_forward.37} parent=0
    #allocation3 [shape = 'u8[32768]{0}', space=vmem, size = 0x8000, scoped, tag = 'output window, operand 0, single buffered']
    #allocation4 [shape = 's32[1]{0}', space=sflag, size = 0x4, scoped, tag = 'scoped memory for decoder_forward.37']
    %8 = vsyncpa [#allocation4], 0
    // Predicated region
    $region2: #{decoder_forward.37} parent=1 // pred_check
      _
    $region3: #{decoder_forward.37} parent=1 // pred_check_branch
      %10 = sbr.rel (0) target = $region5
    $region4: #{decoder_forward.37} parent=1 // pred_region
      _
    $region5: #{decoder_forward.37} parent=1 // pred_fallthru
      _
    // Predicated region
    $region6: #{decoder_forward.37} parent=1 // pred_check
      _
    $region7: #{decoder_forward.37} parent=1 // pred_check_branch
      %12 = sbr.rel (0) target = $region9
    $region8: #{decoder_forward.37} parent=1 // pred_region
      _
    $region9: #{decoder_forward.37} parent=1 // pred_fallthru
      _
    // Predicated region
    $region10: #{decoder_forward.37} parent=1 // pred_check
      _
    $region11: #{decoder_forward.37} parent=1 // pred_check_branch
      %14 = sbr.rel (0) target = $region13
    $region12: #{decoder_forward.37} parent=1 // pred_region
      _
    $region13: #{decoder_forward.37} parent=1 // pred_fallthru
      _
    %p16 = scmp.eq.s32.totalorder 0, 0
    // Predicated region
    $region14: #{decoder_forward.37} parent=1 // pred_check
      %p17 = pneg %p16
    $region15: #{decoder_forward.37} parent=1 // pred_check_branch
      %19 = sbr.rel (%p17) target = $region17
    $region16: #{decoder_forward.37} parent=1 // pred_region
      %20 = vst [vmem:[#allocation2] sm:$0xff] 0.0
      %21 = vst [vmem:[#allocation2 + $0x8] sm:$0xff] 0.0
      %22 = vst [vmem:[#allocation2 + $0x10] sm:$0xff] 0.0
      %23 = vst [vmem:[#allocation2 + $0x18] sm:$0xff] 0.0
      %24 = vst [vmem:[#allocation2 + $0x20] sm:$0xff] 0.0
      %25 = vst [vmem:[#allocation2 + $0x28] sm:$0xff] 0.0
      %26 = vst [vmem:[#allocation2 + $0x30] sm:$0xff] 0.0
      %27 = vst [vmem:[#allocation2 + $0x38] sm:$0xff] 0.0
    $region17: #{decoder_forward.37} parent=1 // pred_fallthru
      _
    %v28 = vld [vmem:[#allocation2] sm:$0xff]
    %v29 = vld [vmem:[#allocation2 + $0x8] sm:$0xff]
    %v30 = vld [vmem:[#allocation2 + $0x10] sm:$0xff]
    %v31 = vld [vmem:[#allocation2 + $0x18] sm:$0xff]
    %v32 = vld [vmem:[#allocation2 + $0x20] sm:$0xff]
    %v33 = vld [vmem:[#allocation2 + $0x28] sm:$0xff]
    %v34 = vld [vmem:[#allocation2 + $0x30] sm:$0xff]
    %v35 = vld [vmem:[#allocation2 + $0x38] sm:$0xff]
    %v36 = vld [vmem:[%s0] sm:$0xf]
    %v37 = vld [vmem:[%s0 + $0x4] sm:$0xf]
    %v38 = vld [vmem:[%s0 + $0x8] sm:$0xf]
    %v39 = vld [vmem:[%s0 + $0xc] sm:$0xf]
    %v40 = vld [vmem:[%s1] sm:$0xff]
    %v41 = vld [vmem:[%s1 + $0x8] sm:$0xff]
    %v42 = vld [vmem:[%s1 + $0x10] sm:$0xff]
    %v43 = vld [vmem:[%s1 + $0x18] sm:$0xff]
    %v48 = vunpack.c.l.b16 %v36
    %v49 = vunpack.c.l.b16 %v37
    %v50 = vunpack.c.l.b16 %v38
    %v51 = vunpack.c.l.b16 %v39
    %v52 = vpack.c.b16 %v49, %v48
    %v53 = vpack.c.b16 %v51, %v50
    %v58 = vunpack.c.l.b16 %v40
    %v59 = vunpack.c.h.b16 %v40
    %v60 = vunpack.c.l.b16 %v41
    %v61 = vunpack.c.h.b16 %v41
    %v62 = vunpack.c.l.b16 %v42
    %v63 = vunpack.c.h.b16 %v42
    %v64 = vunpack.c.l.b16 %v43
    %v65 = vunpack.c.h.b16 %v43
    %v66 = vpack.c.b16 %v60, %v58
    %v67 = vpack.c.b16 %v61, %v59
    %v68 = vpack.c.b16 %v64, %v62
    %v69 = vpack.c.b16 %v65, %v63
    %vm74 = vcmask 261120
    %v76 = vsel %vm74, %v52, 0
    %v79 = vsel %vm74, %v53, 0
    %81 = vmatprep.subr.bf16.mxu0 %v67
    %82 = vmatpush1.bf16.msra.mxu0 %v66
    %83 = vmatprep.subr.bf16.mxu0 %v69
    %84 = vmatpush1.bf16.msra.mxu0 %v68
    %85 = vmatprep.subr.bf16.mxu0 0
    %86 = vmatpush1.bf16.msra.mxu0 0
    %87 = vmatprep.subr.bf16.mxu0 0
    %88 = vmatpush1.bf16.msra.mxu0 0
    %89 = vmatprep.subr.bf16.mxu0 0
    %90 = vmatpush1.bf16.msra.mxu0 0
    %91 = vmatprep.subr.bf16.mxu0 0
    %92 = vmatpush1.bf16.msra.mxu0 0
    %93 = vmatprep.subr.bf16.mxu0 0
    %94 = vmatpush1.bf16.msra.mxu0 0
    %95 = vmatprep.subr.bf16.mxu0 0
    %96 = vmatpush1.bf16.msra.mxu0 0
    %97 = vmatprep.subr.bf16.mxu0 0
    %98 = vmatpush1.bf16.msra.mxu0 0
    %99 = vmatprep.subr.bf16.mxu0 0
    %100 = vmatpush1.bf16.msra.mxu0 0
    %101 = vmatprep.subr.bf16.mxu0 0
    %102 = vmatpush1.bf16.msra.mxu0 0
    %103 = vmatprep.subr.bf16.mxu0 0
    %104 = vmatpush1.bf16.msra.mxu0 0
    %105 = vmatprep.subr.bf16.mxu0 0
    %106 = vmatpush1.bf16.msra.mxu0 0
    %107 = vmatprep.subr.bf16.mxu0 0
    %108 = vmatpush1.bf16.msra.mxu0 0
    %109 = vmatprep.subr.bf16.mxu0 0
    %110 = vmatpush1.bf16.msra.mxu0 0
    %111 = vmatprep.subr.bf16.mxu0 0
    %112 = vmatpush1.bf16.msra.mxu0 0
    %113 = vmatprep.mubr.bf16.mxu0 0
    %114 = vmatmul.mubr.bf16.gmra.mrb[0].mxu0 %v76
    %v115 = vpop.f32.mrb[0].mxu0
    %v116 = vadd.f32 0.0, %v115
    %v117 = vpop.f32.mrb[0].mxu0
    %v118 = vadd.f32 0.0, %v117
    %v119 = vpop.f32.mrb[0].mxu0
    %v120 = vadd.f32 0.0, %v119
    %v121 = vpop.f32.mrb[0].mxu0
    %v122 = vadd.f32 0.0, %v121
    %123 = vmatprep.mubr.bf16.mxu0 0
    %124 = vmatmul.mubr.bf16.gmra.mrb[0].mxu0 %v79
    %v125 = vpop.f32.mrb[0].mxu0
    %v126 = vadd.f32 0.0, %v125
    %v127 = vpop.f32.mrb[0].mxu0
    %v128 = vadd.f32 0.0, %v127
    %v129 = vpop.f32.mrb[0].mxu0
    %v130 = vadd.f32 0.0, %v129
    %v131 = vpop.f32.mrb[0].mxu0
    %v132 = vadd.f32 0.0, %v131
    %133 = vdwg.mxu0
    %v134 = vadd.f32 %v28, %v116
    %v135 = vadd.f32 %v29, %v118
    %v136 = vadd.f32 %v30, %v120
    %v137 = vadd.f32 %v31, %v122
    %v138 = vadd.f32 %v32, %v126
    %v139 = vadd.f32 %v33, %v128
    %v140 = vadd.f32 %v34, %v130
    %v141 = vadd.f32 %v35, %v132
    %142 = vst [vmem:[#allocation2] sm:$0xff] %v134
    %143 = vst [vmem:[#allocation2 + $0x8] sm:$0xff] %v135
    %144 = vst [vmem:[#allocation2 + $0x10] sm:$0xff] %v136
    %145 = vst [vmem:[#allocation2 + $0x18] sm:$0xff] %v137
    %146 = vst [vmem:[#allocation2 + $0x20] sm:$0xff] %v138
    %147 = vst [vmem:[#allocation2 + $0x28] sm:$0xff] %v139
    %148 = vst [vmem:[#allocation2 + $0x30] sm:$0xff] %v140
    %149 = vst [vmem:[#allocation2 + $0x38] sm:$0xff] %v141
    // Predicated region
    $region18: #{decoder_forward.37} parent=1 // pred_check
      %p150 = pneg %p16
    $region19: #{decoder_forward.37} parent=1 // pred_check_branch
      %152 = sbr.rel (%p150) target = $region21
    $region20: #{decoder_forward.37} parent=1 // pred_region
      %v153 = vld [vmem:[#allocation2] sm:$0xff]
      %v154 = vld [vmem:[#allocation2 + $0x8] sm:$0xff]
      %v155 = vld [vmem:[#allocation2 + $0x10] sm:$0xff]
      %v156 = vld [vmem:[#allocation2 + $0x18] sm:$0xff]
      %v157 = vld [vmem:[#allocation2 + $0x20] sm:$0xff]
      %v158 = vld [vmem:[#allocation2 + $0x28] sm:$0xff]
      %v159 = vld [vmem:[#allocation2 + $0x30] sm:$0xff]
      %v160 = vld [vmem:[#allocation2 + $0x38] sm:$0xff]
      %v161 = vld [vmem:[%s2] sm:$0x3]
      %v163 = vlaneseq
      %v164 = vshrl.u32 %v163, 7
      %v165 = vsub.s32 0, %v164
      %v166 = vrot.slane %v161, %v165
      %v167 = vlaneseq
      %v168 = vshrl.u32 %v167, 7
      %v169 = vsub.s32 1, %v168
      %v170 = vrot.slane %v161, %v169
      %v173 = vadd.f32 %v153, %v166
      %v174 = vadd.f32 %v154, %v170
      %v175 = vadd.f32 %v155, %v166
      %v176 = vadd.f32 %v156, %v170
      %v177 = vadd.f32 %v157, %v166
      %v178 = vadd.f32 %v158, %v170
      %v179 = vadd.f32 %v159, %v166
      %v180 = vadd.f32 %v160, %v170
      %181 = vst [vmem:[#allocation3] sm:$0xff] %v173
      %182 = vst [vmem:[#allocation3 + $0x8] sm:$0xff] %v174
      %183 = vst [vmem:[#allocation3 + $0x10] sm:$0xff] %v175
      %184 = vst [vmem:[#allocation3 + $0x18] sm:$0xff] %v176
      %185 = vst [vmem:[#allocation3 + $0x20] sm:$0xff] %v177
      %186 = vst [vmem:[#allocation3 + $0x28] sm:$0xff] %v178
      %187 = vst [vmem:[#allocation3 + $0x30] sm:$0xff] %v179
      %188 = vst [vmem:[#allocation3 + $0x38] sm:$0xff] %v180
    $region21: #{decoder_forward.37} parent=1 // pred_fallthru
      _
    // Predicated region
    $region22: #{decoder_forward.37} parent=1 // pred_check
      _
    $region23: #{decoder_forward.37} parent=1 // pred_check_branch
      %190 = sbr.rel (0) target = $region25
    $region24: #{decoder_forward.37} parent=1 // pred_region
      %s192 = ssub.s32 1024, 1024
      %193 = vsyncadd [#allocation4], %s192
      %s194 = sshll.u32 [#allocation3], 4
      %s195 = int_to_ptr.vmem [resolvable:$true] %s194
      %200 = dma.vmem_to_hbm [thread:$0]  %s195, 1024, %s3, [#allocation4], 256, 256, 16
    $region25: #{decoder_forward.37} parent=1 // pred_fallthru
      _
    // Predicated region
    $region26: #{decoder_forward.37} parent=1 // pred_check
      _
    $region27: #{decoder_forward.37} parent=1 // pred_check_branch
      %202 = sbr.rel (0) target = $region29
    $region28: #{decoder_forward.37} parent=1 // pred_region
      %203 = dma.done [#allocation4], 1024
    $region29: #{decoder_forward.37} parent=1 // pred_fallthru
      _
    %204 = vsyncpa [#allocation4], 1

</llo_original>
